<compile_context>
chip_gen: v6e
topology: v6e:2x2x1
jax: 0.10.0
libtpu: 0.0.40
codegen_flags: <defaults>
</compile_context>

<pallas_src>
import numpy as np
import jax
import jax.numpy as jnp
from jax.experimental import pallas as pl
from jax.experimental.pallas import tpu as pltpu


def _build_layer_operators(weights, biases, W, C, K):
    """Per-layer fused-tap conv operators in the de-interleaved (w, c) lane order.

    Returns:
      m_all:    (L, K*W*C, W*C) f32  -- row index (kh, w_in, ci), col (w_out, co);
                zero 'same' padding along W baked into the operator.
      bias_all: (L, 1, W*C) f32      -- bias broadcast over w (index w*C + co).
    """
    L = weights.shape[0]
    WC = W * C
    pad = (K - 1) // 2

    # shift[kw, w_in, w_out] = 1 iff w_in == w_out + kw - pad (in range).
    shift = np.zeros((K, W, W), np.float32)
    for kw in range(K):
        for w_out in range(W):
            w_in = w_out + kw - pad
            if 0 <= w_in < W:
                shift[kw, w_in, w_out] = 1.0

    # conv[l,kh,w_in,ci,w_out,co] = sum_kw shift[kw,w_in,w_out] * w[l,kh,kw,ci,co]
    conv = jnp.einsum('kio,lhkcd->lhicod',
                      jnp.asarray(shift), weights.astype(jnp.float32),
                      precision=jax.lax.Precision.HIGHEST)
    m_all = conv.reshape(L, K * WC, WC)
    bias_all = jnp.tile(biases.astype(jnp.float32), (1, W)).reshape(L, 1, WC)
    return m_all, bias_all


def _pick_batch_tile(B, H):
    """Fold batch into the matmul M (<= 256 rows) while keeping >= 2 grid steps
    whenever B >= 2, so both v7x TensorCores get work under 'parallel'."""
    best = 1
    for d in range(1, B + 1):
        if B % d:
            continue
        if d * H > 256:
            break
        if B >= 2 and B // d < 2:
            continue
        best = d
    return best


def _make_kernel(bt, H, W, C, K, L, pad, out_dtype):
    WC = W * C
    KWC = K * WC

    def kernel(x_ref, m_ref, b_ref, o_ref):
        # x_ref : (bt, H, 2*WC)   lanes [0:WC] = x0 stream, [WC:2WC] = x1 stream
        # m_ref : (L, K*WC, WC)   VMEM-resident fused-tap conv operators
        # b_ref : (L, 1, WC)      VMEM-resident bias rows
        # o_ref : (bt, H, 2*WC)
        x = x_ref[...].astype(jnp.float32)
        x0 = x[:, :, :WC]
        x1 = x[:, :, WC:]

        if pad:  # hoisted zero halo rows (built once, reused every layer)
            zrows = jnp.zeros((bt, pad, WC), jnp.float32)

        for l in range(L):  # layers fused in one kernel invocation (L is small)
            x1p = jnp.concatenate([zrows, x1, zrows], axis=1) if pad else x1
            # im2col over the kh taps: one (bt*H, K*WC) @ (K*WC, WC) matmul.
            lhs = jnp.concatenate(
                [x1p[:, kh:kh + H, :] for kh in range(K)], axis=-1
            ).reshape(bt * H, KWC)
            conv = jnp.dot(lhs, m_ref[l],
                           preferred_element_type=jnp.float32,
                           precision=jax.lax.Precision.HIGHEST)
            # Additive coupling (VPU add) + stream swap (trace-time rename):
            # x0 never passes through the MXU, so it is carried exactly.
            new_x1 = x0.reshape(bt * H, WC) + conv + b_ref[l]
            x0, x1 = x1, new_x1.reshape(bt, H, WC)

        o_ref[:, :, :WC] = x0.astype(out_dtype)
        o_ref[:, :, WC:] = x1.astype(out_dtype)

    return kernel


def reversible_sequential_forward(inp, weights, biases):
    """revlib ReversibleSequential forward.

    inp:     (B, H, W, 2C)  NHWC (PyTorch NCHW with split_dim=1 -> last dim here)
    weights: (L, K, K, C, C) HWIO conv weights of the L wrapped Conv2d modules
    biases:  (L, C)
    returns: (B, H, W, 2C) = concat(final x0, final x1) along channels
    """
    B, H, W, D = inp.shape
    C = D // 2
    L, K = weights.shape[0], weights.shape[1]
    assert K % 2 == 1, "odd kernel size assumed (PyTorch 'same' padding)"
    pad = (K - 1) // 2
    WC = W * C

    m_all, bias_all = _build_layer_operators(weights, biases, W, C, K)

    # De-interleave the two reversible streams ONCE (tiny XLA copy) so the
    # per-pixel swap / pass-through never has to touch the MXU or the XLU.
    x0 = inp[..., :C].reshape(B, H, WC)
    x1 = inp[..., C:].reshape(B, H, WC)
    x_kernel = jnp.concatenate([x0, x1], axis=-1)          # (B, H, 2*WC) lane-dense

    bt = _pick_batch_tile(B, H)
    nb = B // bt

    out = pl.pallas_call(
        _make_kernel(bt, H, W, C, K, L, pad, inp.dtype),
        out_shape=jax.ShapeDtypeStruct((B, H, 2 * WC), inp.dtype),
        grid_spec=pltpu.PrefetchScalarGridSpec(
            num_scalar_prefetch=0,
            grid=(nb,),                                    # batch blocks only
            in_specs=[
                pl.BlockSpec((bt, H, 2 * WC), lambda b: (b, 0, 0)),
                pl.BlockSpec((L, K * WC, WC), lambda b: (0, 0, 0)),   # resident
                pl.BlockSpec((L, 1, WC), lambda b: (0, 0, 0)),        # resident
            ],
            out_specs=pl.BlockSpec((bt, H, 2 * WC), lambda b: (b, 0, 0)),
        ),
        input_output_aliases={0: 0},
        compiler_params=pltpu.CompilerParams(
            dimension_semantics=("parallel",),
        ),
    )(x_kernel, m_all, bias_all)

    y0 = out[..., :WC].reshape(B, H, W, C)
    y1 = out[..., WC:].reshape(B, H, W, C)
    return jnp.concatenate([y0, y1], axis=-1)


def _reference(inp, weights, biases):
    """Pure-JAX reference: the literal reversible additive-coupling chain."""
    B, H, W, D = inp.shape
    C = D // 2
    L, K = weights.shape[0], weights.shape[1]
    pad = (K - 1) // 2
    x0 = inp[..., :C].astype(jnp.float32)
    x1 = inp[..., C:].astype(jnp.float32)
    for l in range(L):
        x1p = jnp.pad(x1, ((0, 0), (pad, pad), (pad, pad), (0, 0)))
        conv = jnp.zeros((B, H, W, C), jnp.float32)
        for kh in range(K):
            for kw in range(K):
                conv = conv + jnp.einsum(
                    'bhwi,io->bhwo', x1p[:, kh:kh + H, kw:kw + W, :],
                    weights[l, kh, kw].astype(jnp.float32),
                    precision=jax.lax.Precision.HIGHEST)
        conv = conv + biases[l].astype(jnp.float32)
        x0, x1 = x1, x0 + conv
    return jnp.concatenate([x0, x1], axis=-1).astype(inp.dtype)


if __name__ == "__main__":
    B, C, H, W, K, L = 2, 4, 16, 16, 3, 4
    key = jax.random.PRNGKey(0)
    k_in, k_w, k_b = jax.random.split(key, 3)

    # Input is conceptually NCHW (B, 2C, H, W) in PyTorch; stored NHWC here so
    # channels map to TPU lanes (split_dim=1 corresponds to the last dim).
    inp = jax.random.normal(k_in, (B, H, W, 2 * C), dtype=jnp.float32)
    # L wrapped Conv2d(C, C, kernel=3, padding=1) modules, HWIO weights.
    weights = jax.random.normal(k_w, (L, K, K, C, C), dtype=jnp.float32) * 0.1
    biases = jax.random.normal(k_b, (L, C), dtype=jnp.float32) * 0.1

    y = jax.block_until_ready(
        jax.jit(reversible_sequential_forward)(inp, weights, biases))
    y_ref = _reference(inp, weights, biases)

    assert y.shape == (B, H, W, 2 * C)
    assert jnp.allclose(y, y_ref, atol=1e-3, rtol=1e-3), "mismatch vs reference"

    # TODO(synk): the memory-savings / autograd machinery (_ReversibleHalfResidualSwapFn
    # backward, ReversibleModuleCache, RNG-state forking) and the list-output coupling
    # branch (unreachable with a tensor-returning Conv2d) are not kernelized.
    print("KERNEL_OK")
</pallas_src>

<mosaic_0001>
module attributes {stable_mosaic.version = 11 : i64} {
  func.func @kernel(%arg0: i32, %arg1: memref<1x16x128xf32, #tpu.memory_space<vmem>>, %arg2: memref<4x192x64xf32, #tpu.memory_space<vmem>>, %arg3: memref<4x1x64xf32, #tpu.memory_space<vmem>>, %arg4: memref<1x16x128xf32, #tpu.memory_space<vmem>>) attributes {dimension_semantics = [#tpu.dimension_semantics<parallel>], iteration_bounds = array<i64: 2>, scalar_prefetch = 0 : i64, scratch_operands = 0 : i64, tpu.core_type = #tpu.core_type<tc>, window_params = [{transform_indices = @transform_0, window_bounds = array<i64: 1, 16, 128>}, {pipeline_mode = #tpu.pipeline_mode<synchronous>, transform_indices = @transform_1, window_bounds = array<i64: 4, 192, 64>}, {pipeline_mode = #tpu.pipeline_mode<synchronous>, transform_indices = @transform_2, window_bounds = array<i64: 4, 1, 64>}, {transform_indices = @transform_3, window_bounds = array<i64: 1, 16, 128>}]} {
    %c0 = arith.constant 0 : index
    %c0_0 = arith.constant 0 : index
    %c0_1 = arith.constant 0 : index
    %0 = vector.load %arg1[%c0, %c0_0, %c0_1] : memref<1x16x128xf32, #tpu.memory_space<vmem>>, vector<1x16x128xf32>
    %1 = vector.extract_strided_slice %0 {offsets = [0, 0, 0], sizes = [1, 16, 64], strides = [1, 1, 1]} : vector<1x16x128xf32> to vector<1x16x64xf32>
    %2 = vector.extract_strided_slice %0 {offsets = [0, 0, 64], sizes = [1, 16, 64], strides = [1, 1, 1]} : vector<1x16x128xf32> to vector<1x16x64xf32>
    %cst = arith.constant 0.000000e+00 : f32
    %3 = vector.broadcast %cst : f32 to vector<1x1x64xf32>
    %4 = tpu.concatenate %3, %2, %3 in 1 : vector<1x1x64xf32>, vector<1x16x64xf32>, vector<1x1x64xf32> -> vector<1x18x64xf32>
    %5 = vector.extract_strided_slice %4 {offsets = [0, 0, 0], sizes = [1, 16, 64], strides = [1, 1, 1]} : vector<1x18x64xf32> to vector<1x16x64xf32>
    %6 = vector.extract_strided_slice %4 {offsets = [0, 1, 0], sizes = [1, 16, 64], strides = [1, 1, 1]} : vector<1x18x64xf32> to vector<1x16x64xf32>
    %7 = vector.extract_strided_slice %4 {offsets = [0, 2, 0], sizes = [1, 16, 64], strides = [1, 1, 1]} : vector<1x18x64xf32> to vector<1x16x64xf32>
    %8 = tpu.concatenate %5, %6, %7 in 2 : vector<1x16x64xf32>, vector<1x16x64xf32>, vector<1x16x64xf32> -> vector<1x16x192xf32>
    %9 = vector.shape_cast %8 : vector<1x16x192xf32> to vector<16x192xf32>
    %c0_2 = arith.constant 0 : index
    %c0_3 = arith.constant 0 : index
    %c0_4 = arith.constant 0 : index
    %10 = vector.load %arg2[%c0_2, %c0_3, %c0_4] : memref<4x192x64xf32, #tpu.memory_space<vmem>>, vector<1x192x64xf32>
    %11 = vector.shape_cast %10 : vector<1x192x64xf32> to vector<192x64xf32>
    %cst_5 = arith.constant dense<0.000000e+00> : vector<16x64xf32>
    %12 = tpu.matmul %9, %11, %cst_5 {dimension_numbers = #tpu.dot_dimension_numbers<[1], [0], [0], [1], [0, 0, 1, 1], [], []>, precision = #tpu.contract_precision<fp32>} : vector<16x192xf32>, vector<192x64xf32>, vector<16x64xf32> -> vector<16x64xf32>
    %13 = vector.shape_cast %1 : vector<1x16x64xf32> to vector<16x64xf32>
    %14 = arith.addf %13, %12 : vector<16x64xf32>
    %c0_6 = arith.constant 0 : index
    %c0_7 = arith.constant 0 : index
    %c0_8 = arith.constant 0 : index
    %15 = vector.load %arg3[%c0_6, %c0_7, %c0_8] : memref<4x1x64xf32, #tpu.memory_space<vmem>>, vector<1x1x64xf32>
    %16 = vector.shape_cast %15 : vector<1x1x64xf32> to vector<1x64xf32>
    %17 = vector.broadcast %16 : vector<1x64xf32> to vector<16x64xf32>
    %18 = arith.addf %14, %17 : vector<16x64xf32>
    %19 = vector.shape_cast %18 : vector<16x64xf32> to vector<1x16x64xf32>
    %20 = tpu.concatenate %3, %19, %3 in 1 : vector<1x1x64xf32>, vector<1x16x64xf32>, vector<1x1x64xf32> -> vector<1x18x64xf32>
    %21 = vector.extract_strided_slice %20 {offsets = [0, 0, 0], sizes = [1, 16, 64], strides = [1, 1, 1]} : vector<1x18x64xf32> to vector<1x16x64xf32>
    %22 = vector.extract_strided_slice %20 {offsets = [0, 1, 0], sizes = [1, 16, 64], strides = [1, 1, 1]} : vector<1x18x64xf32> to vector<1x16x64xf32>
    %23 = vector.extract_strided_slice %20 {offsets = [0, 2, 0], sizes = [1, 16, 64], strides = [1, 1, 1]} : vector<1x18x64xf32> to vector<1x16x64xf32>
    %24 = tpu.concatenate %21, %22, %23 in 2 : vector<1x16x64xf32>, vector<1x16x64xf32>, vector<1x16x64xf32> -> vector<1x16x192xf32>
    %25 = vector.shape_cast %24 : vector<1x16x192xf32> to vector<16x192xf32>
    %c1 = arith.constant 1 : index
    %c0_9 = arith.constant 0 : index
    %c0_10 = arith.constant 0 : index
    %26 = vector.load %arg2[%c1, %c0_9, %c0_10] : memref<4x192x64xf32, #tpu.memory_space<vmem>>, vector<1x192x64xf32>
    %27 = vector.shape_cast %26 : vector<1x192x64xf32> to vector<192x64xf32>
    %cst_11 = arith.constant dense<0.000000e+00> : vector<16x64xf32>
    %28 = tpu.matmul %25, %27, %cst_11 {dimension_numbers = #tpu.dot_dimension_numbers<[1], [0], [0], [1], [0, 0, 1, 1], [], []>, precision = #tpu.contract_precision<fp32>} : vector<16x192xf32>, vector<192x64xf32>, vector<16x64xf32> -> vector<16x64xf32>
    %29 = vector.shape_cast %2 : vector<1x16x64xf32> to vector<16x64xf32>
    %30 = arith.addf %29, %28 : vector<16x64xf32>
    %c1_12 = arith.constant 1 : index
    %c0_13 = arith.constant 0 : index
    %c0_14 = arith.constant 0 : index
    %31 = vector.load %arg3[%c1_12, %c0_13, %c0_14] : memref<4x1x64xf32, #tpu.memory_space<vmem>>, vector<1x1x64xf32>
    %32 = vector.shape_cast %31 : vector<1x1x64xf32> to vector<1x64xf32>
    %33 = vector.broadcast %32 : vector<1x64xf32> to vector<16x64xf32>
    %34 = arith.addf %30, %33 : vector<16x64xf32>
    %35 = vector.shape_cast %34 : vector<16x64xf32> to vector<1x16x64xf32>
    %36 = tpu.concatenate %3, %35, %3 in 1 : vector<1x1x64xf32>, vector<1x16x64xf32>, vector<1x1x64xf32> -> vector<1x18x64xf32>
    %37 = vector.extract_strided_slice %36 {offsets = [0, 0, 0], sizes = [1, 16, 64], strides = [1, 1, 1]} : vector<1x18x64xf32> to vector<1x16x64xf32>
    %38 = vector.extract_strided_slice %36 {offsets = [0, 1, 0], sizes = [1, 16, 64], strides = [1, 1, 1]} : vector<1x18x64xf32> to vector<1x16x64xf32>
    %39 = vector.extract_strided_slice %36 {offsets = [0, 2, 0], sizes = [1, 16, 64], strides = [1, 1, 1]} : vector<1x18x64xf32> to vector<1x16x64xf32>
    %40 = tpu.concatenate %37, %38, %39 in 2 : vector<1x16x64xf32>, vector<1x16x64xf32>, vector<1x16x64xf32> -> vector<1x16x192xf32>
    %41 = vector.shape_cast %40 : vector<1x16x192xf32> to vector<16x192xf32>
    %c2 = arith.constant 2 : index
    %c0_15 = arith.constant 0 : index
    %c0_16 = arith.constant 0 : index
    %42 = vector.load %arg2[%c2, %c0_15, %c0_16] : memref<4x192x64xf32, #tpu.memory_space<vmem>>, vector<1x192x64xf32>
    %43 = vector.shape_cast %42 : vector<1x192x64xf32> to vector<192x64xf32>
    %cst_17 = arith.constant dense<0.000000e+00> : vector<16x64xf32>
    %44 = tpu.matmul %41, %43, %cst_17 {dimension_numbers = #tpu.dot_dimension_numbers<[1], [0], [0], [1], [0, 0, 1, 1], [], []>, precision = #tpu.contract_precision<fp32>} : vector<16x192xf32>, vector<192x64xf32>, vector<16x64xf32> -> vector<16x64xf32>
    %45 = vector.shape_cast %19 : vector<1x16x64xf32> to vector<16x64xf32>
    %46 = arith.addf %45, %44 : vector<16x64xf32>
    %c2_18 = arith.constant 2 : index
    %c0_19 = arith.constant 0 : index
    %c0_20 = arith.constant 0 : index
    %47 = vector.load %arg3[%c2_18, %c0_19, %c0_20] : memref<4x1x64xf32, #tpu.memory_space<vmem>>, vector<1x1x64xf32>
    %48 = vector.shape_cast %47 : vector<1x1x64xf32> to vector<1x64xf32>
    %49 = vector.broadcast %48 : vector<1x64xf32> to vector<16x64xf32>
    %50 = arith.addf %46, %49 : vector<16x64xf32>
    %51 = vector.shape_cast %50 : vector<16x64xf32> to vector<1x16x64xf32>
    %52 = tpu.concatenate %3, %51, %3 in 1 : vector<1x1x64xf32>, vector<1x16x64xf32>, vector<1x1x64xf32> -> vector<1x18x64xf32>
    %53 = vector.extract_strided_slice %52 {offsets = [0, 0, 0], sizes = [1, 16, 64], strides = [1, 1, 1]} : vector<1x18x64xf32> to vector<1x16x64xf32>
    %54 = vector.extract_strided_slice %52 {offsets = [0, 1, 0], sizes = [1, 16, 64], strides = [1, 1, 1]} : vector<1x18x64xf32> to vector<1x16x64xf32>
    %55 = vector.extract_strided_slice %52 {offsets = [0, 2, 0], sizes = [1, 16, 64], strides = [1, 1, 1]} : vector<1x18x64xf32> to vector<1x16x64xf32>
    %56 = tpu.concatenate %53, %54, %55 in 2 : vector<1x16x64xf32>, vector<1x16x64xf32>, vector<1x16x64xf32> -> vector<1x16x192xf32>
    %57 = vector.shape_cast %56 : vector<1x16x192xf32> to vector<16x192xf32>
    %c3 = arith.constant 3 : index
    %c0_21 = arith.constant 0 : index
    %c0_22 = arith.constant 0 : index
    %58 = vector.load %arg2[%c3, %c0_21, %c0_22] : memref<4x192x64xf32, #tpu.memory_space<vmem>>, vector<1x192x64xf32>
    %59 = vector.shape_cast %58 : vector<1x192x64xf32> to vector<192x64xf32>
    %cst_23 = arith.constant dense<0.000000e+00> : vector<16x64xf32>
    %60 = tpu.matmul %57, %59, %cst_23 {dimension_numbers = #tpu.dot_dimension_numbers<[1], [0], [0], [1], [0, 0, 1, 1], [], []>, precision = #tpu.contract_precision<fp32>} : vector<16x192xf32>, vector<192x64xf32>, vector<16x64xf32> -> vector<16x64xf32>
    %61 = vector.shape_cast %35 : vector<1x16x64xf32> to vector<16x64xf32>
    %62 = arith.addf %61, %60 : vector<16x64xf32>
    %c3_24 = arith.constant 3 : index
    %c0_25 = arith.constant 0 : index
    %c0_26 = arith.constant 0 : index
    %63 = vector.load %arg3[%c3_24, %c0_25, %c0_26] : memref<4x1x64xf32, #tpu.memory_space<vmem>>, vector<1x1x64xf32>
    %64 = vector.shape_cast %63 : vector<1x1x64xf32> to vector<1x64xf32>
    %65 = vector.broadcast %64 : vector<1x64xf32> to vector<16x64xf32>
    %66 = arith.addf %62, %65 : vector<16x64xf32>
    %67 = vector.shape_cast %66 : vector<16x64xf32> to vector<1x16x64xf32>
    %c0_27 = arith.constant 0 : index
    %c0_28 = arith.constant 0 : index
    %c0_29 = arith.constant 0 : index
    %68 = vector.load %arg4[%c0_27, %c0_28, %c0_29] : memref<1x16x128xf32, #tpu.memory_space<vmem>>, vector<1x16x64xf32>
    tpu.vector_store %arg4[%c0_27, %c0_28, %c0_29], %51 {strides = array<i32>} : memref<1x16x128xf32, #tpu.memory_space<vmem>>, vector<1x16x64xf32>,
    %c0_30 = arith.constant 0 : index
    %c0_31 = arith.constant 0 : index
    %c64 = arith.constant 64 : index
    %69 = vector.load %arg4[%c0_30, %c0_31, %c64] : memref<1x16x128xf32, #tpu.memory_space<vmem>>, vector<1x16x64xf32>
    tpu.vector_store %arg4[%c0_30, %c0_31, %c64], %67 {strides = array<i32>} : memref<1x16x128xf32, #tpu.memory_space<vmem>>, vector<1x16x64xf32>,
    return
  }
  func.func @transform_0(%arg0: i32) -> (i32, i32, i32) {
    %c0_i32 = arith.constant 0 : i32
    %c0_i32_0 = arith.constant 0 : i32
    %c0_i32_1 = arith.constant 0 : i32
    return %arg0, %c0_i32, %c0_i32_0 : i32, i32, i32
  }
  func.func @transform_1(%arg0: i32) -> (i32, i32, i32) {
    %c0_i32 = arith.constant 0 : i32
    %c0_i32_0 = arith.constant 0 : i32
    %c0_i32_1 = arith.constant 0 : i32
    %c0_i32_2 = arith.constant 0 : i32
    return %c0_i32, %c0_i32_0, %c0_i32_1 : i32, i32, i32
  }
  func.func @transform_2(%arg0: i32) -> (i32, i32, i32) {
    %c0_i32 = arith.constant 0 : i32
    %c0_i32_0 = arith.constant 0 : i32
    %c0_i32_1 = arith.constant 0 : i32
    %c0_i32_2 = arith.constant 0 : i32
    return %c0_i32, %c0_i32_0, %c0_i32_1 : i32, i32, i32
  }
  func.func @transform_3(%arg0: i32) -> (i32, i32, i32) {
    %c0_i32 = arith.constant 0 : i32
    %c0_i32_0 = arith.constant 0 : i32
    %c0_i32_1 = arith.constant 0 : i32
    return %arg0, %c0_i32, %c0_i32_0 : i32, i32, i32
  }
}

</mosaic_0001>

<llo_original>
// kernel: reversible_sequential_forward.1
$region0: #{reversible_sequential_forward.1}
  #allocation0 [shape = 'u32[]', space=smem, size = 0x4, offset = 0x4, fixed_abs, tag = 'smem constant byte address 0x4 - core index']
  #allocation1 [shape = 'u32[144,128]{1,0:T(1,128)}', space=vmem, size = 0x12000, scoped, tag = 'internal scratch']
  %s0 = inlined_call_operand.vmem [shape: f32[2,16,128], index: 0, kind: input, shape index: {}, may-alias: {0,3}]
  %s1 = inlined_call_operand.vmem [shape: f32[4,192,64], index: 1, kind: input, shape index: {}]
  %s2 = inlined_call_operand.vmem [shape: f32[4,1,64], index: 2, kind: input, shape index: {}]
  %s3 = inlined_call_operand.vmem [shape: f32[2,16,128], index: 3, kind: output, shape index: {}, may-alias: {0,3}]
  %s4 = sld [smem:[#allocation0]]
  $region45: #{reversible_sequential_forward.1} parent=0
    _
  %s6 = ssub.s32 1, %s4
  %s7 = scalar_select 0, %s6, %s4
  loop: start=0, step=1, limit=4
  $region2: #{reversible_sequential_forward.1} parent=0 // loop_pre_header
    _
  $region3: #{reversible_sequential_forward.1} parent=0 // loop_header
    %s9 = sphi 0, %s13
    %p10 = scmp.ge.s32.totalorder %s9, 4
    %s19 = sphi 0, %s21
    %s22 = sphi 0, %s19
    %s23 = sphi 0, %s22
    %s39 = sphi 0, %s23
    %s43 = sphi 0, %s43
    %s45 = sphi 0, %s43
    %s46 = sphi 0, %s45
    %s60 = sphi 0, %s46
    %s64 = sphi 0, %s64
    %s66 = sphi 0, %s64
    %s67 = sphi 0, %s66
    %s81 = sphi 0, %s67
    %s87 = sphi 0, %s89
    %s90 = sphi 0, %s87
    %s91 = sphi 0, %s90
    %s107 = sphi 0, %s91
  $region4: #{reversible_sequential_forward.1} parent=0 // loop_header_branch
    %12 = sbr.rel (%p10) target = $region8
  $region5: #{reversible_sequential_forward.1} parent=0 // loop_body
    %s14 = ssub.s32 %s9, 1
    %s15 = ssub.s32 %s9, 2
    %s16 = sadd.s32 %s9, 1
    %s17 = ssub.s32 %s9, %s16
    %p18 = scmp.eq.s32.totalorder %s17, 0
    %s20 = sadd.s32 %s19, 1
    %s21 = scalar_select %p18, %s19, %s20
    %p24 = pneg %p18
    %p25 = scmp.eq.s32.totalorder %s9, 1
    %p26 = por %p24, %p25
    %p27 = scmp.ne.s32.totalorder %s19, %s22
    %p28 = scmp.eq.s32.totalorder %s9, 0
    %p29 = por %p27, %p28
    %p30 = scmp.ne.s32.totalorder %s19, %s22
    %p31 = scmp.eq.s32.totalorder %s14, 1
    %p32 = por %p30, %p31
    %p33 = scmp.ne.s32.totalorder %s22, %s23
    %p34 = scmp.eq.s32.totalorder %s14, 0
    %p35 = por %p33, %p34
    %p36 = scmp.ne.s32.totalorder %s22, %s23
    %p37 = scmp.eq.s32.totalorder %s15, 1
    %p38 = por %p36, %p37
    %p40 = scmp.ne.s32.totalorder %s23, %s39
    %p41 = scmp.eq.s32.totalorder %s15, 0
    %p42 = por %p40, %p41
    %s44 = sadd.s32 %s43, 1
    %p47 = scmp.eq.s32.totalorder %s9, 1
    %p48 = scmp.ne.s32.totalorder %s43, %s45
    %p49 = scmp.eq.s32.totalorder %s9, 0
    %p50 = por %p48, %p49
    %p51 = scmp.ne.s32.totalorder %s43, %s45
    %p52 = scmp.eq.s32.totalorder %s14, 1
    %p53 = por %p51, %p52
    %p54 = scmp.ne.s32.totalorder %s45, %s46
    %p55 = scmp.eq.s32.totalorder %s14, 0
    %p56 = por %p54, %p55
    %p57 = scmp.ne.s32.totalorder %s45, %s46
    %p58 = scmp.eq.s32.totalorder %s15, 1
    %p59 = por %p57, %p58
    %p61 = scmp.ne.s32.totalorder %s46, %s60
    %p62 = scmp.eq.s32.totalorder %s15, 0
    %p63 = por %p61, %p62
    %s65 = sadd.s32 %s64, 1
    %p68 = scmp.eq.s32.totalorder %s9, 1
    %p69 = scmp.ne.s32.totalorder %s64, %s66
    %p70 = scmp.eq.s32.totalorder %s9, 0
    %p71 = por %p69, %p70
    %p72 = scmp.ne.s32.totalorder %s64, %s66
    %p73 = scmp.eq.s32.totalorder %s14, 1
    %p74 = por %p72, %p73
    %p75 = scmp.ne.s32.totalorder %s66, %s67
    %p76 = scmp.eq.s32.totalorder %s14, 0
    %p77 = por %p75, %p76
    %p78 = scmp.ne.s32.totalorder %s66, %s67
    %p79 = scmp.eq.s32.totalorder %s15, 1
    %p80 = por %p78, %p79
    %p82 = scmp.ne.s32.totalorder %s67, %s81
    %p83 = scmp.eq.s32.totalorder %s15, 0
    %p84 = por %p82, %p83
    %s85 = ssub.s32 %s9, %s16
    %p86 = scmp.eq.s32.totalorder %s85, 0
    %s88 = sadd.s32 %s87, 1
    %s89 = scalar_select %p86, %s87, %s88
    %p92 = pneg %p86
    %p93 = scmp.eq.s32.totalorder %s9, 1
    %p94 = por %p92, %p93
    %p95 = scmp.ne.s32.totalorder %s87, %s90
    %p96 = scmp.eq.s32.totalorder %s9, 0
    %p97 = por %p95, %p96
    %p98 = scmp.ne.s32.totalorder %s87, %s90
    %p99 = scmp.eq.s32.totalorder %s14, 1
    %p100 = por %p98, %p99
    %p101 = scmp.ne.s32.totalorder %s90, %s91
    %p102 = scmp.eq.s32.totalorder %s14, 0
    %p103 = por %p101, %p102
    %p104 = scmp.ne.s32.totalorder %s90, %s91
    %p105 = scmp.eq.s32.totalorder %s15, 1
    %p106 = por %p104, %p105
    %p108 = scmp.ne.s32.totalorder %s91, %s107
    %p109 = scmp.eq.s32.totalorder %s15, 0
    %p110 = por %p108, %p109
    %p111 = scmp.le.s32.totalorder 1, %s9
    %p112 = scmp.lt.s32.totalorder %s9, 3
    %p113 = pnand %p111, %p112
    %p114 = pneg %p113
    // Predicated region
    $region9: #{reversible_sequential_forward.1} parent=5 // pred_check
      _
    $region10: #{reversible_sequential_forward.1} parent=5 // pred_check_branch
      %116 = sbr.rel (%p113) target = $region12
    $region11: #{reversible_sequential_forward.1} parent=5 // pred_region
      %s117 = ssub.s32 %s9, 1
      // Predicated region
      $region13: #{reversible_sequential_forward.1} parent=11 // pred_check
        %p118 = pneg %p56
      $region14: #{reversible_sequential_forward.1} parent=11 // pred_check_branch
        %120 = sbr.rel (%p118) target = $region16
      $region15: #{reversible_sequential_forward.1} parent=11 // pred_region
        _
      $region16: #{reversible_sequential_forward.1} parent=11 // pred_fallthru
        _
      // Predicated region
      $region17: #{reversible_sequential_forward.1} parent=11 // pred_check
        %p121 = pneg %p77
      $region18: #{reversible_sequential_forward.1} parent=11 // pred_check_branch
        %123 = sbr.rel (%p121) target = $region20
      $region19: #{reversible_sequential_forward.1} parent=11 // pred_region
        _
      $region20: #{reversible_sequential_forward.1} parent=11 // pred_fallthru
        _
    $region12: #{reversible_sequential_forward.1} parent=5 // pred_fallthru
      _
    %p124 = scmp.lt.s32.totalorder %s9, 2
    // Predicated region
    $region21: #{reversible_sequential_forward.1} parent=5 // pred_check
      %p125 = pneg %p124
    $region22: #{reversible_sequential_forward.1} parent=5 // pred_check_branch
      %127 = sbr.rel (%p125) target = $region24
    $region23: #{reversible_sequential_forward.1} parent=5 // pred_region
      // Predicated region
      $region25: #{reversible_sequential_forward.1} parent=23 // pred_check
        %p128 = pneg %p29
      $region26: #{reversible_sequential_forward.1} parent=23 // pred_check_branch
        %130 = sbr.rel (%p128) target = $region28
      $region27: #{reversible_sequential_forward.1} parent=23 // pred_region
        %p131 = scmp.lt.s32.totalorder %s9, 1
        %s132 = scalar_select %p131, %s9, 1
        %s133 = smul.addr %s132, 2
        %s134 = smul.addr %s133, 8
        %s135 = scalar_lea.vmem %s0, %s134
      $region28: #{reversible_sequential_forward.1} parent=23 // pred_fallthru
        _
    $region24: #{reversible_sequential_forward.1} parent=5 // pred_fallthru
      _
    %p136 = scmp.le.s32.totalorder 1, %s9
    %p137 = scmp.lt.s32.totalorder %s9, 3
    %p138 = pnand %p136, %p137
    %p139 = pneg %p138
    // Predicated region
    $region29: #{reversible_sequential_forward.1} parent=5 // pred_check
      _
    $region30: #{reversible_sequential_forward.1} parent=5 // pred_check_branch
      %141 = sbr.rel (%p138) target = $region32
    $region31: #{reversible_sequential_forward.1} parent=5 // pred_region
      %s142 = ssub.s32 %s9, 1
      %p143 = scmp.lt.s32.totalorder %s14, 1
      %s144 = scalar_select %p143, %s14, 1
      %s145 = smul.addr %s144, 2
      %s146 = smul.addr %s145, 8
      %s147 = scalar_lea.vmem %s0, %s146
      %p148 = pneg %p35
      %p149 = pneg %p32
      %p150 = pneg %p56
      %p151 = pneg %p53
      %p152 = pneg %p77
      %p153 = pneg %p74
      %p154 = pneg %p103
      %p155 = pneg %p100
      %p156 = scmp.lt.s32.totalorder %s14, 1
      %s157 = scalar_select %p156, %s14, 1
      %s158 = smul.addr %s157, 2
      %s159 = smul.addr %s158, 8
      %s160 = scalar_lea.vmem %s3, %s159
      %p161 = scmp.lt.s32.totalorder %s14, 1
      %s162 = scalar_select %p161, %s14, 1
      %s163 = smul.addr %s162, 2
      %s164 = smul.addr %s163, 8
      %s165 = scalar_lea.vmem %s0, %s164
      %p166 = scmp.lt.s32.totalorder %s14, 1
      %s167 = scalar_select %p166, %s14, 1
      %s168 = smul.addr %s167, 2
      %s169 = smul.addr %s168, 8
      %s170 = scalar_lea.vmem %s3, %s169
      %v171 = vld [vmem:[%s165] sm:$0xff]
      %v172 = vld [vmem:[%s165 + $0x8] sm:$0xff]
      %vm175 = vcmask 1040384
      %v176 = vrot.slane %v171, 7
      %v177 = vrot.slane %v172, 7
      %v178 = vsel %vm175, %v176, %v177
      %179 = vrot.lane.b32.xlu0 %v176, 64
      %v180 = vpop.permute.xlu0 %179
      %181 = vrot.lane.b32.xlu0 %v178, 64
      %v182 = vpop.permute.xlu0 %181
      %183 = vrot.lane.b32.xlu0 %v177, 64
      %v184 = vpop.permute.xlu0 %183
      %v188 = vsel %vm175, 0.0, %v180
      %v189 = vsel %vm175, %v184, 0.0
      %vm192 = vcmask 1046528
      %v193 = vrot.slane %v188, 1
      %v194 = vrot.slane %v182, 1
      %v195 = vsel %vm192, %v193, %v194
      %v196 = vrot.slane %v189, 1
      %v197 = vsel %vm192, %v194, %v196
      %198 = vrot.lane.b32.xlu0 %v195, 64
      %v199 = vpop.permute.xlu0 %198
      %200 = vrot.lane.b32.xlu0 %v197, 64
      %v201 = vpop.permute.xlu0 %200
      %vm204 = vcmask 1045504
      %v205 = vrot.slane %v188, 2
      %v206 = vrot.slane %v182, 2
      %v207 = vsel %vm204, %v205, %v206
      %v208 = vrot.slane %v189, 2
      %v209 = vsel %vm204, %v206, %v208
      %vm210 = vcmask 523264
      %v211 = vsel %vm210, %v188, %v199
      %v212 = vsel %vm210, %v182, %v201
      %v213 = vld [vmem:[%s1] sm:$0xff]
      %v214 = vld [vmem:[%s1 + $0x8] sm:$0xff]
      %v215 = vld [vmem:[%s1 + $0x10] sm:$0xff]
      %v216 = vld [vmem:[%s1 + $0x18] sm:$0xff]
      %v217 = vld [vmem:[%s1 + $0x20] sm:$0xff]
      %v218 = vld [vmem:[%s1 + $0x28] sm:$0xff]
      %v219 = vld [vmem:[%s1 + $0x30] sm:$0xff]
      %v220 = vld [vmem:[%s1 + $0x38] sm:$0xff]
      %v221 = vld [vmem:[%s1 + $0x40] sm:$0xff]
      %v222 = vld [vmem:[%s1 + $0x48] sm:$0xff]
      %v223 = vld [vmem:[%s1 + $0x50] sm:$0xff]
      %v224 = vld [vmem:[%s1 + $0x58] sm:$0xff]
      %v225 = vld [vmem:[%s1 + $0x60] sm:$0xff]
      %v226 = vld [vmem:[%s1 + $0x68] sm:$0xff]
      %v227 = vld [vmem:[%s1 + $0x70] sm:$0xff]
      %v228 = vld [vmem:[%s1 + $0x78] sm:$0xff]
      %v229 = vld [vmem:[%s1 + $0x80] sm:$0xff]
      %v230 = vld [vmem:[%s1 + $0x88] sm:$0xff]
      %v231 = vld [vmem:[%s1 + $0x90] sm:$0xff]
      %v232 = vld [vmem:[%s1 + $0x98] sm:$0xff]
      %v233 = vld [vmem:[%s1 + $0xa0] sm:$0xff]
      %v234 = vld [vmem:[%s1 + $0xa8] sm:$0xff]
      %v235 = vld [vmem:[%s1 + $0xb0] sm:$0xff]
      %v236 = vld [vmem:[%s1 + $0xb8] sm:$0xff]
      %v237 = vsel %vm210, %v207, 0
      %v239 = vsel %vm210, %v209, 0
      %241 = vmatprep.subr.mxu0 0.0
      %v242 = vand.u32 %v228, 4294901760
      %243 = vmatpush1.msra.mxu0 %v242
      %244 = vmatprep.subr.mxu0 0.0
      %v245 = vand.u32 %v227, 4294901760
      %246 = vmatpush1.msra.mxu0 %v245
      %247 = vmatprep.subr.mxu0 0.0
      %v248 = vand.u32 %v226, 4294901760
      %249 = vmatpush1.msra.mxu0 %v248
      %250 = vmatprep.subr.mxu0 0.0
      %v251 = vand.u32 %v225, 4294901760
      %252 = vmatpush1.msra.mxu0 %v251
      %253 = vmatprep.subr.mxu0 0.0
      %v254 = vand.u32 %v224, 4294901760
      %255 = vmatpush1.msra.mxu0 %v254
      %256 = vmatprep.subr.mxu0 0.0
      %v257 = vand.u32 %v223, 4294901760
      %258 = vmatpush1.msra.mxu0 %v257
      %259 = vmatprep.subr.mxu0 0.0
      %v260 = vand.u32 %v222, 4294901760
      %261 = vmatpush1.msra.mxu0 %v260
      %262 = vmatprep.subr.mxu0 0.0
      %v263 = vand.u32 %v221, 4294901760
      %264 = vmatpush1.msra.mxu0 %v263
      %265 = vmatprep.subr.mxu0 0.0
      %v266 = vand.u32 %v220, 4294901760
      %267 = vmatpush1.msra.mxu0 %v266
      %268 = vmatprep.subr.mxu0 0.0
      %v269 = vand.u32 %v219, 4294901760
      %270 = vmatpush1.msra.mxu0 %v269
      %271 = vmatprep.subr.mxu0 0.0
      %v272 = vand.u32 %v218, 4294901760
      %273 = vmatpush1.msra.mxu0 %v272
      %274 = vmatprep.subr.mxu0 0.0
      %v275 = vand.u32 %v217, 4294901760
      %276 = vmatpush1.msra.mxu0 %v275
      %277 = vmatprep.subr.mxu0 0.0
      %v278 = vand.u32 %v216, 4294901760
      %279 = vmatpush1.msra.mxu0 %v278
      %280 = vmatprep.subr.mxu0 0.0
      %v281 = vand.u32 %v215, 4294901760
      %282 = vmatpush1.msra.mxu0 %v281
      %283 = vmatprep.subr.mxu0 0.0
      %v284 = vand.u32 %v214, 4294901760
      %285 = vmatpush1.msra.mxu0 %v284
      %286 = vmatprep.subr.mxu0 0.0
      %v287 = vand.u32 %v213, 4294901760
      %288 = vmatpush1.msra.mxu0 %v287
      %289 = vmatprep.subr.mxu0 0.0
      %290 = vmatpush2.msra.mxu0 0.0
      %291 = vmatprep.subr.mxu0 0.0
      %292 = vmatpush2.msra.mxu0 0.0
      %293 = vmatprep.subr.mxu0 0.0
      %294 = vmatpush2.msra.mxu0 0.0
      %295 = vmatprep.subr.mxu0 0.0
      %296 = vmatpush2.msra.mxu0 0.0
      %297 = vmatprep.subr.mxu0 0.0
      %298 = vmatpush2.msra.mxu0 0.0
      %299 = vmatprep.subr.mxu0 0.0
      %300 = vmatpush2.msra.mxu0 0.0
      %301 = vmatprep.subr.mxu0 0.0
      %302 = vmatpush2.msra.mxu0 0.0
      %303 = vmatprep.subr.mxu0 0.0
      %304 = vmatpush2.msra.mxu0 0.0
      %305 = vmatprep.subr.mxu0 0.0
      %v306 = vand.u32 %v236, 4294901760
      %307 = vmatpush2.msra.mxu0 %v306
      %308 = vmatprep.subr.mxu0 0.0
      %v309 = vand.u32 %v235, 4294901760
      %310 = vmatpush2.msra.mxu0 %v309
      %311 = vmatprep.subr.mxu0 0.0
      %v312 = vand.u32 %v234, 4294901760
      %313 = vmatpush2.msra.mxu0 %v312
      %314 = vmatprep.subr.mxu0 0.0
      %v315 = vand.u32 %v233, 4294901760
      %316 = vmatpush2.msra.mxu0 %v315
      %317 = vmatprep.subr.mxu0 0.0
      %v318 = vand.u32 %v232, 4294901760
      %319 = vmatpush2.msra.mxu0 %v318
      %320 = vmatprep.subr.mxu0 0.0
      %v321 = vand.u32 %v231, 4294901760
      %322 = vmatpush2.msra.mxu0 %v321
      %323 = vmatprep.subr.mxu0 0.0
      %v324 = vand.u32 %v230, 4294901760
      %325 = vmatpush2.msra.mxu0 %v324
      %326 = vmatprep.subr.mxu0 0.0
      %v327 = vand.u32 %v229, 4294901760
      %328 = vmatpush2.msra.mxu0 %v327
      %v329 = vand.u32 %v237, 4294901760
      %v330 = vsub.f32 %v237, %v329
      %v331 = vand.u32 %v330, 4294901760
      %v332 = vsub.f32 %v330, %v331
      %v333 = vand.u32 %v332, 4294901760
      %334 = vmatprep.mubr.f32.mxu0 %v333
      %v335 = vand.u32 %v211, 4294901760
      %v336 = vsub.f32 %v211, %v335
      %v337 = vand.u32 %v336, 4294901760
      %v338 = vsub.f32 %v336, %v337
      %v339 = vand.u32 %v338, 4294901760
      %340 = vmatmul.mubr.f32.gmra.mxu0 %v339
      %v341 = vpop.f32.mrf.mxu0
      %v342 = vadd.f32 0.0, %v341
      %v343 = vpop.f32.mrf.mxu0
      %v344 = vand.u32 %v239, 4294901760
      %v345 = vsub.f32 %v239, %v344
      %v346 = vand.u32 %v345, 4294901760
      %v347 = vsub.f32 %v345, %v346
      %v348 = vand.u32 %v347, 4294901760
      %349 = vmatprep.mubr.f32.mxu0 %v348
      %v350 = vand.u32 %v212, 4294901760
      %v351 = vsub.f32 %v212, %v350
      %v352 = vand.u32 %v351, 4294901760
      %v353 = vsub.f32 %v351, %v352
      %v354 = vand.u32 %v353, 4294901760
      %355 = vmatmul.mubr.f32.gmra.mxu0 %v354
      %v356 = vpop.f32.mrf.mxu0
      %v357 = vadd.f32 0.0, %v356
      %v358 = vpop.f32.mrf.mxu0
      %359 = vdwg.mxu0
      %360 = vmatprep.subr.mxu0 0.0
      %v361 = vand.u32 %v228, 4294901760
      %v362 = vsub.f32 %v228, %v361
      %v363 = vand.u32 %v362, 4294901760
      %v364 = vsub.f32 %v362, %v363
      %v365 = vand.u32 %v364, 4294901760
      %366 = vmatpush1.msra.mxu0 %v365
      %367 = vmatprep.subr.mxu0 0.0
      %v368 = vand.u32 %v227, 4294901760
      %v369 = vsub.f32 %v227, %v368
      %v370 = vand.u32 %v369, 4294901760
      %v371 = vsub.f32 %v369, %v370
      %v372 = vand.u32 %v371, 4294901760
      %373 = vmatpush1.msra.mxu0 %v372
      %374 = vmatprep.subr.mxu0 0.0
      %v375 = vand.u32 %v226, 4294901760
      %v376 = vsub.f32 %v226, %v375
      %v377 = vand.u32 %v376, 4294901760
      %v378 = vsub.f32 %v376, %v377
      %v379 = vand.u32 %v378, 4294901760
      %380 = vmatpush1.msra.mxu0 %v379
      %381 = vmatprep.subr.mxu0 0.0
      %v382 = vand.u32 %v225, 4294901760
      %v383 = vsub.f32 %v225, %v382
      %v384 = vand.u32 %v383, 4294901760
      %v385 = vsub.f32 %v383, %v384
      %v386 = vand.u32 %v385, 4294901760
      %387 = vmatpush1.msra.mxu0 %v386
      %388 = vmatprep.subr.mxu0 0.0
      %v389 = vand.u32 %v224, 4294901760
      %v390 = vsub.f32 %v224, %v389
      %v391 = vand.u32 %v390, 4294901760
      %v392 = vsub.f32 %v390, %v391
      %v393 = vand.u32 %v392, 4294901760
      %394 = vmatpush1.msra.mxu0 %v393
      %395 = vmatprep.subr.mxu0 0.0
      %v396 = vand.u32 %v223, 4294901760
      %v397 = vsub.f32 %v223, %v396
      %v398 = vand.u32 %v397, 4294901760
      %v399 = vsub.f32 %v397, %v398
      %v400 = vand.u32 %v399, 4294901760
      %401 = vmatpush1.msra.mxu0 %v400
      %402 = vmatprep.subr.mxu0 0.0
      %v403 = vand.u32 %v222, 4294901760
      %v404 = vsub.f32 %v222, %v403
      %v405 = vand.u32 %v404, 4294901760
      %v406 = vsub.f32 %v404, %v405
      %v407 = vand.u32 %v406, 4294901760
      %408 = vmatpush1.msra.mxu0 %v407
      %409 = vmatprep.subr.mxu0 0.0
      %v410 = vand.u32 %v221, 4294901760
      %v411 = vsub.f32 %v221, %v410
      %v412 = vand.u32 %v411, 4294901760
      %v413 = vsub.f32 %v411, %v412
      %v414 = vand.u32 %v413, 4294901760
      %415 = vmatpush1.msra.mxu0 %v414
      %416 = vmatprep.subr.mxu0 0.0
      %v417 = vand.u32 %v220, 4294901760
      %v418 = vsub.f32 %v220, %v417
      %v419 = vand.u32 %v418, 4294901760
      %v420 = vsub.f32 %v418, %v419
      %v421 = vand.u32 %v420, 4294901760
      %422 = vmatpush1.msra.mxu0 %v421
      %423 = vmatprep.subr.mxu0 0.0
      %v424 = vand.u32 %v219, 4294901760
      %v425 = vsub.f32 %v219, %v424
      %v426 = vand.u32 %v425, 4294901760
      %v427 = vsub.f32 %v425, %v426
      %v428 = vand.u32 %v427, 4294901760
      %429 = vmatpush1.msra.mxu0 %v428
      %430 = vmatprep.subr.mxu0 0.0
      %v431 = vand.u32 %v218, 4294901760
      %v432 = vsub.f32 %v218, %v431
      %v433 = vand.u32 %v432, 4294901760
      %v434 = vsub.f32 %v432, %v433
      %v435 = vand.u32 %v434, 4294901760
      %436 = vmatpush1.msra.mxu0 %v435
      %437 = vmatprep.subr.mxu0 0.0
      %v438 = vand.u32 %v217, 4294901760
      %v439 = vsub.f32 %v217, %v438
      %v440 = vand.u32 %v439, 4294901760
      %v441 = vsub.f32 %v439, %v440
      %v442 = vand.u32 %v441, 4294901760
      %443 = vmatpush1.msra.mxu0 %v442
      %444 = vmatprep.subr.mxu0 0.0
      %v445 = vand.u32 %v216, 4294901760
      %v446 = vsub.f32 %v216, %v445
      %v447 = vand.u32 %v446, 4294901760
      %v448 = vsub.f32 %v446, %v447
      %v449 = vand.u32 %v448, 4294901760
      %450 = vmatpush1.msra.mxu0 %v449
      %451 = vmatprep.subr.mxu0 0.0
      %v452 = vand.u32 %v215, 4294901760
      %v453 = vsub.f32 %v215, %v452
      %v454 = vand.u32 %v453, 4294901760
      %v455 = vsub.f32 %v453, %v454
      %v456 = vand.u32 %v455, 4294901760
      %457 = vmatpush1.msra.mxu0 %v456
      %458 = vmatprep.subr.mxu0 0.0
      %v459 = vand.u32 %v214, 4294901760
      %v460 = vsub.f32 %v214, %v459
      %v461 = vand.u32 %v460, 4294901760
      %v462 = vsub.f32 %v460, %v461
      %v463 = vand.u32 %v462, 4294901760
      %464 = vmatpush1.msra.mxu0 %v463
      %465 = vmatprep.subr.mxu0 0.0
      %v466 = vand.u32 %v213, 4294901760
      %v467 = vsub.f32 %v213, %v466
      %v468 = vand.u32 %v467, 4294901760
      %v469 = vsub.f32 %v467, %v468
      %v470 = vand.u32 %v469, 4294901760
      %471 = vmatpush1.msra.mxu0 %v470
      %472 = vmatprep.subr.mxu0 0.0
      %473 = vmatpush2.msra.mxu0 0.0
      %474 = vmatprep.subr.mxu0 0.0
      %475 = vmatpush2.msra.mxu0 0.0
      %476 = vmatprep.subr.mxu0 0.0
      %477 = vmatpush2.msra.mxu0 0.0
      %478 = vmatprep.subr.mxu0 0.0
      %479 = vmatpush2.msra.mxu0 0.0
      %480 = vmatprep.subr.mxu0 0.0
      %481 = vmatpush2.msra.mxu0 0.0
      %482 = vmatprep.subr.mxu0 0.0
      %483 = vmatpush2.msra.mxu0 0.0
      %484 = vmatprep.subr.mxu0 0.0
      %485 = vmatpush2.msra.mxu0 0.0
      %486 = vmatprep.subr.mxu0 0.0
      %487 = vmatpush2.msra.mxu0 0.0
      %488 = vmatprep.subr.mxu0 0.0
      %v489 = vand.u32 %v236, 4294901760
      %v490 = vsub.f32 %v236, %v489
      %v491 = vand.u32 %v490, 4294901760
      %v492 = vsub.f32 %v490, %v491
      %v493 = vand.u32 %v492, 4294901760
      %494 = vmatpush2.msra.mxu0 %v493
      %495 = vmatprep.subr.mxu0 0.0
      %v496 = vand.u32 %v235, 4294901760
      %v497 = vsub.f32 %v235, %v496
      %v498 = vand.u32 %v497, 4294901760
      %v499 = vsub.f32 %v497, %v498
      %v500 = vand.u32 %v499, 4294901760
      %501 = vmatpush2.msra.mxu0 %v500
      %502 = vmatprep.subr.mxu0 0.0
      %v503 = vand.u32 %v234, 4294901760
      %v504 = vsub.f32 %v234, %v503
      %v505 = vand.u32 %v504, 4294901760
      %v506 = vsub.f32 %v504, %v505
      %v507 = vand.u32 %v506, 4294901760
      %508 = vmatpush2.msra.mxu0 %v507
      %509 = vmatprep.subr.mxu0 0.0
      %v510 = vand.u32 %v233, 4294901760
      %v511 = vsub.f32 %v233, %v510
      %v512 = vand.u32 %v511, 4294901760
      %v513 = vsub.f32 %v511, %v512
      %v514 = vand.u32 %v513, 4294901760
      %515 = vmatpush2.msra.mxu0 %v514
      %516 = vmatprep.subr.mxu0 0.0
      %v517 = vand.u32 %v232, 4294901760
      %v518 = vsub.f32 %v232, %v517
      %v519 = vand.u32 %v518, 4294901760
      %v520 = vsub.f32 %v518, %v519
      %v521 = vand.u32 %v520, 4294901760
      %522 = vmatpush2.msra.mxu0 %v521
      %523 = vmatprep.subr.mxu0 0.0
      %v524 = vand.u32 %v231, 4294901760
      %v525 = vsub.f32 %v231, %v524
      %v526 = vand.u32 %v525, 4294901760
      %v527 = vsub.f32 %v525, %v526
      %v528 = vand.u32 %v527, 4294901760
      %529 = vmatpush2.msra.mxu0 %v528
      %530 = vmatprep.subr.mxu0 0.0
      %v531 = vand.u32 %v230, 4294901760
      %v532 = vsub.f32 %v230, %v531
      %v533 = vand.u32 %v532, 4294901760
      %v534 = vsub.f32 %v532, %v533
      %v535 = vand.u32 %v534, 4294901760
      %536 = vmatpush2.msra.mxu0 %v535
      %537 = vmatprep.subr.mxu0 0.0
      %v538 = vand.u32 %v229, 4294901760
      %v539 = vsub.f32 %v229, %v538
      %v540 = vand.u32 %v539, 4294901760
      %v541 = vsub.f32 %v539, %v540
      %v542 = vand.u32 %v541, 4294901760
      %543 = vmatpush2.msra.mxu0 %v542
      %v544 = vand.u32 %v237, 4294901760
      %545 = vmatprep.mubr.f32.mxu0 %v544
      %v546 = vand.u32 %v211, 4294901760
      %547 = vmatmul.mubr.f32.gmra.mxu0 %v546
      %v548 = vpop.f32.mrf.mxu0
      %v549 = vadd.f32 %v342, %v548
      %v550 = vpop.f32.mrf.mxu0
      %v551 = vand.u32 %v239, 4294901760
      %552 = vmatprep.mubr.f32.mxu0 %v551
      %v553 = vand.u32 %v212, 4294901760
      %554 = vmatmul.mubr.f32.gmra.mxu0 %v553
      %v555 = vpop.f32.mrf.mxu0
      %v556 = vadd.f32 %v357, %v555
      %v557 = vpop.f32.mrf.mxu0
      %558 = vdwg.mxu0
      %559 = vmatprep.subr.mxu0 0.0
      %v560 = vand.u32 %v228, 4294901760
      %v561 = vsub.f32 %v228, %v560
      %562 = vmatpush1.msra.mxu0 %v561
      %563 = vmatprep.subr.mxu0 0.0
      %v564 = vand.u32 %v227, 4294901760
      %v565 = vsub.f32 %v227, %v564
      %566 = vmatpush1.msra.mxu0 %v565
      %567 = vmatprep.subr.mxu0 0.0
      %v568 = vand.u32 %v226, 4294901760
      %v569 = vsub.f32 %v226, %v568
      %570 = vmatpush1.msra.mxu0 %v569
      %571 = vmatprep.subr.mxu0 0.0
      %v572 = vand.u32 %v225, 4294901760
      %v573 = vsub.f32 %v225, %v572
      %574 = vmatpush1.msra.mxu0 %v573
      %575 = vmatprep.subr.mxu0 0.0
      %v576 = vand.u32 %v224, 4294901760
      %v577 = vsub.f32 %v224, %v576
      %578 = vmatpush1.msra.mxu0 %v577
      %579 = vmatprep.subr.mxu0 0.0
      %v580 = vand.u32 %v223, 4294901760
      %v581 = vsub.f32 %v223, %v580
      %582 = vmatpush1.msra.mxu0 %v581
      %583 = vmatprep.subr.mxu0 0.0
      %v584 = vand.u32 %v222, 4294901760
      %v585 = vsub.f32 %v222, %v584
      %586 = vmatpush1.msra.mxu0 %v585
      %587 = vmatprep.subr.mxu0 0.0
      %v588 = vand.u32 %v221, 4294901760
      %v589 = vsub.f32 %v221, %v588
      %590 = vmatpush1.msra.mxu0 %v589
      %591 = vmatprep.subr.mxu0 0.0
      %v592 = vand.u32 %v220, 4294901760
      %v593 = vsub.f32 %v220, %v592
      %594 = vmatpush1.msra.mxu0 %v593
      %595 = vmatprep.subr.mxu0 0.0
      %v596 = vand.u32 %v219, 4294901760
      %v597 = vsub.f32 %v219, %v596
      %598 = vmatpush1.msra.mxu0 %v597
      %599 = vmatprep.subr.mxu0 0.0
      %v600 = vand.u32 %v218, 4294901760
      %v601 = vsub.f32 %v218, %v600
      %602 = vmatpush1.msra.mxu0 %v601
      %603 = vmatprep.subr.mxu0 0.0
      %v604 = vand.u32 %v217, 4294901760
      %v605 = vsub.f32 %v217, %v604
      %606 = vmatpush1.msra.mxu0 %v605
      %607 = vmatprep.subr.mxu0 0.0
      %v608 = vand.u32 %v216, 4294901760
      %v609 = vsub.f32 %v216, %v608
      %610 = vmatpush1.msra.mxu0 %v609
      %611 = vmatprep.subr.mxu0 0.0
      %v612 = vand.u32 %v215, 4294901760
      %v613 = vsub.f32 %v215, %v612
      %614 = vmatpush1.msra.mxu0 %v613
      %615 = vmatprep.subr.mxu0 0.0
      %v616 = vand.u32 %v214, 4294901760
      %v617 = vsub.f32 %v214, %v616
      %618 = vmatpush1.msra.mxu0 %v617
      %619 = vmatprep.subr.mxu0 0.0
      %v620 = vand.u32 %v213, 4294901760
      %v621 = vsub.f32 %v213, %v620
      %622 = vmatpush1.msra.mxu0 %v621
      %623 = vmatprep.subr.mxu0 0.0
      %624 = vmatpush2.msra.mxu0 0.0
      %625 = vmatprep.subr.mxu0 0.0
      %626 = vmatpush2.msra.mxu0 0.0
      %627 = vmatprep.subr.mxu0 0.0
      %628 = vmatpush2.msra.mxu0 0.0
      %629 = vmatprep.subr.mxu0 0.0
      %630 = vmatpush2.msra.mxu0 0.0
      %631 = vmatprep.subr.mxu0 0.0
      %632 = vmatpush2.msra.mxu0 0.0
      %633 = vmatprep.subr.mxu0 0.0
      %634 = vmatpush2.msra.mxu0 0.0
      %635 = vmatprep.subr.mxu0 0.0
      %636 = vmatpush2.msra.mxu0 0.0
      %637 = vmatprep.subr.mxu0 0.0
      %638 = vmatpush2.msra.mxu0 0.0
      %639 = vmatprep.subr.mxu0 0.0
      %v640 = vand.u32 %v236, 4294901760
      %v641 = vsub.f32 %v236, %v640
      %642 = vmatpush2.msra.mxu0 %v641
      %643 = vmatprep.subr.mxu0 0.0
      %v644 = vand.u32 %v235, 4294901760
      %v645 = vsub.f32 %v235, %v644
      %646 = vmatpush2.msra.mxu0 %v645
      %647 = vmatprep.subr.mxu0 0.0
      %v648 = vand.u32 %v234, 4294901760
      %v649 = vsub.f32 %v234, %v648
      %650 = vmatpush2.msra.mxu0 %v649
      %651 = vmatprep.subr.mxu0 0.0
      %v652 = vand.u32 %v233, 4294901760
      %v653 = vsub.f32 %v233, %v652
      %654 = vmatpush2.msra.mxu0 %v653
      %655 = vmatprep.subr.mxu0 0.0
      %v656 = vand.u32 %v232, 4294901760
      %v657 = vsub.f32 %v232, %v656
      %658 = vmatpush2.msra.mxu0 %v657
      %659 = vmatprep.subr.mxu0 0.0
      %v660 = vand.u32 %v231, 4294901760
      %v661 = vsub.f32 %v231, %v660
      %662 = vmatpush2.msra.mxu0 %v661
      %663 = vmatprep.subr.mxu0 0.0
      %v664 = vand.u32 %v230, 4294901760
      %v665 = vsub.f32 %v230, %v664
      %666 = vmatpush2.msra.mxu0 %v665
      %667 = vmatprep.subr.mxu0 0.0
      %v668 = vand.u32 %v229, 4294901760
      %v669 = vsub.f32 %v229, %v668
      %670 = vmatpush2.msra.mxu0 %v669
      %v671 = vand.u32 %v237, 4294901760
      %v672 = vsub.f32 %v237, %v671
      %673 = vmatprep.mubr.f32.mxu0 %v672
      %v674 = vand.u32 %v211, 4294901760
      %v675 = vsub.f32 %v211, %v674
      %676 = vmatmul.mubr.f32.gmra.mxu0 %v675
      %v677 = vpop.f32.mrf.mxu0
      %v678 = vadd.f32 %v549, %v677
      %v679 = vpop.f32.mrf.mxu0
      %v680 = vand.u32 %v239, 4294901760
      %v681 = vsub.f32 %v239, %v680
      %682 = vmatprep.mubr.f32.mxu0 %v681
      %v683 = vand.u32 %v212, 4294901760
      %v684 = vsub.f32 %v212, %v683
      %685 = vmatmul.mubr.f32.gmra.mxu0 %v684
      %v686 = vpop.f32.mrf.mxu0
      %v687 = vadd.f32 %v556, %v686
      %v688 = vpop.f32.mrf.mxu0
      %689 = vdwg.mxu0
      %690 = vmatprep.subr.mxu0 0.0
      %v691 = vand.u32 %v228, 4294901760
      %692 = vmatpush1.msra.mxu0 %v691
      %693 = vmatprep.subr.mxu0 0.0
      %v694 = vand.u32 %v227, 4294901760
      %695 = vmatpush1.msra.mxu0 %v694
      %696 = vmatprep.subr.mxu0 0.0
      %v697 = vand.u32 %v226, 4294901760
      %698 = vmatpush1.msra.mxu0 %v697
      %699 = vmatprep.subr.mxu0 0.0
      %v700 = vand.u32 %v225, 4294901760
      %701 = vmatpush1.msra.mxu0 %v700
      %702 = vmatprep.subr.mxu0 0.0
      %v703 = vand.u32 %v224, 4294901760
      %704 = vmatpush1.msra.mxu0 %v703
      %705 = vmatprep.subr.mxu0 0.0
      %v706 = vand.u32 %v223, 4294901760
      %707 = vmatpush1.msra.mxu0 %v706
      %708 = vmatprep.subr.mxu0 0.0
      %v709 = vand.u32 %v222, 4294901760
      %710 = vmatpush1.msra.mxu0 %v709
      %711 = vmatprep.subr.mxu0 0.0
      %v712 = vand.u32 %v221, 4294901760
      %713 = vmatpush1.msra.mxu0 %v712
      %714 = vmatprep.subr.mxu0 0.0
      %v715 = vand.u32 %v220, 4294901760
      %716 = vmatpush1.msra.mxu0 %v715
      %717 = vmatprep.subr.mxu0 0.0
      %v718 = vand.u32 %v219, 4294901760
      %719 = vmatpush1.msra.mxu0 %v718
      %720 = vmatprep.subr.mxu0 0.0
      %v721 = vand.u32 %v218, 4294901760
      %722 = vmatpush1.msra.mxu0 %v721
      %723 = vmatprep.subr.mxu0 0.0
      %v724 = vand.u32 %v217, 4294901760
      %725 = vmatpush1.msra.mxu0 %v724
      %726 = vmatprep.subr.mxu0 0.0
      %v727 = vand.u32 %v216, 4294901760
      %728 = vmatpush1.msra.mxu0 %v727
      %729 = vmatprep.subr.mxu0 0.0
      %v730 = vand.u32 %v215, 4294901760
      %731 = vmatpush1.msra.mxu0 %v730
      %732 = vmatprep.subr.mxu0 0.0
      %v733 = vand.u32 %v214, 4294901760
      %734 = vmatpush1.msra.mxu0 %v733
      %735 = vmatprep.subr.mxu0 0.0
      %v736 = vand.u32 %v213, 4294901760
      %737 = vmatpush1.msra.mxu0 %v736
      %738 = vmatprep.subr.mxu0 0.0
      %739 = vmatpush2.msra.mxu0 0.0
      %740 = vmatprep.subr.mxu0 0.0
      %741 = vmatpush2.msra.mxu0 0.0
      %742 = vmatprep.subr.mxu0 0.0
      %743 = vmatpush2.msra.mxu0 0.0
      %744 = vmatprep.subr.mxu0 0.0
      %745 = vmatpush2.msra.mxu0 0.0
      %746 = vmatprep.subr.mxu0 0.0
      %747 = vmatpush2.msra.mxu0 0.0
      %748 = vmatprep.subr.mxu0 0.0
      %749 = vmatpush2.msra.mxu0 0.0
      %750 = vmatprep.subr.mxu0 0.0
      %751 = vmatpush2.msra.mxu0 0.0
      %752 = vmatprep.subr.mxu0 0.0
      %753 = vmatpush2.msra.mxu0 0.0
      %754 = vmatprep.subr.mxu0 0.0
      %v755 = vand.u32 %v236, 4294901760
      %756 = vmatpush2.msra.mxu0 %v755
      %757 = vmatprep.subr.mxu0 0.0
      %v758 = vand.u32 %v235, 4294901760
      %759 = vmatpush2.msra.mxu0 %v758
      %760 = vmatprep.subr.mxu0 0.0
      %v761 = vand.u32 %v234, 4294901760
      %762 = vmatpush2.msra.mxu0 %v761
      %763 = vmatprep.subr.mxu0 0.0
      %v764 = vand.u32 %v233, 4294901760
      %765 = vmatpush2.msra.mxu0 %v764
      %766 = vmatprep.subr.mxu0 0.0
      %v767 = vand.u32 %v232, 4294901760
      %768 = vmatpush2.msra.mxu0 %v767
      %769 = vmatprep.subr.mxu0 0.0
      %v770 = vand.u32 %v231, 4294901760
      %771 = vmatpush2.msra.mxu0 %v770
      %772 = vmatprep.subr.mxu0 0.0
      %v773 = vand.u32 %v230, 4294901760
      %774 = vmatpush2.msra.mxu0 %v773
      %775 = vmatprep.subr.mxu0 0.0
      %v776 = vand.u32 %v229, 4294901760
      %777 = vmatpush2.msra.mxu0 %v776
      %v778 = vand.u32 %v237, 4294901760
      %v779 = vsub.f32 %v237, %v778
      %v780 = vand.u32 %v779, 4294901760
      %781 = vmatprep.mubr.f32.mxu0 %v780
      %v782 = vand.u32 %v211, 4294901760
      %v783 = vsub.f32 %v211, %v782
      %v784 = vand.u32 %v783, 4294901760
      %785 = vmatmul.mubr.f32.gmra.mxu0 %v784
      %v786 = vpop.f32.mrf.mxu0
      %v787 = vadd.f32 %v678, %v786
      %v788 = vpop.f32.mrf.mxu0
      %v789 = vand.u32 %v239, 4294901760
      %v790 = vsub.f32 %v239, %v789
      %v791 = vand.u32 %v790, 4294901760
      %792 = vmatprep.mubr.f32.mxu0 %v791
      %v793 = vand.u32 %v212, 4294901760
      %v794 = vsub.f32 %v212, %v793
      %v795 = vand.u32 %v794, 4294901760
      %796 = vmatmul.mubr.f32.gmra.mxu0 %v795
      %v797 = vpop.f32.mrf.mxu0
      %v798 = vadd.f32 %v687, %v797
      %v799 = vpop.f32.mrf.mxu0
      %800 = vdwg.mxu0
      %801 = vmatprep.subr.mxu0 0.0
      %v802 = vand.u32 %v228, 4294901760
      %v803 = vsub.f32 %v228, %v802
      %v804 = vand.u32 %v803, 4294901760
      %805 = vmatpush1.msra.mxu0 %v804
      %806 = vmatprep.subr.mxu0 0.0
      %v807 = vand.u32 %v227, 4294901760
      %v808 = vsub.f32 %v227, %v807
      %v809 = vand.u32 %v808, 4294901760
      %810 = vmatpush1.msra.mxu0 %v809
      %811 = vmatprep.subr.mxu0 0.0
      %v812 = vand.u32 %v226, 4294901760
      %v813 = vsub.f32 %v226, %v812
      %v814 = vand.u32 %v813, 4294901760
      %815 = vmatpush1.msra.mxu0 %v814
      %816 = vmatprep.subr.mxu0 0.0
      %v817 = vand.u32 %v225, 4294901760
      %v818 = vsub.f32 %v225, %v817
      %v819 = vand.u32 %v818, 4294901760
      %820 = vmatpush1.msra.mxu0 %v819
      %821 = vmatprep.subr.mxu0 0.0
      %v822 = vand.u32 %v224, 4294901760
      %v823 = vsub.f32 %v224, %v822
      %v824 = vand.u32 %v823, 4294901760
      %825 = vmatpush1.msra.mxu0 %v824
      %826 = vmatprep.subr.mxu0 0.0
      %v827 = vand.u32 %v223, 4294901760
      %v828 = vsub.f32 %v223, %v827
      %v829 = vand.u32 %v828, 4294901760
      %830 = vmatpush1.msra.mxu0 %v829
      %831 = vmatprep.subr.mxu0 0.0
      %v832 = vand.u32 %v222, 4294901760
      %v833 = vsub.f32 %v222, %v832
      %v834 = vand.u32 %v833, 4294901760
      %835 = vmatpush1.msra.mxu0 %v834
      %836 = vmatprep.subr.mxu0 0.0
      %v837 = vand.u32 %v221, 4294901760
      %v838 = vsub.f32 %v221, %v837
      %v839 = vand.u32 %v838, 4294901760
      %840 = vmatpush1.msra.mxu0 %v839
      %841 = vmatprep.subr.mxu0 0.0
      %v842 = vand.u32 %v220, 4294901760
      %v843 = vsub.f32 %v220, %v842
      %v844 = vand.u32 %v843, 4294901760
      %845 = vmatpush1.msra.mxu0 %v844
      %846 = vmatprep.subr.mxu0 0.0
      %v847 = vand.u32 %v219, 4294901760
      %v848 = vsub.f32 %v219, %v847
      %v849 = vand.u32 %v848, 4294901760
      %850 = vmatpush1.msra.mxu0 %v849
      %851 = vmatprep.subr.mxu0 0.0
      %v852 = vand.u32 %v218, 4294901760
      %v853 = vsub.f32 %v218, %v852
      %v854 = vand.u32 %v853, 4294901760
      %855 = vmatpush1.msra.mxu0 %v854
      %856 = vmatprep.subr.mxu0 0.0
      %v857 = vand.u32 %v217, 4294901760
      %v858 = vsub.f32 %v217, %v857
      %v859 = vand.u32 %v858, 4294901760
      %860 = vmatpush1.msra.mxu0 %v859
      %861 = vmatprep.subr.mxu0 0.0
      %v862 = vand.u32 %v216, 4294901760
      %v863 = vsub.f32 %v216, %v862
      %v864 = vand.u32 %v863, 4294901760
      %865 = vmatpush1.msra.mxu0 %v864
      %866 = vmatprep.subr.mxu0 0.0
      %v867 = vand.u32 %v215, 4294901760
      %v868 = vsub.f32 %v215, %v867
      %v869 = vand.u32 %v868, 4294901760
      %870 = vmatpush1.msra.mxu0 %v869
      %871 = vmatprep.subr.mxu0 0.0
      %v872 = vand.u32 %v214, 4294901760
      %v873 = vsub.f32 %v214, %v872
      %v874 = vand.u32 %v873, 4294901760
      %875 = vmatpush1.msra.mxu0 %v874
      %876 = vmatprep.subr.mxu0 0.0
      %v877 = vand.u32 %v213, 4294901760
      %v878 = vsub.f32 %v213, %v877
      %v879 = vand.u32 %v878, 4294901760
      %880 = vmatpush1.msra.mxu0 %v879
      %881 = vmatprep.subr.mxu0 0.0
      %882 = vmatpush2.msra.mxu0 0.0
      %883 = vmatprep.subr.mxu0 0.0
      %884 = vmatpush2.msra.mxu0 0.0
      %885 = vmatprep.subr.mxu0 0.0
      %886 = vmatpush2.msra.mxu0 0.0
      %887 = vmatprep.subr.mxu0 0.0
      %888 = vmatpush2.msra.mxu0 0.0
      %889 = vmatprep.subr.mxu0 0.0
      %890 = vmatpush2.msra.mxu0 0.0
      %891 = vmatprep.subr.mxu0 0.0
      %892 = vmatpush2.msra.mxu0 0.0
      %893 = vmatprep.subr.mxu0 0.0
      %894 = vmatpush2.msra.mxu0 0.0
      %895 = vmatprep.subr.mxu0 0.0
      %896 = vmatpush2.msra.mxu0 0.0
      %897 = vmatprep.subr.mxu0 0.0
      %v898 = vand.u32 %v236, 4294901760
      %v899 = vsub.f32 %v236, %v898
      %v900 = vand.u32 %v899, 4294901760
      %901 = vmatpush2.msra.mxu0 %v900
      %902 = vmatprep.subr.mxu0 0.0
      %v903 = vand.u32 %v235, 4294901760
      %v904 = vsub.f32 %v235, %v903
      %v905 = vand.u32 %v904, 4294901760
      %906 = vmatpush2.msra.mxu0 %v905
      %907 = vmatprep.subr.mxu0 0.0
      %v908 = vand.u32 %v234, 4294901760
      %v909 = vsub.f32 %v234, %v908
      %v910 = vand.u32 %v909, 4294901760
      %911 = vmatpush2.msra.mxu0 %v910
      %912 = vmatprep.subr.mxu0 0.0
      %v913 = vand.u32 %v233, 4294901760
      %v914 = vsub.f32 %v233, %v913
      %v915 = vand.u32 %v914, 4294901760
      %916 = vmatpush2.msra.mxu0 %v915
      %917 = vmatprep.subr.mxu0 0.0
      %v918 = vand.u32 %v232, 4294901760
      %v919 = vsub.f32 %v232, %v918
      %v920 = vand.u32 %v919, 4294901760
      %921 = vmatpush2.msra.mxu0 %v920
      %922 = vmatprep.subr.mxu0 0.0
      %v923 = vand.u32 %v231, 4294901760
      %v924 = vsub.f32 %v231, %v923
      %v925 = vand.u32 %v924, 4294901760
      %926 = vmatpush2.msra.mxu0 %v925
      %927 = vmatprep.subr.mxu0 0.0
      %v928 = vand.u32 %v230, 4294901760
      %v929 = vsub.f32 %v230, %v928
      %v930 = vand.u32 %v929, 4294901760
      %931 = vmatpush2.msra.mxu0 %v930
      %932 = vmatprep.subr.mxu0 0.0
      %v933 = vand.u32 %v229, 4294901760
      %v934 = vsub.f32 %v229, %v933
      %v935 = vand.u32 %v934, 4294901760
      %936 = vmatpush2.msra.mxu0 %v935
      %v937 = vand.u32 %v237, 4294901760
      %938 = vmatprep.mubr.f32.mxu0 %v937
      %v939 = vand.u32 %v211, 4294901760
      %940 = vmatmul.mubr.f32.gmra.mxu0 %v939
      %v941 = vpop.f32.mrf.mxu0
      %v942 = vadd.f32 %v787, %v941
      %v943 = vpop.f32.mrf.mxu0
      %v944 = vand.u32 %v239, 4294901760
      %945 = vmatprep.mubr.f32.mxu0 %v944
      %v946 = vand.u32 %v212, 4294901760
      %947 = vmatmul.mubr.f32.gmra.mxu0 %v946
      %v948 = vpop.f32.mrf.mxu0
      %v949 = vadd.f32 %v798, %v948
      %v950 = vpop.f32.mrf.mxu0
      %951 = vdwg.mxu0
      %952 = vmatprep.subr.mxu0 0.0
      %v953 = vand.u32 %v228, 4294901760
      %954 = vmatpush1.msra.mxu0 %v953
      %955 = vmatprep.subr.mxu0 0.0
      %v956 = vand.u32 %v227, 4294901760
      %957 = vmatpush1.msra.mxu0 %v956
      %958 = vmatprep.subr.mxu0 0.0
      %v959 = vand.u32 %v226, 4294901760
      %960 = vmatpush1.msra.mxu0 %v959
      %961 = vmatprep.subr.mxu0 0.0
      %v962 = vand.u32 %v225, 4294901760
      %963 = vmatpush1.msra.mxu0 %v962
      %964 = vmatprep.subr.mxu0 0.0
      %v965 = vand.u32 %v224, 4294901760
      %966 = vmatpush1.msra.mxu0 %v965
      %967 = vmatprep.subr.mxu0 0.0
      %v968 = vand.u32 %v223, 4294901760
      %969 = vmatpush1.msra.mxu0 %v968
      %970 = vmatprep.subr.mxu0 0.0
      %v971 = vand.u32 %v222, 4294901760
      %972 = vmatpush1.msra.mxu0 %v971
      %973 = vmatprep.subr.mxu0 0.0
      %v974 = vand.u32 %v221, 4294901760
      %975 = vmatpush1.msra.mxu0 %v974
      %976 = vmatprep.subr.mxu0 0.0
      %v977 = vand.u32 %v220, 4294901760
      %978 = vmatpush1.msra.mxu0 %v977
      %979 = vmatprep.subr.mxu0 0.0
      %v980 = vand.u32 %v219, 4294901760
      %981 = vmatpush1.msra.mxu0 %v980
      %982 = vmatprep.subr.mxu0 0.0
      %v983 = vand.u32 %v218, 4294901760
      %984 = vmatpush1.msra.mxu0 %v983
      %985 = vmatprep.subr.mxu0 0.0
      %v986 = vand.u32 %v217, 4294901760
      %987 = vmatpush1.msra.mxu0 %v986
      %988 = vmatprep.subr.mxu0 0.0
      %v989 = vand.u32 %v216, 4294901760
      %990 = vmatpush1.msra.mxu0 %v989
      %991 = vmatprep.subr.mxu0 0.0
      %v992 = vand.u32 %v215, 4294901760
      %993 = vmatpush1.msra.mxu0 %v992
      %994 = vmatprep.subr.mxu0 0.0
      %v995 = vand.u32 %v214, 4294901760
      %996 = vmatpush1.msra.mxu0 %v995
      %997 = vmatprep.subr.mxu0 0.0
      %v998 = vand.u32 %v213, 4294901760
      %999 = vmatpush1.msra.mxu0 %v998
      %1000 = vmatprep.subr.mxu0 0.0
      %1001 = vmatpush2.msra.mxu0 0.0
      %1002 = vmatprep.subr.mxu0 0.0
      %1003 = vmatpush2.msra.mxu0 0.0
      %1004 = vmatprep.subr.mxu0 0.0
      %1005 = vmatpush2.msra.mxu0 0.0
      %1006 = vmatprep.subr.mxu0 0.0
      %1007 = vmatpush2.msra.mxu0 0.0
      %1008 = vmatprep.subr.mxu0 0.0
      %1009 = vmatpush2.msra.mxu0 0.0
      %1010 = vmatprep.subr.mxu0 0.0
      %1011 = vmatpush2.msra.mxu0 0.0
      %1012 = vmatprep.subr.mxu0 0.0
      %1013 = vmatpush2.msra.mxu0 0.0
      %1014 = vmatprep.subr.mxu0 0.0
      %1015 = vmatpush2.msra.mxu0 0.0
      %1016 = vmatprep.subr.mxu0 0.0
      %v1017 = vand.u32 %v236, 4294901760
      %1018 = vmatpush2.msra.mxu0 %v1017
      %1019 = vmatprep.subr.mxu0 0.0
      %v1020 = vand.u32 %v235, 4294901760
      %1021 = vmatpush2.msra.mxu0 %v1020
      %1022 = vmatprep.subr.mxu0 0.0
      %v1023 = vand.u32 %v234, 4294901760
      %1024 = vmatpush2.msra.mxu0 %v1023
      %1025 = vmatprep.subr.mxu0 0.0
      %v1026 = vand.u32 %v233, 4294901760
      %1027 = vmatpush2.msra.mxu0 %v1026
      %1028 = vmatprep.subr.mxu0 0.0
      %v1029 = vand.u32 %v232, 4294901760
      %1030 = vmatpush2.msra.mxu0 %v1029
      %1031 = vmatprep.subr.mxu0 0.0
      %v1032 = vand.u32 %v231, 4294901760
      %1033 = vmatpush2.msra.mxu0 %v1032
      %1034 = vmatprep.subr.mxu0 0.0
      %v1035 = vand.u32 %v230, 4294901760
      %1036 = vmatpush2.msra.mxu0 %v1035
      %1037 = vmatprep.subr.mxu0 0.0
      %v1038 = vand.u32 %v229, 4294901760
      %1039 = vmatpush2.msra.mxu0 %v1038
      %v1040 = vand.u32 %v237, 4294901760
      %1041 = vmatprep.mubr.f32.mxu0 %v1040
      %v1042 = vand.u32 %v211, 4294901760
      %1043 = vmatmul.mubr.f32.gmra.mxu0 %v1042
      %v1044 = vpop.f32.mrf.mxu0
      %v1045 = vadd.f32 %v942, %v1044
      %v1046 = vpop.f32.mrf.mxu0
      %v1047 = vand.u32 %v239, 4294901760
      %1048 = vmatprep.mubr.f32.mxu0 %v1047
      %v1049 = vand.u32 %v212, 4294901760
      %1050 = vmatmul.mubr.f32.gmra.mxu0 %v1049
      %v1051 = vpop.f32.mrf.mxu0
      %v1052 = vadd.f32 %v949, %v1051
      %v1053 = vpop.f32.mrf.mxu0
      %1054 = vdwg.mxu0
      %v1055 = vadd.f32 %v171, %v1045
      %v1056 = vadd.f32 %v172, %v1052
      %v1057 = vld [vmem:[%s2] sm:$0x1]
      %v1059 = vlaneseq
      %v1060 = vshrl.u32 %v1059, 7
      %v1061 = vsub.s32 0, %v1060
      %v1062 = vrot.slane %v1057, %v1061
      %v1064 = vadd.f32 %v1055, %v1062
      %v1065 = vadd.f32 %v1056, %v1062
      %v1068 = vrot.slane %v1064, 7
      %v1069 = vrot.slane %v1065, 7
      %v1070 = vsel %vm175, %v1068, %v1069
      %v1074 = vsel %vm175, 0.0, %v1068
      %v1075 = vsel %vm175, %v1069, 0.0
      %v1078 = vrot.slane %v1074, 1
      %v1079 = vrot.slane %v1070, 1
      %v1080 = vsel %vm192, %v1078, %v1079
      %v1081 = vrot.slane %v1075, 1
      %v1082 = vsel %vm192, %v1079, %v1081
      %1083 = vrot.lane.b32.xlu0 %v1080, 64
      %v1084 = vpop.permute.xlu0 %1083
      %1085 = vrot.lane.b32.xlu0 %v1082, 64
      %v1086 = vpop.permute.xlu0 %1085
      %v1089 = vrot.slane %v1074, 2
      %v1090 = vrot.slane %v1070, 2
      %v1091 = vsel %vm204, %v1089, %v1090
      %v1092 = vrot.slane %v1075, 2
      %v1093 = vsel %vm204, %v1090, %v1092
      %v1094 = vsel %vm210, %v1074, %v1084
      %v1095 = vsel %vm210, %v1070, %v1086
      %s1096 = scalar_lea.vmem %s1, 192
      %v1097 = vld [vmem:[%s1096] sm:$0xff]
      %v1098 = vld [vmem:[%s1096 + $0x8] sm:$0xff]
      %v1099 = vld [vmem:[%s1096 + $0x10] sm:$0xff]
      %v1100 = vld [vmem:[%s1096 + $0x18] sm:$0xff]
      %v1101 = vld [vmem:[%s1096 + $0x20] sm:$0xff]
      %v1102 = vld [vmem:[%s1096 + $0x28] sm:$0xff]
      %v1103 = vld [vmem:[%s1096 + $0x30] sm:$0xff]
      %v1104 = vld [vmem:[%s1096 + $0x38] sm:$0xff]
      %v1105 = vld [vmem:[%s1096 + $0x40] sm:$0xff]
      %v1106 = vld [vmem:[%s1096 + $0x48] sm:$0xff]
      %v1107 = vld [vmem:[%s1096 + $0x50] sm:$0xff]
      %v1108 = vld [vmem:[%s1096 + $0x58] sm:$0xff]
      %v1109 = vld [vmem:[%s1096 + $0x60] sm:$0xff]
      %v1110 = vld [vmem:[%s1096 + $0x68] sm:$0xff]
      %v1111 = vld [vmem:[%s1096 + $0x70] sm:$0xff]
      %v1112 = vld [vmem:[%s1096 + $0x78] sm:$0xff]
      %v1113 = vld [vmem:[%s1096 + $0x80] sm:$0xff]
      %v1114 = vld [vmem:[%s1096 + $0x88] sm:$0xff]
      %v1115 = vld [vmem:[%s1096 + $0x90] sm:$0xff]
      %v1116 = vld [vmem:[%s1096 + $0x98] sm:$0xff]
      %v1117 = vld [vmem:[%s1096 + $0xa0] sm:$0xff]
      %v1118 = vld [vmem:[%s1096 + $0xa8] sm:$0xff]
      %v1119 = vld [vmem:[%s1096 + $0xb0] sm:$0xff]
      %v1120 = vld [vmem:[%s1096 + $0xb8] sm:$0xff]
      %v1121 = vsel %vm210, %v1091, 0
      %v1123 = vsel %vm210, %v1093, 0
      %1125 = vmatprep.subr.mxu0 0.0
      %v1126 = vand.u32 %v1112, 4294901760
      %1127 = vmatpush1.msra.mxu0 %v1126
      %1128 = vmatprep.subr.mxu0 0.0
      %v1129 = vand.u32 %v1111, 4294901760
      %1130 = vmatpush1.msra.mxu0 %v1129
      %1131 = vmatprep.subr.mxu0 0.0
      %v1132 = vand.u32 %v1110, 4294901760
      %1133 = vmatpush1.msra.mxu0 %v1132
      %1134 = vmatprep.subr.mxu0 0.0
      %v1135 = vand.u32 %v1109, 4294901760
      %1136 = vmatpush1.msra.mxu0 %v1135
      %1137 = vmatprep.subr.mxu0 0.0
      %v1138 = vand.u32 %v1108, 4294901760
      %1139 = vmatpush1.msra.mxu0 %v1138
      %1140 = vmatprep.subr.mxu0 0.0
      %v1141 = vand.u32 %v1107, 4294901760
      %1142 = vmatpush1.msra.mxu0 %v1141
      %1143 = vmatprep.subr.mxu0 0.0
      %v1144 = vand.u32 %v1106, 4294901760
      %1145 = vmatpush1.msra.mxu0 %v1144
      %1146 = vmatprep.subr.mxu0 0.0
      %v1147 = vand.u32 %v1105, 4294901760
      %1148 = vmatpush1.msra.mxu0 %v1147
      %1149 = vmatprep.subr.mxu0 0.0
      %v1150 = vand.u32 %v1104, 4294901760
      %1151 = vmatpush1.msra.mxu0 %v1150
      %1152 = vmatprep.subr.mxu0 0.0
      %v1153 = vand.u32 %v1103, 4294901760
      %1154 = vmatpush1.msra.mxu0 %v1153
      %1155 = vmatprep.subr.mxu0 0.0
      %v1156 = vand.u32 %v1102, 4294901760
      %1157 = vmatpush1.msra.mxu0 %v1156
      %1158 = vmatprep.subr.mxu0 0.0
      %v1159 = vand.u32 %v1101, 4294901760
      %1160 = vmatpush1.msra.mxu0 %v1159
      %1161 = vmatprep.subr.mxu0 0.0
      %v1162 = vand.u32 %v1100, 4294901760
      %1163 = vmatpush1.msra.mxu0 %v1162
      %1164 = vmatprep.subr.mxu0 0.0
      %v1165 = vand.u32 %v1099, 4294901760
      %1166 = vmatpush1.msra.mxu0 %v1165
      %1167 = vmatprep.subr.mxu0 0.0
      %v1168 = vand.u32 %v1098, 4294901760
      %1169 = vmatpush1.msra.mxu0 %v1168
      %1170 = vmatprep.subr.mxu0 0.0
      %v1171 = vand.u32 %v1097, 4294901760
      %1172 = vmatpush1.msra.mxu0 %v1171
      %1173 = vmatprep.subr.mxu0 0.0
      %1174 = vmatpush2.msra.mxu0 0.0
      %1175 = vmatprep.subr.mxu0 0.0
      %1176 = vmatpush2.msra.mxu0 0.0
      %1177 = vmatprep.subr.mxu0 0.0
      %1178 = vmatpush2.msra.mxu0 0.0
      %1179 = vmatprep.subr.mxu0 0.0
      %1180 = vmatpush2.msra.mxu0 0.0
      %1181 = vmatprep.subr.mxu0 0.0
      %1182 = vmatpush2.msra.mxu0 0.0
      %1183 = vmatprep.subr.mxu0 0.0
      %1184 = vmatpush2.msra.mxu0 0.0
      %1185 = vmatprep.subr.mxu0 0.0
      %1186 = vmatpush2.msra.mxu0 0.0
      %1187 = vmatprep.subr.mxu0 0.0
      %1188 = vmatpush2.msra.mxu0 0.0
      %1189 = vmatprep.subr.mxu0 0.0
      %v1190 = vand.u32 %v1120, 4294901760
      %1191 = vmatpush2.msra.mxu0 %v1190
      %1192 = vmatprep.subr.mxu0 0.0
      %v1193 = vand.u32 %v1119, 4294901760
      %1194 = vmatpush2.msra.mxu0 %v1193
      %1195 = vmatprep.subr.mxu0 0.0
      %v1196 = vand.u32 %v1118, 4294901760
      %1197 = vmatpush2.msra.mxu0 %v1196
      %1198 = vmatprep.subr.mxu0 0.0
      %v1199 = vand.u32 %v1117, 4294901760
      %1200 = vmatpush2.msra.mxu0 %v1199
      %1201 = vmatprep.subr.mxu0 0.0
      %v1202 = vand.u32 %v1116, 4294901760
      %1203 = vmatpush2.msra.mxu0 %v1202
      %1204 = vmatprep.subr.mxu0 0.0
      %v1205 = vand.u32 %v1115, 4294901760
      %1206 = vmatpush2.msra.mxu0 %v1205
      %1207 = vmatprep.subr.mxu0 0.0
      %v1208 = vand.u32 %v1114, 4294901760
      %1209 = vmatpush2.msra.mxu0 %v1208
      %1210 = vmatprep.subr.mxu0 0.0
      %v1211 = vand.u32 %v1113, 4294901760
      %1212 = vmatpush2.msra.mxu0 %v1211
      %v1213 = vand.u32 %v1121, 4294901760
      %v1214 = vsub.f32 %v1121, %v1213
      %v1215 = vand.u32 %v1214, 4294901760
      %v1216 = vsub.f32 %v1214, %v1215
      %v1217 = vand.u32 %v1216, 4294901760
      %1218 = vmatprep.mubr.f32.mxu0 %v1217
      %v1219 = vand.u32 %v1094, 4294901760
      %v1220 = vsub.f32 %v1094, %v1219
      %v1221 = vand.u32 %v1220, 4294901760
      %v1222 = vsub.f32 %v1220, %v1221
      %v1223 = vand.u32 %v1222, 4294901760
      %1224 = vmatmul.mubr.f32.gmra.mxu0 %v1223
      %v1225 = vpop.f32.mrf.mxu0
      %v1226 = vadd.f32 0.0, %v1225
      %v1227 = vpop.f32.mrf.mxu0
      %v1228 = vand.u32 %v1123, 4294901760
      %v1229 = vsub.f32 %v1123, %v1228
      %v1230 = vand.u32 %v1229, 4294901760
      %v1231 = vsub.f32 %v1229, %v1230
      %v1232 = vand.u32 %v1231, 4294901760
      %1233 = vmatprep.mubr.f32.mxu0 %v1232
      %v1234 = vand.u32 %v1095, 4294901760
      %v1235 = vsub.f32 %v1095, %v1234
      %v1236 = vand.u32 %v1235, 4294901760
      %v1237 = vsub.f32 %v1235, %v1236
      %v1238 = vand.u32 %v1237, 4294901760
      %1239 = vmatmul.mubr.f32.gmra.mxu0 %v1238
      %v1240 = vpop.f32.mrf.mxu0
      %v1241 = vadd.f32 0.0, %v1240
      %v1242 = vpop.f32.mrf.mxu0
      %1243 = vdwg.mxu0
      %1244 = vmatprep.subr.mxu0 0.0
      %v1245 = vand.u32 %v1112, 4294901760
      %v1246 = vsub.f32 %v1112, %v1245
      %v1247 = vand.u32 %v1246, 4294901760
      %v1248 = vsub.f32 %v1246, %v1247
      %v1249 = vand.u32 %v1248, 4294901760
      %1250 = vmatpush1.msra.mxu0 %v1249
      %1251 = vmatprep.subr.mxu0 0.0
      %v1252 = vand.u32 %v1111, 4294901760
      %v1253 = vsub.f32 %v1111, %v1252
      %v1254 = vand.u32 %v1253, 4294901760
      %v1255 = vsub.f32 %v1253, %v1254
      %v1256 = vand.u32 %v1255, 4294901760
      %1257 = vmatpush1.msra.mxu0 %v1256
      %1258 = vmatprep.subr.mxu0 0.0
      %v1259 = vand.u32 %v1110, 4294901760
      %v1260 = vsub.f32 %v1110, %v1259
      %v1261 = vand.u32 %v1260, 4294901760
      %v1262 = vsub.f32 %v1260, %v1261
      %v1263 = vand.u32 %v1262, 4294901760
      %1264 = vmatpush1.msra.mxu0 %v1263
      %1265 = vmatprep.subr.mxu0 0.0
      %v1266 = vand.u32 %v1109, 4294901760
      %v1267 = vsub.f32 %v1109, %v1266
      %v1268 = vand.u32 %v1267, 4294901760
      %v1269 = vsub.f32 %v1267, %v1268
      %v1270 = vand.u32 %v1269, 4294901760
      %1271 = vmatpush1.msra.mxu0 %v1270
      %1272 = vmatprep.subr.mxu0 0.0
      %v1273 = vand.u32 %v1108, 4294901760
      %v1274 = vsub.f32 %v1108, %v1273
      %v1275 = vand.u32 %v1274, 4294901760
      %v1276 = vsub.f32 %v1274, %v1275
      %v1277 = vand.u32 %v1276, 4294901760
      %1278 = vmatpush1.msra.mxu0 %v1277
      %1279 = vmatprep.subr.mxu0 0.0
      %v1280 = vand.u32 %v1107, 4294901760
      %v1281 = vsub.f32 %v1107, %v1280
      %v1282 = vand.u32 %v1281, 4294901760
      %v1283 = vsub.f32 %v1281, %v1282
      %v1284 = vand.u32 %v1283, 4294901760
      %1285 = vmatpush1.msra.mxu0 %v1284
      %1286 = vmatprep.subr.mxu0 0.0
      %v1287 = vand.u32 %v1106, 4294901760
      %v1288 = vsub.f32 %v1106, %v1287
      %v1289 = vand.u32 %v1288, 4294901760
      %v1290 = vsub.f32 %v1288, %v1289
      %v1291 = vand.u32 %v1290, 4294901760
      %1292 = vmatpush1.msra.mxu0 %v1291
      %1293 = vmatprep.subr.mxu0 0.0
      %v1294 = vand.u32 %v1105, 4294901760
      %v1295 = vsub.f32 %v1105, %v1294
      %v1296 = vand.u32 %v1295, 4294901760
      %v1297 = vsub.f32 %v1295, %v1296
      %v1298 = vand.u32 %v1297, 4294901760
      %1299 = vmatpush1.msra.mxu0 %v1298
      %1300 = vmatprep.subr.mxu0 0.0
      %v1301 = vand.u32 %v1104, 4294901760
      %v1302 = vsub.f32 %v1104, %v1301
      %v1303 = vand.u32 %v1302, 4294901760
      %v1304 = vsub.f32 %v1302, %v1303
      %v1305 = vand.u32 %v1304, 4294901760
      %1306 = vmatpush1.msra.mxu0 %v1305
      %1307 = vmatprep.subr.mxu0 0.0
      %v1308 = vand.u32 %v1103, 4294901760
      %v1309 = vsub.f32 %v1103, %v1308
      %v1310 = vand.u32 %v1309, 4294901760
      %v1311 = vsub.f32 %v1309, %v1310
      %v1312 = vand.u32 %v1311, 4294901760
      %1313 = vmatpush1.msra.mxu0 %v1312
      %1314 = vmatprep.subr.mxu0 0.0
      %v1315 = vand.u32 %v1102, 4294901760
      %v1316 = vsub.f32 %v1102, %v1315
      %v1317 = vand.u32 %v1316, 4294901760
      %v1318 = vsub.f32 %v1316, %v1317
      %v1319 = vand.u32 %v1318, 4294901760
      %1320 = vmatpush1.msra.mxu0 %v1319
      %1321 = vmatprep.subr.mxu0 0.0
      %v1322 = vand.u32 %v1101, 4294901760
      %v1323 = vsub.f32 %v1101, %v1322
      %v1324 = vand.u32 %v1323, 4294901760
      %v1325 = vsub.f32 %v1323, %v1324
      %v1326 = vand.u32 %v1325, 4294901760
      %1327 = vmatpush1.msra.mxu0 %v1326
      %1328 = vmatprep.subr.mxu0 0.0
      %v1329 = vand.u32 %v1100, 4294901760
      %v1330 = vsub.f32 %v1100, %v1329
      %v1331 = vand.u32 %v1330, 4294901760
      %v1332 = vsub.f32 %v1330, %v1331
      %v1333 = vand.u32 %v1332, 4294901760
      %1334 = vmatpush1.msra.mxu0 %v1333
      %1335 = vmatprep.subr.mxu0 0.0
      %v1336 = vand.u32 %v1099, 4294901760
      %v1337 = vsub.f32 %v1099, %v1336
      %v1338 = vand.u32 %v1337, 4294901760
      %v1339 = vsub.f32 %v1337, %v1338
      %v1340 = vand.u32 %v1339, 4294901760
      %1341 = vmatpush1.msra.mxu0 %v1340
      %1342 = vmatprep.subr.mxu0 0.0
      %v1343 = vand.u32 %v1098, 4294901760
      %v1344 = vsub.f32 %v1098, %v1343
      %v1345 = vand.u32 %v1344, 4294901760
      %v1346 = vsub.f32 %v1344, %v1345
      %v1347 = vand.u32 %v1346, 4294901760
      %1348 = vmatpush1.msra.mxu0 %v1347
      %1349 = vmatprep.subr.mxu0 0.0
      %v1350 = vand.u32 %v1097, 4294901760
      %v1351 = vsub.f32 %v1097, %v1350
      %v1352 = vand.u32 %v1351, 4294901760
      %v1353 = vsub.f32 %v1351, %v1352
      %v1354 = vand.u32 %v1353, 4294901760
      %1355 = vmatpush1.msra.mxu0 %v1354
      %1356 = vmatprep.subr.mxu0 0.0
      %1357 = vmatpush2.msra.mxu0 0.0
      %1358 = vmatprep.subr.mxu0 0.0
      %1359 = vmatpush2.msra.mxu0 0.0
      %1360 = vmatprep.subr.mxu0 0.0
      %1361 = vmatpush2.msra.mxu0 0.0
      %1362 = vmatprep.subr.mxu0 0.0
      %1363 = vmatpush2.msra.mxu0 0.0
      %1364 = vmatprep.subr.mxu0 0.0
      %1365 = vmatpush2.msra.mxu0 0.0
      %1366 = vmatprep.subr.mxu0 0.0
      %1367 = vmatpush2.msra.mxu0 0.0
      %1368 = vmatprep.subr.mxu0 0.0
      %1369 = vmatpush2.msra.mxu0 0.0
      %1370 = vmatprep.subr.mxu0 0.0
      %1371 = vmatpush2.msra.mxu0 0.0
      %1372 = vmatprep.subr.mxu0 0.0
      %v1373 = vand.u32 %v1120, 4294901760
      %v1374 = vsub.f32 %v1120, %v1373
      %v1375 = vand.u32 %v1374, 4294901760
      %v1376 = vsub.f32 %v1374, %v1375
      %v1377 = vand.u32 %v1376, 4294901760
      %1378 = vmatpush2.msra.mxu0 %v1377
      %1379 = vmatprep.subr.mxu0 0.0
      %v1380 = vand.u32 %v1119, 4294901760
      %v1381 = vsub.f32 %v1119, %v1380
      %v1382 = vand.u32 %v1381, 4294901760
      %v1383 = vsub.f32 %v1381, %v1382
      %v1384 = vand.u32 %v1383, 4294901760
      %1385 = vmatpush2.msra.mxu0 %v1384
      %1386 = vmatprep.subr.mxu0 0.0
      %v1387 = vand.u32 %v1118, 4294901760
      %v1388 = vsub.f32 %v1118, %v1387
      %v1389 = vand.u32 %v1388, 4294901760
      %v1390 = vsub.f32 %v1388, %v1389
      %v1391 = vand.u32 %v1390, 4294901760
      %1392 = vmatpush2.msra.mxu0 %v1391
      %1393 = vmatprep.subr.mxu0 0.0
      %v1394 = vand.u32 %v1117, 4294901760
      %v1395 = vsub.f32 %v1117, %v1394
      %v1396 = vand.u32 %v1395, 4294901760
      %v1397 = vsub.f32 %v1395, %v1396
      %v1398 = vand.u32 %v1397, 4294901760
      %1399 = vmatpush2.msra.mxu0 %v1398
      %1400 = vmatprep.subr.mxu0 0.0
      %v1401 = vand.u32 %v1116, 4294901760
      %v1402 = vsub.f32 %v1116, %v1401
      %v1403 = vand.u32 %v1402, 4294901760
      %v1404 = vsub.f32 %v1402, %v1403
      %v1405 = vand.u32 %v1404, 4294901760
      %1406 = vmatpush2.msra.mxu0 %v1405
      %1407 = vmatprep.subr.mxu0 0.0
      %v1408 = vand.u32 %v1115, 4294901760
      %v1409 = vsub.f32 %v1115, %v1408
      %v1410 = vand.u32 %v1409, 4294901760
      %v1411 = vsub.f32 %v1409, %v1410
      %v1412 = vand.u32 %v1411, 4294901760
      %1413 = vmatpush2.msra.mxu0 %v1412
      %1414 = vmatprep.subr.mxu0 0.0
      %v1415 = vand.u32 %v1114, 4294901760
      %v1416 = vsub.f32 %v1114, %v1415
      %v1417 = vand.u32 %v1416, 4294901760
      %v1418 = vsub.f32 %v1416, %v1417
      %v1419 = vand.u32 %v1418, 4294901760
      %1420 = vmatpush2.msra.mxu0 %v1419
      %1421 = vmatprep.subr.mxu0 0.0
      %v1422 = vand.u32 %v1113, 4294901760
      %v1423 = vsub.f32 %v1113, %v1422
      %v1424 = vand.u32 %v1423, 4294901760
      %v1425 = vsub.f32 %v1423, %v1424
      %v1426 = vand.u32 %v1425, 4294901760
      %1427 = vmatpush2.msra.mxu0 %v1426
      %v1428 = vand.u32 %v1121, 4294901760
      %1429 = vmatprep.mubr.f32.mxu0 %v1428
      %v1430 = vand.u32 %v1094, 4294901760
      %1431 = vmatmul.mubr.f32.gmra.mxu0 %v1430
      %v1432 = vpop.f32.mrf.mxu0
      %v1433 = vadd.f32 %v1226, %v1432
      %v1434 = vpop.f32.mrf.mxu0
      %v1435 = vand.u32 %v1123, 4294901760
      %1436 = vmatprep.mubr.f32.mxu0 %v1435
      %v1437 = vand.u32 %v1095, 4294901760
      %1438 = vmatmul.mubr.f32.gmra.mxu0 %v1437
      %v1439 = vpop.f32.mrf.mxu0
      %v1440 = vadd.f32 %v1241, %v1439
      %v1441 = vpop.f32.mrf.mxu0
      %1442 = vdwg.mxu0
      %1443 = vmatprep.subr.mxu0 0.0
      %v1444 = vand.u32 %v1112, 4294901760
      %v1445 = vsub.f32 %v1112, %v1444
      %1446 = vmatpush1.msra.mxu0 %v1445
      %1447 = vmatprep.subr.mxu0 0.0
      %v1448 = vand.u32 %v1111, 4294901760
      %v1449 = vsub.f32 %v1111, %v1448
      %1450 = vmatpush1.msra.mxu0 %v1449
      %1451 = vmatprep.subr.mxu0 0.0
      %v1452 = vand.u32 %v1110, 4294901760
      %v1453 = vsub.f32 %v1110, %v1452
      %1454 = vmatpush1.msra.mxu0 %v1453
      %1455 = vmatprep.subr.mxu0 0.0
      %v1456 = vand.u32 %v1109, 4294901760
      %v1457 = vsub.f32 %v1109, %v1456
      %1458 = vmatpush1.msra.mxu0 %v1457
      %1459 = vmatprep.subr.mxu0 0.0
      %v1460 = vand.u32 %v1108, 4294901760
      %v1461 = vsub.f32 %v1108, %v1460
      %1462 = vmatpush1.msra.mxu0 %v1461
      %1463 = vmatprep.subr.mxu0 0.0
      %v1464 = vand.u32 %v1107, 4294901760
      %v1465 = vsub.f32 %v1107, %v1464
      %1466 = vmatpush1.msra.mxu0 %v1465
      %1467 = vmatprep.subr.mxu0 0.0
      %v1468 = vand.u32 %v1106, 4294901760
      %v1469 = vsub.f32 %v1106, %v1468
      %1470 = vmatpush1.msra.mxu0 %v1469
      %1471 = vmatprep.subr.mxu0 0.0
      %v1472 = vand.u32 %v1105, 4294901760
      %v1473 = vsub.f32 %v1105, %v1472
      %1474 = vmatpush1.msra.mxu0 %v1473
      %1475 = vmatprep.subr.mxu0 0.0
      %v1476 = vand.u32 %v1104, 4294901760
      %v1477 = vsub.f32 %v1104, %v1476
      %1478 = vmatpush1.msra.mxu0 %v1477
      %1479 = vmatprep.subr.mxu0 0.0
      %v1480 = vand.u32 %v1103, 4294901760
      %v1481 = vsub.f32 %v1103, %v1480
      %1482 = vmatpush1.msra.mxu0 %v1481
      %1483 = vmatprep.subr.mxu0 0.0
      %v1484 = vand.u32 %v1102, 4294901760
      %v1485 = vsub.f32 %v1102, %v1484
      %1486 = vmatpush1.msra.mxu0 %v1485
      %1487 = vmatprep.subr.mxu0 0.0
      %v1488 = vand.u32 %v1101, 4294901760
      %v1489 = vsub.f32 %v1101, %v1488
      %1490 = vmatpush1.msra.mxu0 %v1489
      %1491 = vmatprep.subr.mxu0 0.0
      %v1492 = vand.u32 %v1100, 4294901760
      %v1493 = vsub.f32 %v1100, %v1492
      %1494 = vmatpush1.msra.mxu0 %v1493
      %1495 = vmatprep.subr.mxu0 0.0
      %v1496 = vand.u32 %v1099, 4294901760
      %v1497 = vsub.f32 %v1099, %v1496
      %1498 = vmatpush1.msra.mxu0 %v1497
      %1499 = vmatprep.subr.mxu0 0.0
      %v1500 = vand.u32 %v1098, 4294901760
      %v1501 = vsub.f32 %v1098, %v1500
      %1502 = vmatpush1.msra.mxu0 %v1501
      %1503 = vmatprep.subr.mxu0 0.0
      %v1504 = vand.u32 %v1097, 4294901760
      %v1505 = vsub.f32 %v1097, %v1504
      %1506 = vmatpush1.msra.mxu0 %v1505
      %1507 = vmatprep.subr.mxu0 0.0
      %1508 = vmatpush2.msra.mxu0 0.0
      %1509 = vmatprep.subr.mxu0 0.0
      %1510 = vmatpush2.msra.mxu0 0.0
      %1511 = vmatprep.subr.mxu0 0.0
      %1512 = vmatpush2.msra.mxu0 0.0
      %1513 = vmatprep.subr.mxu0 0.0
      %1514 = vmatpush2.msra.mxu0 0.0
      %1515 = vmatprep.subr.mxu0 0.0
      %1516 = vmatpush2.msra.mxu0 0.0
      %1517 = vmatprep.subr.mxu0 0.0
      %1518 = vmatpush2.msra.mxu0 0.0
      %1519 = vmatprep.subr.mxu0 0.0
      %1520 = vmatpush2.msra.mxu0 0.0
      %1521 = vmatprep.subr.mxu0 0.0
      %1522 = vmatpush2.msra.mxu0 0.0
      %1523 = vmatprep.subr.mxu0 0.0
      %v1524 = vand.u32 %v1120, 4294901760
      %v1525 = vsub.f32 %v1120, %v1524
      %1526 = vmatpush2.msra.mxu0 %v1525
      %1527 = vmatprep.subr.mxu0 0.0
      %v1528 = vand.u32 %v1119, 4294901760
      %v1529 = vsub.f32 %v1119, %v1528
      %1530 = vmatpush2.msra.mxu0 %v1529
      %1531 = vmatprep.subr.mxu0 0.0
      %v1532 = vand.u32 %v1118, 4294901760
      %v1533 = vsub.f32 %v1118, %v1532
      %1534 = vmatpush2.msra.mxu0 %v1533
      %1535 = vmatprep.subr.mxu0 0.0
      %v1536 = vand.u32 %v1117, 4294901760
      %v1537 = vsub.f32 %v1117, %v1536
      %1538 = vmatpush2.msra.mxu0 %v1537
      %1539 = vmatprep.subr.mxu0 0.0
      %v1540 = vand.u32 %v1116, 4294901760
      %v1541 = vsub.f32 %v1116, %v1540
      %1542 = vmatpush2.msra.mxu0 %v1541
      %1543 = vmatprep.subr.mxu0 0.0
      %v1544 = vand.u32 %v1115, 4294901760
      %v1545 = vsub.f32 %v1115, %v1544
      %1546 = vmatpush2.msra.mxu0 %v1545
      %1547 = vmatprep.subr.mxu0 0.0
      %v1548 = vand.u32 %v1114, 4294901760
      %v1549 = vsub.f32 %v1114, %v1548
      %1550 = vmatpush2.msra.mxu0 %v1549
      %1551 = vmatprep.subr.mxu0 0.0
      %v1552 = vand.u32 %v1113, 4294901760
      %v1553 = vsub.f32 %v1113, %v1552
      %1554 = vmatpush2.msra.mxu0 %v1553
      %v1555 = vand.u32 %v1121, 4294901760
      %v1556 = vsub.f32 %v1121, %v1555
      %1557 = vmatprep.mubr.f32.mxu0 %v1556
      %v1558 = vand.u32 %v1094, 4294901760
      %v1559 = vsub.f32 %v1094, %v1558
      %1560 = vmatmul.mubr.f32.gmra.mxu0 %v1559
      %v1561 = vpop.f32.mrf.mxu0
      %v1562 = vadd.f32 %v1433, %v1561
      %v1563 = vpop.f32.mrf.mxu0
      %v1564 = vand.u32 %v1123, 4294901760
      %v1565 = vsub.f32 %v1123, %v1564
      %1566 = vmatprep.mubr.f32.mxu0 %v1565
      %v1567 = vand.u32 %v1095, 4294901760
      %v1568 = vsub.f32 %v1095, %v1567
      %1569 = vmatmul.mubr.f32.gmra.mxu0 %v1568
      %v1570 = vpop.f32.mrf.mxu0
      %v1571 = vadd.f32 %v1440, %v1570
      %v1572 = vpop.f32.mrf.mxu0
      %1573 = vdwg.mxu0
      %1574 = vmatprep.subr.mxu0 0.0
      %v1575 = vand.u32 %v1112, 4294901760
      %1576 = vmatpush1.msra.mxu0 %v1575
      %1577 = vmatprep.subr.mxu0 0.0
      %v1578 = vand.u32 %v1111, 4294901760
      %1579 = vmatpush1.msra.mxu0 %v1578
      %1580 = vmatprep.subr.mxu0 0.0
      %v1581 = vand.u32 %v1110, 4294901760
      %1582 = vmatpush1.msra.mxu0 %v1581
      %1583 = vmatprep.subr.mxu0 0.0
      %v1584 = vand.u32 %v1109, 4294901760
      %1585 = vmatpush1.msra.mxu0 %v1584
      %1586 = vmatprep.subr.mxu0 0.0
      %v1587 = vand.u32 %v1108, 4294901760
      %1588 = vmatpush1.msra.mxu0 %v1587
      %1589 = vmatprep.subr.mxu0 0.0
      %v1590 = vand.u32 %v1107, 4294901760
      %1591 = vmatpush1.msra.mxu0 %v1590
      %1592 = vmatprep.subr.mxu0 0.0
      %v1593 = vand.u32 %v1106, 4294901760
      %1594 = vmatpush1.msra.mxu0 %v1593
      %1595 = vmatprep.subr.mxu0 0.0
      %v1596 = vand.u32 %v1105, 4294901760
      %1597 = vmatpush1.msra.mxu0 %v1596
      %1598 = vmatprep.subr.mxu0 0.0
      %v1599 = vand.u32 %v1104, 4294901760
      %1600 = vmatpush1.msra.mxu0 %v1599
      %1601 = vmatprep.subr.mxu0 0.0
      %v1602 = vand.u32 %v1103, 4294901760
      %1603 = vmatpush1.msra.mxu0 %v1602
      %1604 = vmatprep.subr.mxu0 0.0
      %v1605 = vand.u32 %v1102, 4294901760
      %1606 = vmatpush1.msra.mxu0 %v1605
      %1607 = vmatprep.subr.mxu0 0.0
      %v1608 = vand.u32 %v1101, 4294901760
      %1609 = vmatpush1.msra.mxu0 %v1608
      %1610 = vmatprep.subr.mxu0 0.0
      %v1611 = vand.u32 %v1100, 4294901760
      %1612 = vmatpush1.msra.mxu0 %v1611
      %1613 = vmatprep.subr.mxu0 0.0
      %v1614 = vand.u32 %v1099, 4294901760
      %1615 = vmatpush1.msra.mxu0 %v1614
      %1616 = vmatprep.subr.mxu0 0.0
      %v1617 = vand.u32 %v1098, 4294901760
      %1618 = vmatpush1.msra.mxu0 %v1617
      %1619 = vmatprep.subr.mxu0 0.0
      %v1620 = vand.u32 %v1097, 4294901760
      %1621 = vmatpush1.msra.mxu0 %v1620
      %1622 = vmatprep.subr.mxu0 0.0
      %1623 = vmatpush2.msra.mxu0 0.0
      %1624 = vmatprep.subr.mxu0 0.0
      %1625 = vmatpush2.msra.mxu0 0.0
      %1626 = vmatprep.subr.mxu0 0.0
      %1627 = vmatpush2.msra.mxu0 0.0
      %1628 = vmatprep.subr.mxu0 0.0
      %1629 = vmatpush2.msra.mxu0 0.0
      %1630 = vmatprep.subr.mxu0 0.0
      %1631 = vmatpush2.msra.mxu0 0.0
      %1632 = vmatprep.subr.mxu0 0.0
      %1633 = vmatpush2.msra.mxu0 0.0
      %1634 = vmatprep.subr.mxu0 0.0
      %1635 = vmatpush2.msra.mxu0 0.0
      %1636 = vmatprep.subr.mxu0 0.0
      %1637 = vmatpush2.msra.mxu0 0.0
      %1638 = vmatprep.subr.mxu0 0.0
      %v1639 = vand.u32 %v1120, 4294901760
      %1640 = vmatpush2.msra.mxu0 %v1639
      %1641 = vmatprep.subr.mxu0 0.0
      %v1642 = vand.u32 %v1119, 4294901760
      %1643 = vmatpush2.msra.mxu0 %v1642
      %1644 = vmatprep.subr.mxu0 0.0
      %v1645 = vand.u32 %v1118, 4294901760
      %1646 = vmatpush2.msra.mxu0 %v1645
      %1647 = vmatprep.subr.mxu0 0.0
      %v1648 = vand.u32 %v1117, 4294901760
      %1649 = vmatpush2.msra.mxu0 %v1648
      %1650 = vmatprep.subr.mxu0 0.0
      %v1651 = vand.u32 %v1116, 4294901760
      %1652 = vmatpush2.msra.mxu0 %v1651
      %1653 = vmatprep.subr.mxu0 0.0
      %v1654 = vand.u32 %v1115, 4294901760
      %1655 = vmatpush2.msra.mxu0 %v1654
      %1656 = vmatprep.subr.mxu0 0.0
      %v1657 = vand.u32 %v1114, 4294901760
      %1658 = vmatpush2.msra.mxu0 %v1657
      %1659 = vmatprep.subr.mxu0 0.0
      %v1660 = vand.u32 %v1113, 4294901760
      %1661 = vmatpush2.msra.mxu0 %v1660
      %v1662 = vand.u32 %v1121, 4294901760
      %v1663 = vsub.f32 %v1121, %v1662
      %v1664 = vand.u32 %v1663, 4294901760
      %1665 = vmatprep.mubr.f32.mxu0 %v1664
      %v1666 = vand.u32 %v1094, 4294901760
      %v1667 = vsub.f32 %v1094, %v1666
      %v1668 = vand.u32 %v1667, 4294901760
      %1669 = vmatmul.mubr.f32.gmra.mxu0 %v1668
      %v1670 = vpop.f32.mrf.mxu0
      %v1671 = vadd.f32 %v1562, %v1670
      %v1672 = vpop.f32.mrf.mxu0
      %v1673 = vand.u32 %v1123, 4294901760
      %v1674 = vsub.f32 %v1123, %v1673
      %v1675 = vand.u32 %v1674, 4294901760
      %1676 = vmatprep.mubr.f32.mxu0 %v1675
      %v1677 = vand.u32 %v1095, 4294901760
      %v1678 = vsub.f32 %v1095, %v1677
      %v1679 = vand.u32 %v1678, 4294901760
      %1680 = vmatmul.mubr.f32.gmra.mxu0 %v1679
      %v1681 = vpop.f32.mrf.mxu0
      %v1682 = vadd.f32 %v1571, %v1681
      %v1683 = vpop.f32.mrf.mxu0
      %1684 = vdwg.mxu0
      %1685 = vmatprep.subr.mxu0 0.0
      %v1686 = vand.u32 %v1112, 4294901760
      %v1687 = vsub.f32 %v1112, %v1686
      %v1688 = vand.u32 %v1687, 4294901760
      %1689 = vmatpush1.msra.mxu0 %v1688
      %1690 = vmatprep.subr.mxu0 0.0
      %v1691 = vand.u32 %v1111, 4294901760
      %v1692 = vsub.f32 %v1111, %v1691
      %v1693 = vand.u32 %v1692, 4294901760
      %1694 = vmatpush1.msra.mxu0 %v1693
      %1695 = vmatprep.subr.mxu0 0.0
      %v1696 = vand.u32 %v1110, 4294901760
      %v1697 = vsub.f32 %v1110, %v1696
      %v1698 = vand.u32 %v1697, 4294901760
      %1699 = vmatpush1.msra.mxu0 %v1698
      %1700 = vmatprep.subr.mxu0 0.0
      %v1701 = vand.u32 %v1109, 4294901760
      %v1702 = vsub.f32 %v1109, %v1701
      %v1703 = vand.u32 %v1702, 4294901760
      %1704 = vmatpush1.msra.mxu0 %v1703
      %1705 = vmatprep.subr.mxu0 0.0
      %v1706 = vand.u32 %v1108, 4294901760
      %v1707 = vsub.f32 %v1108, %v1706
      %v1708 = vand.u32 %v1707, 4294901760
      %1709 = vmatpush1.msra.mxu0 %v1708
      %1710 = vmatprep.subr.mxu0 0.0
      %v1711 = vand.u32 %v1107, 4294901760
      %v1712 = vsub.f32 %v1107, %v1711
      %v1713 = vand.u32 %v1712, 4294901760
      %1714 = vmatpush1.msra.mxu0 %v1713
      %1715 = vmatprep.subr.mxu0 0.0
      %v1716 = vand.u32 %v1106, 4294901760
      %v1717 = vsub.f32 %v1106, %v1716
      %v1718 = vand.u32 %v1717, 4294901760
      %1719 = vmatpush1.msra.mxu0 %v1718
      %1720 = vmatprep.subr.mxu0 0.0
      %v1721 = vand.u32 %v1105, 4294901760
      %v1722 = vsub.f32 %v1105, %v1721
      %v1723 = vand.u32 %v1722, 4294901760
      %1724 = vmatpush1.msra.mxu0 %v1723
      %1725 = vmatprep.subr.mxu0 0.0
      %v1726 = vand.u32 %v1104, 4294901760
      %v1727 = vsub.f32 %v1104, %v1726
      %v1728 = vand.u32 %v1727, 4294901760
      %1729 = vmatpush1.msra.mxu0 %v1728
      %1730 = vmatprep.subr.mxu0 0.0
      %v1731 = vand.u32 %v1103, 4294901760
      %v1732 = vsub.f32 %v1103, %v1731
      %v1733 = vand.u32 %v1732, 4294901760
      %1734 = vmatpush1.msra.mxu0 %v1733
      %1735 = vmatprep.subr.mxu0 0.0
      %v1736 = vand.u32 %v1102, 4294901760
      %v1737 = vsub.f32 %v1102, %v1736
      %v1738 = vand.u32 %v1737, 4294901760
      %1739 = vmatpush1.msra.mxu0 %v1738
      %1740 = vmatprep.subr.mxu0 0.0
      %v1741 = vand.u32 %v1101, 4294901760
      %v1742 = vsub.f32 %v1101, %v1741
      %v1743 = vand.u32 %v1742, 4294901760
      %1744 = vmatpush1.msra.mxu0 %v1743
      %1745 = vmatprep.subr.mxu0 0.0
      %v1746 = vand.u32 %v1100, 4294901760
      %v1747 = vsub.f32 %v1100, %v1746
      %v1748 = vand.u32 %v1747, 4294901760
      %1749 = vmatpush1.msra.mxu0 %v1748
      %1750 = vmatprep.subr.mxu0 0.0
      %v1751 = vand.u32 %v1099, 4294901760
      %v1752 = vsub.f32 %v1099, %v1751
      %v1753 = vand.u32 %v1752, 4294901760
      %1754 = vmatpush1.msra.mxu0 %v1753
      %1755 = vmatprep.subr.mxu0 0.0
      %v1756 = vand.u32 %v1098, 4294901760
      %v1757 = vsub.f32 %v1098, %v1756
      %v1758 = vand.u32 %v1757, 4294901760
      %1759 = vmatpush1.msra.mxu0 %v1758
      %1760 = vmatprep.subr.mxu0 0.0
      %v1761 = vand.u32 %v1097, 4294901760
      %v1762 = vsub.f32 %v1097, %v1761
      %v1763 = vand.u32 %v1762, 4294901760
      %1764 = vmatpush1.msra.mxu0 %v1763
      %1765 = vmatprep.subr.mxu0 0.0
      %1766 = vmatpush2.msra.mxu0 0.0
      %1767 = vmatprep.subr.mxu0 0.0
      %1768 = vmatpush2.msra.mxu0 0.0
      %1769 = vmatprep.subr.mxu0 0.0
      %1770 = vmatpush2.msra.mxu0 0.0
      %1771 = vmatprep.subr.mxu0 0.0
      %1772 = vmatpush2.msra.mxu0 0.0
      %1773 = vmatprep.subr.mxu0 0.0
      %1774 = vmatpush2.msra.mxu0 0.0
      %1775 = vmatprep.subr.mxu0 0.0
      %1776 = vmatpush2.msra.mxu0 0.0
      %1777 = vmatprep.subr.mxu0 0.0
      %1778 = vmatpush2.msra.mxu0 0.0
      %1779 = vmatprep.subr.mxu0 0.0
      %1780 = vmatpush2.msra.mxu0 0.0
      %1781 = vmatprep.subr.mxu0 0.0
      %v1782 = vand.u32 %v1120, 4294901760
      %v1783 = vsub.f32 %v1120, %v1782
      %v1784 = vand.u32 %v1783, 4294901760
      %1785 = vmatpush2.msra.mxu0 %v1784
      %1786 = vmatprep.subr.mxu0 0.0
      %v1787 = vand.u32 %v1119, 4294901760
      %v1788 = vsub.f32 %v1119, %v1787
      %v1789 = vand.u32 %v1788, 4294901760
      %1790 = vmatpush2.msra.mxu0 %v1789
      %1791 = vmatprep.subr.mxu0 0.0
      %v1792 = vand.u32 %v1118, 4294901760
      %v1793 = vsub.f32 %v1118, %v1792
      %v1794 = vand.u32 %v1793, 4294901760
      %1795 = vmatpush2.msra.mxu0 %v1794
      %1796 = vmatprep.subr.mxu0 0.0
      %v1797 = vand.u32 %v1117, 4294901760
      %v1798 = vsub.f32 %v1117, %v1797
      %v1799 = vand.u32 %v1798, 4294901760
      %1800 = vmatpush2.msra.mxu0 %v1799
      %1801 = vmatprep.subr.mxu0 0.0
      %v1802 = vand.u32 %v1116, 4294901760
      %v1803 = vsub.f32 %v1116, %v1802
      %v1804 = vand.u32 %v1803, 4294901760
      %1805 = vmatpush2.msra.mxu0 %v1804
      %1806 = vmatprep.subr.mxu0 0.0
      %v1807 = vand.u32 %v1115, 4294901760
      %v1808 = vsub.f32 %v1115, %v1807
      %v1809 = vand.u32 %v1808, 4294901760
      %1810 = vmatpush2.msra.mxu0 %v1809
      %1811 = vmatprep.subr.mxu0 0.0
      %v1812 = vand.u32 %v1114, 4294901760
      %v1813 = vsub.f32 %v1114, %v1812
      %v1814 = vand.u32 %v1813, 4294901760
      %1815 = vmatpush2.msra.mxu0 %v1814
      %1816 = vmatprep.subr.mxu0 0.0
      %v1817 = vand.u32 %v1113, 4294901760
      %v1818 = vsub.f32 %v1113, %v1817
      %v1819 = vand.u32 %v1818, 4294901760
      %1820 = vmatpush2.msra.mxu0 %v1819
      %v1821 = vand.u32 %v1121, 4294901760
      %1822 = vmatprep.mubr.f32.mxu0 %v1821
      %v1823 = vand.u32 %v1094, 4294901760
      %1824 = vmatmul.mubr.f32.gmra.mxu0 %v1823
      %v1825 = vpop.f32.mrf.mxu0
      %v1826 = vadd.f32 %v1671, %v1825
      %v1827 = vpop.f32.mrf.mxu0
      %v1828 = vand.u32 %v1123, 4294901760
      %1829 = vmatprep.mubr.f32.mxu0 %v1828
      %v1830 = vand.u32 %v1095, 4294901760
      %1831 = vmatmul.mubr.f32.gmra.mxu0 %v1830
      %v1832 = vpop.f32.mrf.mxu0
      %v1833 = vadd.f32 %v1682, %v1832
      %v1834 = vpop.f32.mrf.mxu0
      %1835 = vdwg.mxu0
      %1836 = vmatprep.subr.mxu0 0.0
      %v1837 = vand.u32 %v1112, 4294901760
      %1838 = vmatpush1.msra.mxu0 %v1837
      %1839 = vmatprep.subr.mxu0 0.0
      %v1840 = vand.u32 %v1111, 4294901760
      %1841 = vmatpush1.msra.mxu0 %v1840
      %1842 = vmatprep.subr.mxu0 0.0
      %v1843 = vand.u32 %v1110, 4294901760
      %1844 = vmatpush1.msra.mxu0 %v1843
      %1845 = vmatprep.subr.mxu0 0.0
      %v1846 = vand.u32 %v1109, 4294901760
      %1847 = vmatpush1.msra.mxu0 %v1846
      %1848 = vmatprep.subr.mxu0 0.0
      %v1849 = vand.u32 %v1108, 4294901760
      %1850 = vmatpush1.msra.mxu0 %v1849
      %1851 = vmatprep.subr.mxu0 0.0
      %v1852 = vand.u32 %v1107, 4294901760
      %1853 = vmatpush1.msra.mxu0 %v1852
      %1854 = vmatprep.subr.mxu0 0.0
      %v1855 = vand.u32 %v1106, 4294901760
      %1856 = vmatpush1.msra.mxu0 %v1855
      %1857 = vmatprep.subr.mxu0 0.0
      %v1858 = vand.u32 %v1105, 4294901760
      %1859 = vmatpush1.msra.mxu0 %v1858
      %1860 = vmatprep.subr.mxu0 0.0
      %v1861 = vand.u32 %v1104, 4294901760
      %1862 = vmatpush1.msra.mxu0 %v1861
      %1863 = vmatprep.subr.mxu0 0.0
      %v1864 = vand.u32 %v1103, 4294901760
      %1865 = vmatpush1.msra.mxu0 %v1864
      %1866 = vmatprep.subr.mxu0 0.0
      %v1867 = vand.u32 %v1102, 4294901760
      %1868 = vmatpush1.msra.mxu0 %v1867
      %1869 = vmatprep.subr.mxu0 0.0
      %v1870 = vand.u32 %v1101, 4294901760
      %1871 = vmatpush1.msra.mxu0 %v1870
      %1872 = vmatprep.subr.mxu0 0.0
      %v1873 = vand.u32 %v1100, 4294901760
      %1874 = vmatpush1.msra.mxu0 %v1873
      %1875 = vmatprep.subr.mxu0 0.0
      %v1876 = vand.u32 %v1099, 4294901760
      %1877 = vmatpush1.msra.mxu0 %v1876
      %1878 = vmatprep.subr.mxu0 0.0
      %v1879 = vand.u32 %v1098, 4294901760
      %1880 = vmatpush1.msra.mxu0 %v1879
      %1881 = vmatprep.subr.mxu0 0.0
      %v1882 = vand.u32 %v1097, 4294901760
      %1883 = vmatpush1.msra.mxu0 %v1882
      %1884 = vmatprep.subr.mxu0 0.0
      %1885 = vmatpush2.msra.mxu0 0.0
      %1886 = vmatprep.subr.mxu0 0.0
      %1887 = vmatpush2.msra.mxu0 0.0
      %1888 = vmatprep.subr.mxu0 0.0
      %1889 = vmatpush2.msra.mxu0 0.0
      %1890 = vmatprep.subr.mxu0 0.0
      %1891 = vmatpush2.msra.mxu0 0.0
      %1892 = vmatprep.subr.mxu0 0.0
      %1893 = vmatpush2.msra.mxu0 0.0
      %1894 = vmatprep.subr.mxu0 0.0
      %1895 = vmatpush2.msra.mxu0 0.0
      %1896 = vmatprep.subr.mxu0 0.0
      %1897 = vmatpush2.msra.mxu0 0.0
      %1898 = vmatprep.subr.mxu0 0.0
      %1899 = vmatpush2.msra.mxu0 0.0
      %1900 = vmatprep.subr.mxu0 0.0
      %v1901 = vand.u32 %v1120, 4294901760
      %1902 = vmatpush2.msra.mxu0 %v1901
      %1903 = vmatprep.subr.mxu0 0.0
      %v1904 = vand.u32 %v1119, 4294901760
      %1905 = vmatpush2.msra.mxu0 %v1904
      %1906 = vmatprep.subr.mxu0 0.0
      %v1907 = vand.u32 %v1118, 4294901760
      %1908 = vmatpush2.msra.mxu0 %v1907
      %1909 = vmatprep.subr.mxu0 0.0
      %v1910 = vand.u32 %v1117, 4294901760
      %1911 = vmatpush2.msra.mxu0 %v1910
      %1912 = vmatprep.subr.mxu0 0.0
      %v1913 = vand.u32 %v1116, 4294901760
      %1914 = vmatpush2.msra.mxu0 %v1913
      %1915 = vmatprep.subr.mxu0 0.0
      %v1916 = vand.u32 %v1115, 4294901760
      %1917 = vmatpush2.msra.mxu0 %v1916
      %1918 = vmatprep.subr.mxu0 0.0
      %v1919 = vand.u32 %v1114, 4294901760
      %1920 = vmatpush2.msra.mxu0 %v1919
      %1921 = vmatprep.subr.mxu0 0.0
      %v1922 = vand.u32 %v1113, 4294901760
      %1923 = vmatpush2.msra.mxu0 %v1922
      %v1924 = vand.u32 %v1121, 4294901760
      %1925 = vmatprep.mubr.f32.mxu0 %v1924
      %v1926 = vand.u32 %v1094, 4294901760
      %1927 = vmatmul.mubr.f32.gmra.mxu0 %v1926
      %v1928 = vpop.f32.mrf.mxu0
      %v1929 = vadd.f32 %v1826, %v1928
      %v1930 = vpop.f32.mrf.mxu0
      %v1931 = vand.u32 %v1123, 4294901760
      %1932 = vmatprep.mubr.f32.mxu0 %v1931
      %v1933 = vand.u32 %v1095, 4294901760
      %1934 = vmatmul.mubr.f32.gmra.mxu0 %v1933
      %v1935 = vpop.f32.mrf.mxu0
      %v1936 = vadd.f32 %v1833, %v1935
      %v1937 = vpop.f32.mrf.mxu0
      %1938 = vdwg.mxu0
      %1941 = vrot.lane.b32.xlu0 %v1929, 64
      %v1942 = vpop.permute.xlu0 %1941
      %1943 = vrot.lane.b32.xlu0 %v1936, 64
      %v1944 = vpop.permute.xlu0 %1943
      %v1947 = vadd.f32 %v171, %v1942
      %v1948 = vadd.f32 %v172, %v1944
      %s1949 = scalar_lea.vmem %s2, 1
      %v1950 = vld [vmem:[%s1949] sm:$0x1]
      %v1952 = vlaneseq
      %v1953 = vshrl.u32 %v1952, 7
      %v1954 = vsub.s32 0, %v1953
      %v1955 = vrot.slane %v1950, %v1954
      %1956 = vrot.lane.b32.xlu0 %v1955, 64
      %v1957 = vpop.permute.xlu0 %1956
      %v1959 = vadd.f32 %v1947, %v1957
      %v1960 = vadd.f32 %v1948, %v1957
      %v1963 = vrot.slane %v1959, 7
      %v1964 = vrot.slane %v1960, 7
      %v1965 = vsel %vm175, %v1963, %v1964
      %1966 = vrot.lane.b32.xlu0 %v1963, 64
      %v1967 = vpop.permute.xlu0 %1966
      %1968 = vrot.lane.b32.xlu0 %v1965, 64
      %v1969 = vpop.permute.xlu0 %1968
      %1970 = vrot.lane.b32.xlu0 %v1964, 64
      %v1971 = vpop.permute.xlu0 %1970
      %v1975 = vsel %vm175, 0.0, %v1967
      %v1976 = vsel %vm175, %v1971, 0.0
      %v1979 = vrot.slane %v1975, 1
      %v1980 = vrot.slane %v1969, 1
      %v1981 = vsel %vm192, %v1979, %v1980
      %v1982 = vrot.slane %v1976, 1
      %v1983 = vsel %vm192, %v1980, %v1982
      %1984 = vrot.lane.b32.xlu0 %v1981, 64
      %v1985 = vpop.permute.xlu0 %1984
      %1986 = vrot.lane.b32.xlu0 %v1983, 64
      %v1987 = vpop.permute.xlu0 %1986
      %v1990 = vrot.slane %v1975, 2
      %v1991 = vrot.slane %v1969, 2
      %v1992 = vsel %vm204, %v1990, %v1991
      %v1993 = vrot.slane %v1976, 2
      %v1994 = vsel %vm204, %v1991, %v1993
      %v1995 = vsel %vm210, %v1975, %v1985
      %v1996 = vsel %vm210, %v1969, %v1987
      %s1997 = scalar_lea.vmem %s1, 384
      %v1998 = vld [vmem:[%s1997] sm:$0xff]
      %v1999 = vld [vmem:[%s1997 + $0x8] sm:$0xff]
      %v2000 = vld [vmem:[%s1997 + $0x10] sm:$0xff]
      %v2001 = vld [vmem:[%s1997 + $0x18] sm:$0xff]
      %v2002 = vld [vmem:[%s1997 + $0x20] sm:$0xff]
      %v2003 = vld [vmem:[%s1997 + $0x28] sm:$0xff]
      %v2004 = vld [vmem:[%s1997 + $0x30] sm:$0xff]
      %v2005 = vld [vmem:[%s1997 + $0x38] sm:$0xff]
      %v2006 = vld [vmem:[%s1997 + $0x40] sm:$0xff]
      %v2007 = vld [vmem:[%s1997 + $0x48] sm:$0xff]
      %v2008 = vld [vmem:[%s1997 + $0x50] sm:$0xff]
      %v2009 = vld [vmem:[%s1997 + $0x58] sm:$0xff]
      %v2010 = vld [vmem:[%s1997 + $0x60] sm:$0xff]
      %v2011 = vld [vmem:[%s1997 + $0x68] sm:$0xff]
      %v2012 = vld [vmem:[%s1997 + $0x70] sm:$0xff]
      %v2013 = vld [vmem:[%s1997 + $0x78] sm:$0xff]
      %v2014 = vld [vmem:[%s1997 + $0x80] sm:$0xff]
      %v2015 = vld [vmem:[%s1997 + $0x88] sm:$0xff]
      %v2016 = vld [vmem:[%s1997 + $0x90] sm:$0xff]
      %v2017 = vld [vmem:[%s1997 + $0x98] sm:$0xff]
      %v2018 = vld [vmem:[%s1997 + $0xa0] sm:$0xff]
      %v2019 = vld [vmem:[%s1997 + $0xa8] sm:$0xff]
      %v2020 = vld [vmem:[%s1997 + $0xb0] sm:$0xff]
      %v2021 = vld [vmem:[%s1997 + $0xb8] sm:$0xff]
      %v2022 = vsel %vm210, %v1992, 0
      %v2024 = vsel %vm210, %v1994, 0
      %2026 = vmatprep.subr.mxu0 0.0
      %v2027 = vand.u32 %v2013, 4294901760
      %2028 = vmatpush1.msra.mxu0 %v2027
      %2029 = vmatprep.subr.mxu0 0.0
      %v2030 = vand.u32 %v2012, 4294901760
      %2031 = vmatpush1.msra.mxu0 %v2030
      %2032 = vmatprep.subr.mxu0 0.0
      %v2033 = vand.u32 %v2011, 4294901760
      %2034 = vmatpush1.msra.mxu0 %v2033
      %2035 = vmatprep.subr.mxu0 0.0
      %v2036 = vand.u32 %v2010, 4294901760
      %2037 = vmatpush1.msra.mxu0 %v2036
      %2038 = vmatprep.subr.mxu0 0.0
      %v2039 = vand.u32 %v2009, 4294901760
      %2040 = vmatpush1.msra.mxu0 %v2039
      %2041 = vmatprep.subr.mxu0 0.0
      %v2042 = vand.u32 %v2008, 4294901760
      %2043 = vmatpush1.msra.mxu0 %v2042
      %2044 = vmatprep.subr.mxu0 0.0
      %v2045 = vand.u32 %v2007, 4294901760
      %2046 = vmatpush1.msra.mxu0 %v2045
      %2047 = vmatprep.subr.mxu0 0.0
      %v2048 = vand.u32 %v2006, 4294901760
      %2049 = vmatpush1.msra.mxu0 %v2048
      %2050 = vmatprep.subr.mxu0 0.0
      %v2051 = vand.u32 %v2005, 4294901760
      %2052 = vmatpush1.msra.mxu0 %v2051
      %2053 = vmatprep.subr.mxu0 0.0
      %v2054 = vand.u32 %v2004, 4294901760
      %2055 = vmatpush1.msra.mxu0 %v2054
      %2056 = vmatprep.subr.mxu0 0.0
      %v2057 = vand.u32 %v2003, 4294901760
      %2058 = vmatpush1.msra.mxu0 %v2057
      %2059 = vmatprep.subr.mxu0 0.0
      %v2060 = vand.u32 %v2002, 4294901760
      %2061 = vmatpush1.msra.mxu0 %v2060
      %2062 = vmatprep.subr.mxu0 0.0
      %v2063 = vand.u32 %v2001, 4294901760
      %2064 = vmatpush1.msra.mxu0 %v2063
      %2065 = vmatprep.subr.mxu0 0.0
      %v2066 = vand.u32 %v2000, 4294901760
      %2067 = vmatpush1.msra.mxu0 %v2066
      %2068 = vmatprep.subr.mxu0 0.0
      %v2069 = vand.u32 %v1999, 4294901760
      %2070 = vmatpush1.msra.mxu0 %v2069
      %2071 = vmatprep.subr.mxu0 0.0
      %v2072 = vand.u32 %v1998, 4294901760
      %2073 = vmatpush1.msra.mxu0 %v2072
      %2074 = vmatprep.subr.mxu0 0.0
      %2075 = vmatpush2.msra.mxu0 0.0
      %2076 = vmatprep.subr.mxu0 0.0
      %2077 = vmatpush2.msra.mxu0 0.0
      %2078 = vmatprep.subr.mxu0 0.0
      %2079 = vmatpush2.msra.mxu0 0.0
      %2080 = vmatprep.subr.mxu0 0.0
      %2081 = vmatpush2.msra.mxu0 0.0
      %2082 = vmatprep.subr.mxu0 0.0
      %2083 = vmatpush2.msra.mxu0 0.0
      %2084 = vmatprep.subr.mxu0 0.0
      %2085 = vmatpush2.msra.mxu0 0.0
      %2086 = vmatprep.subr.mxu0 0.0
      %2087 = vmatpush2.msra.mxu0 0.0
      %2088 = vmatprep.subr.mxu0 0.0
      %2089 = vmatpush2.msra.mxu0 0.0
      %2090 = vmatprep.subr.mxu0 0.0
      %v2091 = vand.u32 %v2021, 4294901760
      %2092 = vmatpush2.msra.mxu0 %v2091
      %2093 = vmatprep.subr.mxu0 0.0
      %v2094 = vand.u32 %v2020, 4294901760
      %2095 = vmatpush2.msra.mxu0 %v2094
      %2096 = vmatprep.subr.mxu0 0.0
      %v2097 = vand.u32 %v2019, 4294901760
      %2098 = vmatpush2.msra.mxu0 %v2097
      %2099 = vmatprep.subr.mxu0 0.0
      %v2100 = vand.u32 %v2018, 4294901760
      %2101 = vmatpush2.msra.mxu0 %v2100
      %2102 = vmatprep.subr.mxu0 0.0
      %v2103 = vand.u32 %v2017, 4294901760
      %2104 = vmatpush2.msra.mxu0 %v2103
      %2105 = vmatprep.subr.mxu0 0.0
      %v2106 = vand.u32 %v2016, 4294901760
      %2107 = vmatpush2.msra.mxu0 %v2106
      %2108 = vmatprep.subr.mxu0 0.0
      %v2109 = vand.u32 %v2015, 4294901760
      %2110 = vmatpush2.msra.mxu0 %v2109
      %2111 = vmatprep.subr.mxu0 0.0
      %v2112 = vand.u32 %v2014, 4294901760
      %2113 = vmatpush2.msra.mxu0 %v2112
      %v2114 = vand.u32 %v2022, 4294901760
      %v2115 = vsub.f32 %v2022, %v2114
      %v2116 = vand.u32 %v2115, 4294901760
      %v2117 = vsub.f32 %v2115, %v2116
      %v2118 = vand.u32 %v2117, 4294901760
      %2119 = vmatprep.mubr.f32.mxu0 %v2118
      %v2120 = vand.u32 %v1995, 4294901760
      %v2121 = vsub.f32 %v1995, %v2120
      %v2122 = vand.u32 %v2121, 4294901760
      %v2123 = vsub.f32 %v2121, %v2122
      %v2124 = vand.u32 %v2123, 4294901760
      %2125 = vmatmul.mubr.f32.gmra.mxu0 %v2124
      %v2126 = vpop.f32.mrf.mxu0
      %v2127 = vadd.f32 0.0, %v2126
      %v2128 = vpop.f32.mrf.mxu0
      %v2129 = vand.u32 %v2024, 4294901760
      %v2130 = vsub.f32 %v2024, %v2129
      %v2131 = vand.u32 %v2130, 4294901760
      %v2132 = vsub.f32 %v2130, %v2131
      %v2133 = vand.u32 %v2132, 4294901760
      %2134 = vmatprep.mubr.f32.mxu0 %v2133
      %v2135 = vand.u32 %v1996, 4294901760
      %v2136 = vsub.f32 %v1996, %v2135
      %v2137 = vand.u32 %v2136, 4294901760
      %v2138 = vsub.f32 %v2136, %v2137
      %v2139 = vand.u32 %v2138, 4294901760
      %2140 = vmatmul.mubr.f32.gmra.mxu0 %v2139
      %v2141 = vpop.f32.mrf.mxu0
      %v2142 = vadd.f32 0.0, %v2141
      %v2143 = vpop.f32.mrf.mxu0
      %2144 = vdwg.mxu0
      %2145 = vmatprep.subr.mxu0 0.0
      %v2146 = vand.u32 %v2013, 4294901760
      %v2147 = vsub.f32 %v2013, %v2146
      %v2148 = vand.u32 %v2147, 4294901760
      %v2149 = vsub.f32 %v2147, %v2148
      %v2150 = vand.u32 %v2149, 4294901760
      %2151 = vmatpush1.msra.mxu0 %v2150
      %2152 = vmatprep.subr.mxu0 0.0
      %v2153 = vand.u32 %v2012, 4294901760
      %v2154 = vsub.f32 %v2012, %v2153
      %v2155 = vand.u32 %v2154, 4294901760
      %v2156 = vsub.f32 %v2154, %v2155
      %v2157 = vand.u32 %v2156, 4294901760
      %2158 = vmatpush1.msra.mxu0 %v2157
      %2159 = vmatprep.subr.mxu0 0.0
      %v2160 = vand.u32 %v2011, 4294901760
      %v2161 = vsub.f32 %v2011, %v2160
      %v2162 = vand.u32 %v2161, 4294901760
      %v2163 = vsub.f32 %v2161, %v2162
      %v2164 = vand.u32 %v2163, 4294901760
      %2165 = vmatpush1.msra.mxu0 %v2164
      %2166 = vmatprep.subr.mxu0 0.0
      %v2167 = vand.u32 %v2010, 4294901760
      %v2168 = vsub.f32 %v2010, %v2167
      %v2169 = vand.u32 %v2168, 4294901760
      %v2170 = vsub.f32 %v2168, %v2169
      %v2171 = vand.u32 %v2170, 4294901760
      %2172 = vmatpush1.msra.mxu0 %v2171
      %2173 = vmatprep.subr.mxu0 0.0
      %v2174 = vand.u32 %v2009, 4294901760
      %v2175 = vsub.f32 %v2009, %v2174
      %v2176 = vand.u32 %v2175, 4294901760
      %v2177 = vsub.f32 %v2175, %v2176
      %v2178 = vand.u32 %v2177, 4294901760
      %2179 = vmatpush1.msra.mxu0 %v2178
      %2180 = vmatprep.subr.mxu0 0.0
      %v2181 = vand.u32 %v2008, 4294901760
      %v2182 = vsub.f32 %v2008, %v2181
      %v2183 = vand.u32 %v2182, 4294901760
      %v2184 = vsub.f32 %v2182, %v2183
      %v2185 = vand.u32 %v2184, 4294901760
      %2186 = vmatpush1.msra.mxu0 %v2185
      %2187 = vmatprep.subr.mxu0 0.0
      %v2188 = vand.u32 %v2007, 4294901760
      %v2189 = vsub.f32 %v2007, %v2188
      %v2190 = vand.u32 %v2189, 4294901760
      %v2191 = vsub.f32 %v2189, %v2190
      %v2192 = vand.u32 %v2191, 4294901760
      %2193 = vmatpush1.msra.mxu0 %v2192
      %2194 = vmatprep.subr.mxu0 0.0
      %v2195 = vand.u32 %v2006, 4294901760
      %v2196 = vsub.f32 %v2006, %v2195
      %v2197 = vand.u32 %v2196, 4294901760
      %v2198 = vsub.f32 %v2196, %v2197
      %v2199 = vand.u32 %v2198, 4294901760
      %2200 = vmatpush1.msra.mxu0 %v2199
      %2201 = vmatprep.subr.mxu0 0.0
      %v2202 = vand.u32 %v2005, 4294901760
      %v2203 = vsub.f32 %v2005, %v2202
      %v2204 = vand.u32 %v2203, 4294901760
      %v2205 = vsub.f32 %v2203, %v2204
      %v2206 = vand.u32 %v2205, 4294901760
      %2207 = vmatpush1.msra.mxu0 %v2206
      %2208 = vmatprep.subr.mxu0 0.0
      %v2209 = vand.u32 %v2004, 4294901760
      %v2210 = vsub.f32 %v2004, %v2209
      %v2211 = vand.u32 %v2210, 4294901760
      %v2212 = vsub.f32 %v2210, %v2211
      %v2213 = vand.u32 %v2212, 4294901760
      %2214 = vmatpush1.msra.mxu0 %v2213
      %2215 = vmatprep.subr.mxu0 0.0
      %v2216 = vand.u32 %v2003, 4294901760
      %v2217 = vsub.f32 %v2003, %v2216
      %v2218 = vand.u32 %v2217, 4294901760
      %v2219 = vsub.f32 %v2217, %v2218
      %v2220 = vand.u32 %v2219, 4294901760
      %2221 = vmatpush1.msra.mxu0 %v2220
      %2222 = vmatprep.subr.mxu0 0.0
      %v2223 = vand.u32 %v2002, 4294901760
      %v2224 = vsub.f32 %v2002, %v2223
      %v2225 = vand.u32 %v2224, 4294901760
      %v2226 = vsub.f32 %v2224, %v2225
      %v2227 = vand.u32 %v2226, 4294901760
      %2228 = vmatpush1.msra.mxu0 %v2227
      %2229 = vmatprep.subr.mxu0 0.0
      %v2230 = vand.u32 %v2001, 4294901760
      %v2231 = vsub.f32 %v2001, %v2230
      %v2232 = vand.u32 %v2231, 4294901760
      %v2233 = vsub.f32 %v2231, %v2232
      %v2234 = vand.u32 %v2233, 4294901760
      %2235 = vmatpush1.msra.mxu0 %v2234
      %2236 = vmatprep.subr.mxu0 0.0
      %v2237 = vand.u32 %v2000, 4294901760
      %v2238 = vsub.f32 %v2000, %v2237
      %v2239 = vand.u32 %v2238, 4294901760
      %v2240 = vsub.f32 %v2238, %v2239
      %v2241 = vand.u32 %v2240, 4294901760
      %2242 = vmatpush1.msra.mxu0 %v2241
      %2243 = vmatprep.subr.mxu0 0.0
      %v2244 = vand.u32 %v1999, 4294901760
      %v2245 = vsub.f32 %v1999, %v2244
      %v2246 = vand.u32 %v2245, 4294901760
      %v2247 = vsub.f32 %v2245, %v2246
      %v2248 = vand.u32 %v2247, 4294901760
      %2249 = vmatpush1.msra.mxu0 %v2248
      %2250 = vmatprep.subr.mxu0 0.0
      %v2251 = vand.u32 %v1998, 4294901760
      %v2252 = vsub.f32 %v1998, %v2251
      %v2253 = vand.u32 %v2252, 4294901760
      %v2254 = vsub.f32 %v2252, %v2253
      %v2255 = vand.u32 %v2254, 4294901760
      %2256 = vmatpush1.msra.mxu0 %v2255
      %2257 = vmatprep.subr.mxu0 0.0
      %2258 = vmatpush2.msra.mxu0 0.0
      %2259 = vmatprep.subr.mxu0 0.0
      %2260 = vmatpush2.msra.mxu0 0.0
      %2261 = vmatprep.subr.mxu0 0.0
      %2262 = vmatpush2.msra.mxu0 0.0
      %2263 = vmatprep.subr.mxu0 0.0
      %2264 = vmatpush2.msra.mxu0 0.0
      %2265 = vmatprep.subr.mxu0 0.0
      %2266 = vmatpush2.msra.mxu0 0.0
      %2267 = vmatprep.subr.mxu0 0.0
      %2268 = vmatpush2.msra.mxu0 0.0
      %2269 = vmatprep.subr.mxu0 0.0
      %2270 = vmatpush2.msra.mxu0 0.0
      %2271 = vmatprep.subr.mxu0 0.0
      %2272 = vmatpush2.msra.mxu0 0.0
      %2273 = vmatprep.subr.mxu0 0.0
      %v2274 = vand.u32 %v2021, 4294901760
      %v2275 = vsub.f32 %v2021, %v2274
      %v2276 = vand.u32 %v2275, 4294901760
      %v2277 = vsub.f32 %v2275, %v2276
      %v2278 = vand.u32 %v2277, 4294901760
      %2279 = vmatpush2.msra.mxu0 %v2278
      %2280 = vmatprep.subr.mxu0 0.0
      %v2281 = vand.u32 %v2020, 4294901760
      %v2282 = vsub.f32 %v2020, %v2281
      %v2283 = vand.u32 %v2282, 4294901760
      %v2284 = vsub.f32 %v2282, %v2283
      %v2285 = vand.u32 %v2284, 4294901760
      %2286 = vmatpush2.msra.mxu0 %v2285
      %2287 = vmatprep.subr.mxu0 0.0
      %v2288 = vand.u32 %v2019, 4294901760
      %v2289 = vsub.f32 %v2019, %v2288
      %v2290 = vand.u32 %v2289, 4294901760
      %v2291 = vsub.f32 %v2289, %v2290
      %v2292 = vand.u32 %v2291, 4294901760
      %2293 = vmatpush2.msra.mxu0 %v2292
      %2294 = vmatprep.subr.mxu0 0.0
      %v2295 = vand.u32 %v2018, 4294901760
      %v2296 = vsub.f32 %v2018, %v2295
      %v2297 = vand.u32 %v2296, 4294901760
      %v2298 = vsub.f32 %v2296, %v2297
      %v2299 = vand.u32 %v2298, 4294901760
      %2300 = vmatpush2.msra.mxu0 %v2299
      %2301 = vmatprep.subr.mxu0 0.0
      %v2302 = vand.u32 %v2017, 4294901760
      %v2303 = vsub.f32 %v2017, %v2302
      %v2304 = vand.u32 %v2303, 4294901760
      %v2305 = vsub.f32 %v2303, %v2304
      %v2306 = vand.u32 %v2305, 4294901760
      %2307 = vmatpush2.msra.mxu0 %v2306
      %2308 = vmatprep.subr.mxu0 0.0
      %v2309 = vand.u32 %v2016, 4294901760
      %v2310 = vsub.f32 %v2016, %v2309
      %v2311 = vand.u32 %v2310, 4294901760
      %v2312 = vsub.f32 %v2310, %v2311
      %v2313 = vand.u32 %v2312, 4294901760
      %2314 = vmatpush2.msra.mxu0 %v2313
      %2315 = vmatprep.subr.mxu0 0.0
      %v2316 = vand.u32 %v2015, 4294901760
      %v2317 = vsub.f32 %v2015, %v2316
      %v2318 = vand.u32 %v2317, 4294901760
      %v2319 = vsub.f32 %v2317, %v2318
      %v2320 = vand.u32 %v2319, 4294901760
      %2321 = vmatpush2.msra.mxu0 %v2320
      %2322 = vmatprep.subr.mxu0 0.0
      %v2323 = vand.u32 %v2014, 4294901760
      %v2324 = vsub.f32 %v2014, %v2323
      %v2325 = vand.u32 %v2324, 4294901760
      %v2326 = vsub.f32 %v2324, %v2325
      %v2327 = vand.u32 %v2326, 4294901760
      %2328 = vmatpush2.msra.mxu0 %v2327
      %v2329 = vand.u32 %v2022, 4294901760
      %2330 = vmatprep.mubr.f32.mxu0 %v2329
      %v2331 = vand.u32 %v1995, 4294901760
      %2332 = vmatmul.mubr.f32.gmra.mxu0 %v2331
      %v2333 = vpop.f32.mrf.mxu0
      %v2334 = vadd.f32 %v2127, %v2333
      %v2335 = vpop.f32.mrf.mxu0
      %v2336 = vand.u32 %v2024, 4294901760
      %2337 = vmatprep.mubr.f32.mxu0 %v2336
      %v2338 = vand.u32 %v1996, 4294901760
      %2339 = vmatmul.mubr.f32.gmra.mxu0 %v2338
      %v2340 = vpop.f32.mrf.mxu0
      %v2341 = vadd.f32 %v2142, %v2340
      %v2342 = vpop.f32.mrf.mxu0
      %2343 = vdwg.mxu0
      %2344 = vmatprep.subr.mxu0 0.0
      %v2345 = vand.u32 %v2013, 4294901760
      %v2346 = vsub.f32 %v2013, %v2345
      %2347 = vmatpush1.msra.mxu0 %v2346
      %2348 = vmatprep.subr.mxu0 0.0
      %v2349 = vand.u32 %v2012, 4294901760
      %v2350 = vsub.f32 %v2012, %v2349
      %2351 = vmatpush1.msra.mxu0 %v2350
      %2352 = vmatprep.subr.mxu0 0.0
      %v2353 = vand.u32 %v2011, 4294901760
      %v2354 = vsub.f32 %v2011, %v2353
      %2355 = vmatpush1.msra.mxu0 %v2354
      %2356 = vmatprep.subr.mxu0 0.0
      %v2357 = vand.u32 %v2010, 4294901760
      %v2358 = vsub.f32 %v2010, %v2357
      %2359 = vmatpush1.msra.mxu0 %v2358
      %2360 = vmatprep.subr.mxu0 0.0
      %v2361 = vand.u32 %v2009, 4294901760
      %v2362 = vsub.f32 %v2009, %v2361
      %2363 = vmatpush1.msra.mxu0 %v2362
      %2364 = vmatprep.subr.mxu0 0.0
      %v2365 = vand.u32 %v2008, 4294901760
      %v2366 = vsub.f32 %v2008, %v2365
      %2367 = vmatpush1.msra.mxu0 %v2366
      %2368 = vmatprep.subr.mxu0 0.0
      %v2369 = vand.u32 %v2007, 4294901760
      %v2370 = vsub.f32 %v2007, %v2369
      %2371 = vmatpush1.msra.mxu0 %v2370
      %2372 = vmatprep.subr.mxu0 0.0
      %v2373 = vand.u32 %v2006, 4294901760
      %v2374 = vsub.f32 %v2006, %v2373
      %2375 = vmatpush1.msra.mxu0 %v2374
      %2376 = vmatprep.subr.mxu0 0.0
      %v2377 = vand.u32 %v2005, 4294901760
      %v2378 = vsub.f32 %v2005, %v2377
      %2379 = vmatpush1.msra.mxu0 %v2378
      %2380 = vmatprep.subr.mxu0 0.0
      %v2381 = vand.u32 %v2004, 4294901760
      %v2382 = vsub.f32 %v2004, %v2381
      %2383 = vmatpush1.msra.mxu0 %v2382
      %2384 = vmatprep.subr.mxu0 0.0
      %v2385 = vand.u32 %v2003, 4294901760
      %v2386 = vsub.f32 %v2003, %v2385
      %2387 = vmatpush1.msra.mxu0 %v2386
      %2388 = vmatprep.subr.mxu0 0.0
      %v2389 = vand.u32 %v2002, 4294901760
      %v2390 = vsub.f32 %v2002, %v2389
      %2391 = vmatpush1.msra.mxu0 %v2390
      %2392 = vmatprep.subr.mxu0 0.0
      %v2393 = vand.u32 %v2001, 4294901760
      %v2394 = vsub.f32 %v2001, %v2393
      %2395 = vmatpush1.msra.mxu0 %v2394
      %2396 = vmatprep.subr.mxu0 0.0
      %v2397 = vand.u32 %v2000, 4294901760
      %v2398 = vsub.f32 %v2000, %v2397
      %2399 = vmatpush1.msra.mxu0 %v2398
      %2400 = vmatprep.subr.mxu0 0.0
      %v2401 = vand.u32 %v1999, 4294901760
      %v2402 = vsub.f32 %v1999, %v2401
      %2403 = vmatpush1.msra.mxu0 %v2402
      %2404 = vmatprep.subr.mxu0 0.0
      %v2405 = vand.u32 %v1998, 4294901760
      %v2406 = vsub.f32 %v1998, %v2405
      %2407 = vmatpush1.msra.mxu0 %v2406
      %2408 = vmatprep.subr.mxu0 0.0
      %2409 = vmatpush2.msra.mxu0 0.0
      %2410 = vmatprep.subr.mxu0 0.0
      %2411 = vmatpush2.msra.mxu0 0.0
      %2412 = vmatprep.subr.mxu0 0.0
      %2413 = vmatpush2.msra.mxu0 0.0
      %2414 = vmatprep.subr.mxu0 0.0
      %2415 = vmatpush2.msra.mxu0 0.0
      %2416 = vmatprep.subr.mxu0 0.0
      %2417 = vmatpush2.msra.mxu0 0.0
      %2418 = vmatprep.subr.mxu0 0.0
      %2419 = vmatpush2.msra.mxu0 0.0
      %2420 = vmatprep.subr.mxu0 0.0
      %2421 = vmatpush2.msra.mxu0 0.0
      %2422 = vmatprep.subr.mxu0 0.0
      %2423 = vmatpush2.msra.mxu0 0.0
      %2424 = vmatprep.subr.mxu0 0.0
      %v2425 = vand.u32 %v2021, 4294901760
      %v2426 = vsub.f32 %v2021, %v2425
      %2427 = vmatpush2.msra.mxu0 %v2426
      %2428 = vmatprep.subr.mxu0 0.0
      %v2429 = vand.u32 %v2020, 4294901760
      %v2430 = vsub.f32 %v2020, %v2429
      %2431 = vmatpush2.msra.mxu0 %v2430
      %2432 = vmatprep.subr.mxu0 0.0
      %v2433 = vand.u32 %v2019, 4294901760
      %v2434 = vsub.f32 %v2019, %v2433
      %2435 = vmatpush2.msra.mxu0 %v2434
      %2436 = vmatprep.subr.mxu0 0.0
      %v2437 = vand.u32 %v2018, 4294901760
      %v2438 = vsub.f32 %v2018, %v2437
      %2439 = vmatpush2.msra.mxu0 %v2438
      %2440 = vmatprep.subr.mxu0 0.0
      %v2441 = vand.u32 %v2017, 4294901760
      %v2442 = vsub.f32 %v2017, %v2441
      %2443 = vmatpush2.msra.mxu0 %v2442
      %2444 = vmatprep.subr.mxu0 0.0
      %v2445 = vand.u32 %v2016, 4294901760
      %v2446 = vsub.f32 %v2016, %v2445
      %2447 = vmatpush2.msra.mxu0 %v2446
      %2448 = vmatprep.subr.mxu0 0.0
      %v2449 = vand.u32 %v2015, 4294901760
      %v2450 = vsub.f32 %v2015, %v2449
      %2451 = vmatpush2.msra.mxu0 %v2450
      %2452 = vmatprep.subr.mxu0 0.0
      %v2453 = vand.u32 %v2014, 4294901760
      %v2454 = vsub.f32 %v2014, %v2453
      %2455 = vmatpush2.msra.mxu0 %v2454
      %v2456 = vand.u32 %v2022, 4294901760
      %v2457 = vsub.f32 %v2022, %v2456
      %2458 = vmatprep.mubr.f32.mxu0 %v2457
      %v2459 = vand.u32 %v1995, 4294901760
      %v2460 = vsub.f32 %v1995, %v2459
      %2461 = vmatmul.mubr.f32.gmra.mxu0 %v2460
      %v2462 = vpop.f32.mrf.mxu0
      %v2463 = vadd.f32 %v2334, %v2462
      %v2464 = vpop.f32.mrf.mxu0
      %v2465 = vand.u32 %v2024, 4294901760
      %v2466 = vsub.f32 %v2024, %v2465
      %2467 = vmatprep.mubr.f32.mxu0 %v2466
      %v2468 = vand.u32 %v1996, 4294901760
      %v2469 = vsub.f32 %v1996, %v2468
      %2470 = vmatmul.mubr.f32.gmra.mxu0 %v2469
      %v2471 = vpop.f32.mrf.mxu0
      %v2472 = vadd.f32 %v2341, %v2471
      %v2473 = vpop.f32.mrf.mxu0
      %2474 = vdwg.mxu0
      %2475 = vmatprep.subr.mxu0 0.0
      %v2476 = vand.u32 %v2013, 4294901760
      %2477 = vmatpush1.msra.mxu0 %v2476
      %2478 = vmatprep.subr.mxu0 0.0
      %v2479 = vand.u32 %v2012, 4294901760
      %2480 = vmatpush1.msra.mxu0 %v2479
      %2481 = vmatprep.subr.mxu0 0.0
      %v2482 = vand.u32 %v2011, 4294901760
      %2483 = vmatpush1.msra.mxu0 %v2482
      %2484 = vmatprep.subr.mxu0 0.0
      %v2485 = vand.u32 %v2010, 4294901760
      %2486 = vmatpush1.msra.mxu0 %v2485
      %2487 = vmatprep.subr.mxu0 0.0
      %v2488 = vand.u32 %v2009, 4294901760
      %2489 = vmatpush1.msra.mxu0 %v2488
      %2490 = vmatprep.subr.mxu0 0.0
      %v2491 = vand.u32 %v2008, 4294901760
      %2492 = vmatpush1.msra.mxu0 %v2491
      %2493 = vmatprep.subr.mxu0 0.0
      %v2494 = vand.u32 %v2007, 4294901760
      %2495 = vmatpush1.msra.mxu0 %v2494
      %2496 = vmatprep.subr.mxu0 0.0
      %v2497 = vand.u32 %v2006, 4294901760
      %2498 = vmatpush1.msra.mxu0 %v2497
      %2499 = vmatprep.subr.mxu0 0.0
      %v2500 = vand.u32 %v2005, 4294901760
      %2501 = vmatpush1.msra.mxu0 %v2500
      %2502 = vmatprep.subr.mxu0 0.0
      %v2503 = vand.u32 %v2004, 4294901760
      %2504 = vmatpush1.msra.mxu0 %v2503
      %2505 = vmatprep.subr.mxu0 0.0
      %v2506 = vand.u32 %v2003, 4294901760
      %2507 = vmatpush1.msra.mxu0 %v2506
      %2508 = vmatprep.subr.mxu0 0.0
      %v2509 = vand.u32 %v2002, 4294901760
      %2510 = vmatpush1.msra.mxu0 %v2509
      %2511 = vmatprep.subr.mxu0 0.0
      %v2512 = vand.u32 %v2001, 4294901760
      %2513 = vmatpush1.msra.mxu0 %v2512
      %2514 = vmatprep.subr.mxu0 0.0
      %v2515 = vand.u32 %v2000, 4294901760
      %2516 = vmatpush1.msra.mxu0 %v2515
      %2517 = vmatprep.subr.mxu0 0.0
      %v2518 = vand.u32 %v1999, 4294901760
      %2519 = vmatpush1.msra.mxu0 %v2518
      %2520 = vmatprep.subr.mxu0 0.0
      %v2521 = vand.u32 %v1998, 4294901760
      %2522 = vmatpush1.msra.mxu0 %v2521
      %2523 = vmatprep.subr.mxu0 0.0
      %2524 = vmatpush2.msra.mxu0 0.0
      %2525 = vmatprep.subr.mxu0 0.0
      %2526 = vmatpush2.msra.mxu0 0.0
      %2527 = vmatprep.subr.mxu0 0.0
      %2528 = vmatpush2.msra.mxu0 0.0
      %2529 = vmatprep.subr.mxu0 0.0
      %2530 = vmatpush2.msra.mxu0 0.0
      %2531 = vmatprep.subr.mxu0 0.0
      %2532 = vmatpush2.msra.mxu0 0.0
      %2533 = vmatprep.subr.mxu0 0.0
      %2534 = vmatpush2.msra.mxu0 0.0
      %2535 = vmatprep.subr.mxu0 0.0
      %2536 = vmatpush2.msra.mxu0 0.0
      %2537 = vmatprep.subr.mxu0 0.0
      %2538 = vmatpush2.msra.mxu0 0.0
      %2539 = vmatprep.subr.mxu0 0.0
      %v2540 = vand.u32 %v2021, 4294901760
      %2541 = vmatpush2.msra.mxu0 %v2540
      %2542 = vmatprep.subr.mxu0 0.0
      %v2543 = vand.u32 %v2020, 4294901760
      %2544 = vmatpush2.msra.mxu0 %v2543
      %2545 = vmatprep.subr.mxu0 0.0
      %v2546 = vand.u32 %v2019, 4294901760
      %2547 = vmatpush2.msra.mxu0 %v2546
      %2548 = vmatprep.subr.mxu0 0.0
      %v2549 = vand.u32 %v2018, 4294901760
      %2550 = vmatpush2.msra.mxu0 %v2549
      %2551 = vmatprep.subr.mxu0 0.0
      %v2552 = vand.u32 %v2017, 4294901760
      %2553 = vmatpush2.msra.mxu0 %v2552
      %2554 = vmatprep.subr.mxu0 0.0
      %v2555 = vand.u32 %v2016, 4294901760
      %2556 = vmatpush2.msra.mxu0 %v2555
      %2557 = vmatprep.subr.mxu0 0.0
      %v2558 = vand.u32 %v2015, 4294901760
      %2559 = vmatpush2.msra.mxu0 %v2558
      %2560 = vmatprep.subr.mxu0 0.0
      %v2561 = vand.u32 %v2014, 4294901760
      %2562 = vmatpush2.msra.mxu0 %v2561
      %v2563 = vand.u32 %v2022, 4294901760
      %v2564 = vsub.f32 %v2022, %v2563
      %v2565 = vand.u32 %v2564, 4294901760
      %2566 = vmatprep.mubr.f32.mxu0 %v2565
      %v2567 = vand.u32 %v1995, 4294901760
      %v2568 = vsub.f32 %v1995, %v2567
      %v2569 = vand.u32 %v2568, 4294901760
      %2570 = vmatmul.mubr.f32.gmra.mxu0 %v2569
      %v2571 = vpop.f32.mrf.mxu0
      %v2572 = vadd.f32 %v2463, %v2571
      %v2573 = vpop.f32.mrf.mxu0
      %v2574 = vand.u32 %v2024, 4294901760
      %v2575 = vsub.f32 %v2024, %v2574
      %v2576 = vand.u32 %v2575, 4294901760
      %2577 = vmatprep.mubr.f32.mxu0 %v2576
      %v2578 = vand.u32 %v1996, 4294901760
      %v2579 = vsub.f32 %v1996, %v2578
      %v2580 = vand.u32 %v2579, 4294901760
      %2581 = vmatmul.mubr.f32.gmra.mxu0 %v2580
      %v2582 = vpop.f32.mrf.mxu0
      %v2583 = vadd.f32 %v2472, %v2582
      %v2584 = vpop.f32.mrf.mxu0
      %2585 = vdwg.mxu0
      %2586 = vmatprep.subr.mxu0 0.0
      %v2587 = vand.u32 %v2013, 4294901760
      %v2588 = vsub.f32 %v2013, %v2587
      %v2589 = vand.u32 %v2588, 4294901760
      %2590 = vmatpush1.msra.mxu0 %v2589
      %2591 = vmatprep.subr.mxu0 0.0
      %v2592 = vand.u32 %v2012, 4294901760
      %v2593 = vsub.f32 %v2012, %v2592
      %v2594 = vand.u32 %v2593, 4294901760
      %2595 = vmatpush1.msra.mxu0 %v2594
      %2596 = vmatprep.subr.mxu0 0.0
      %v2597 = vand.u32 %v2011, 4294901760
      %v2598 = vsub.f32 %v2011, %v2597
      %v2599 = vand.u32 %v2598, 4294901760
      %2600 = vmatpush1.msra.mxu0 %v2599
      %2601 = vmatprep.subr.mxu0 0.0
      %v2602 = vand.u32 %v2010, 4294901760
      %v2603 = vsub.f32 %v2010, %v2602
      %v2604 = vand.u32 %v2603, 4294901760
      %2605 = vmatpush1.msra.mxu0 %v2604
      %2606 = vmatprep.subr.mxu0 0.0
      %v2607 = vand.u32 %v2009, 4294901760
      %v2608 = vsub.f32 %v2009, %v2607
      %v2609 = vand.u32 %v2608, 4294901760
      %2610 = vmatpush1.msra.mxu0 %v2609
      %2611 = vmatprep.subr.mxu0 0.0
      %v2612 = vand.u32 %v2008, 4294901760
      %v2613 = vsub.f32 %v2008, %v2612
      %v2614 = vand.u32 %v2613, 4294901760
      %2615 = vmatpush1.msra.mxu0 %v2614
      %2616 = vmatprep.subr.mxu0 0.0
      %v2617 = vand.u32 %v2007, 4294901760
      %v2618 = vsub.f32 %v2007, %v2617
      %v2619 = vand.u32 %v2618, 4294901760
      %2620 = vmatpush1.msra.mxu0 %v2619
      %2621 = vmatprep.subr.mxu0 0.0
      %v2622 = vand.u32 %v2006, 4294901760
      %v2623 = vsub.f32 %v2006, %v2622
      %v2624 = vand.u32 %v2623, 4294901760
      %2625 = vmatpush1.msra.mxu0 %v2624
      %2626 = vmatprep.subr.mxu0 0.0
      %v2627 = vand.u32 %v2005, 4294901760
      %v2628 = vsub.f32 %v2005, %v2627
      %v2629 = vand.u32 %v2628, 4294901760
      %2630 = vmatpush1.msra.mxu0 %v2629
      %2631 = vmatprep.subr.mxu0 0.0
      %v2632 = vand.u32 %v2004, 4294901760
      %v2633 = vsub.f32 %v2004, %v2632
      %v2634 = vand.u32 %v2633, 4294901760
      %2635 = vmatpush1.msra.mxu0 %v2634
      %2636 = vmatprep.subr.mxu0 0.0
      %v2637 = vand.u32 %v2003, 4294901760
      %v2638 = vsub.f32 %v2003, %v2637
      %v2639 = vand.u32 %v2638, 4294901760
      %2640 = vmatpush1.msra.mxu0 %v2639
      %2641 = vmatprep.subr.mxu0 0.0
      %v2642 = vand.u32 %v2002, 4294901760
      %v2643 = vsub.f32 %v2002, %v2642
      %v2644 = vand.u32 %v2643, 4294901760
      %2645 = vmatpush1.msra.mxu0 %v2644
      %2646 = vmatprep.subr.mxu0 0.0
      %v2647 = vand.u32 %v2001, 4294901760
      %v2648 = vsub.f32 %v2001, %v2647
      %v2649 = vand.u32 %v2648, 4294901760
      %2650 = vmatpush1.msra.mxu0 %v2649
      %2651 = vmatprep.subr.mxu0 0.0
      %v2652 = vand.u32 %v2000, 4294901760
      %v2653 = vsub.f32 %v2000, %v2652
      %v2654 = vand.u32 %v2653, 4294901760
      %2655 = vmatpush1.msra.mxu0 %v2654
      %2656 = vmatprep.subr.mxu0 0.0
      %v2657 = vand.u32 %v1999, 4294901760
      %v2658 = vsub.f32 %v1999, %v2657
      %v2659 = vand.u32 %v2658, 4294901760
      %2660 = vmatpush1.msra.mxu0 %v2659
      %2661 = vmatprep.subr.mxu0 0.0
      %v2662 = vand.u32 %v1998, 4294901760
      %v2663 = vsub.f32 %v1998, %v2662
      %v2664 = vand.u32 %v2663, 4294901760
      %2665 = vmatpush1.msra.mxu0 %v2664
      %2666 = vmatprep.subr.mxu0 0.0
      %2667 = vmatpush2.msra.mxu0 0.0
      %2668 = vmatprep.subr.mxu0 0.0
      %2669 = vmatpush2.msra.mxu0 0.0
      %2670 = vmatprep.subr.mxu0 0.0
      %2671 = vmatpush2.msra.mxu0 0.0
      %2672 = vmatprep.subr.mxu0 0.0
      %2673 = vmatpush2.msra.mxu0 0.0
      %2674 = vmatprep.subr.mxu0 0.0
      %2675 = vmatpush2.msra.mxu0 0.0
      %2676 = vmatprep.subr.mxu0 0.0
      %2677 = vmatpush2.msra.mxu0 0.0
      %2678 = vmatprep.subr.mxu0 0.0
      %2679 = vmatpush2.msra.mxu0 0.0
      %2680 = vmatprep.subr.mxu0 0.0
      %2681 = vmatpush2.msra.mxu0 0.0
      %2682 = vmatprep.subr.mxu0 0.0
      %v2683 = vand.u32 %v2021, 4294901760
      %v2684 = vsub.f32 %v2021, %v2683
      %v2685 = vand.u32 %v2684, 4294901760
      %2686 = vmatpush2.msra.mxu0 %v2685
      %2687 = vmatprep.subr.mxu0 0.0
      %v2688 = vand.u32 %v2020, 4294901760
      %v2689 = vsub.f32 %v2020, %v2688
      %v2690 = vand.u32 %v2689, 4294901760
      %2691 = vmatpush2.msra.mxu0 %v2690
      %2692 = vmatprep.subr.mxu0 0.0
      %v2693 = vand.u32 %v2019, 4294901760
      %v2694 = vsub.f32 %v2019, %v2693
      %v2695 = vand.u32 %v2694, 4294901760
      %2696 = vmatpush2.msra.mxu0 %v2695
      %2697 = vmatprep.subr.mxu0 0.0
      %v2698 = vand.u32 %v2018, 4294901760
      %v2699 = vsub.f32 %v2018, %v2698
      %v2700 = vand.u32 %v2699, 4294901760
      %2701 = vmatpush2.msra.mxu0 %v2700
      %2702 = vmatprep.subr.mxu0 0.0
      %v2703 = vand.u32 %v2017, 4294901760
      %v2704 = vsub.f32 %v2017, %v2703
      %v2705 = vand.u32 %v2704, 4294901760
      %2706 = vmatpush2.msra.mxu0 %v2705
      %2707 = vmatprep.subr.mxu0 0.0
      %v2708 = vand.u32 %v2016, 4294901760
      %v2709 = vsub.f32 %v2016, %v2708
      %v2710 = vand.u32 %v2709, 4294901760
      %2711 = vmatpush2.msra.mxu0 %v2710
      %2712 = vmatprep.subr.mxu0 0.0
      %v2713 = vand.u32 %v2015, 4294901760
      %v2714 = vsub.f32 %v2015, %v2713
      %v2715 = vand.u32 %v2714, 4294901760
      %2716 = vmatpush2.msra.mxu0 %v2715
      %2717 = vmatprep.subr.mxu0 0.0
      %v2718 = vand.u32 %v2014, 4294901760
      %v2719 = vsub.f32 %v2014, %v2718
      %v2720 = vand.u32 %v2719, 4294901760
      %2721 = vmatpush2.msra.mxu0 %v2720
      %v2722 = vand.u32 %v2022, 4294901760
      %2723 = vmatprep.mubr.f32.mxu0 %v2722
      %v2724 = vand.u32 %v1995, 4294901760
      %2725 = vmatmul.mubr.f32.gmra.mxu0 %v2724
      %v2726 = vpop.f32.mrf.mxu0
      %v2727 = vadd.f32 %v2572, %v2726
      %v2728 = vpop.f32.mrf.mxu0
      %v2729 = vand.u32 %v2024, 4294901760
      %2730 = vmatprep.mubr.f32.mxu0 %v2729
      %v2731 = vand.u32 %v1996, 4294901760
      %2732 = vmatmul.mubr.f32.gmra.mxu0 %v2731
      %v2733 = vpop.f32.mrf.mxu0
      %v2734 = vadd.f32 %v2583, %v2733
      %v2735 = vpop.f32.mrf.mxu0
      %2736 = vdwg.mxu0
      %2737 = vmatprep.subr.mxu0 0.0
      %v2738 = vand.u32 %v2013, 4294901760
      %2739 = vmatpush1.msra.mxu0 %v2738
      %2740 = vmatprep.subr.mxu0 0.0
      %v2741 = vand.u32 %v2012, 4294901760
      %2742 = vmatpush1.msra.mxu0 %v2741
      %2743 = vmatprep.subr.mxu0 0.0
      %v2744 = vand.u32 %v2011, 4294901760
      %2745 = vmatpush1.msra.mxu0 %v2744
      %2746 = vmatprep.subr.mxu0 0.0
      %v2747 = vand.u32 %v2010, 4294901760
      %2748 = vmatpush1.msra.mxu0 %v2747
      %2749 = vmatprep.subr.mxu0 0.0
      %v2750 = vand.u32 %v2009, 4294901760
      %2751 = vmatpush1.msra.mxu0 %v2750
      %2752 = vmatprep.subr.mxu0 0.0
      %v2753 = vand.u32 %v2008, 4294901760
      %2754 = vmatpush1.msra.mxu0 %v2753
      %2755 = vmatprep.subr.mxu0 0.0
      %v2756 = vand.u32 %v2007, 4294901760
      %2757 = vmatpush1.msra.mxu0 %v2756
      %2758 = vmatprep.subr.mxu0 0.0
      %v2759 = vand.u32 %v2006, 4294901760
      %2760 = vmatpush1.msra.mxu0 %v2759
      %2761 = vmatprep.subr.mxu0 0.0
      %v2762 = vand.u32 %v2005, 4294901760
      %2763 = vmatpush1.msra.mxu0 %v2762
      %2764 = vmatprep.subr.mxu0 0.0
      %v2765 = vand.u32 %v2004, 4294901760
      %2766 = vmatpush1.msra.mxu0 %v2765
      %2767 = vmatprep.subr.mxu0 0.0
      %v2768 = vand.u32 %v2003, 4294901760
      %2769 = vmatpush1.msra.mxu0 %v2768
      %2770 = vmatprep.subr.mxu0 0.0
      %v2771 = vand.u32 %v2002, 4294901760
      %2772 = vmatpush1.msra.mxu0 %v2771
      %2773 = vmatprep.subr.mxu0 0.0
      %v2774 = vand.u32 %v2001, 4294901760
      %2775 = vmatpush1.msra.mxu0 %v2774
      %2776 = vmatprep.subr.mxu0 0.0
      %v2777 = vand.u32 %v2000, 4294901760
      %2778 = vmatpush1.msra.mxu0 %v2777
      %2779 = vmatprep.subr.mxu0 0.0
      %v2780 = vand.u32 %v1999, 4294901760
      %2781 = vmatpush1.msra.mxu0 %v2780
      %2782 = vmatprep.subr.mxu0 0.0
      %v2783 = vand.u32 %v1998, 4294901760
      %2784 = vmatpush1.msra.mxu0 %v2783
      %2785 = vmatprep.subr.mxu0 0.0
      %2786 = vmatpush2.msra.mxu0 0.0
      %2787 = vmatprep.subr.mxu0 0.0
      %2788 = vmatpush2.msra.mxu0 0.0
      %2789 = vmatprep.subr.mxu0 0.0
      %2790 = vmatpush2.msra.mxu0 0.0
      %2791 = vmatprep.subr.mxu0 0.0
      %2792 = vmatpush2.msra.mxu0 0.0
      %2793 = vmatprep.subr.mxu0 0.0
      %2794 = vmatpush2.msra.mxu0 0.0
      %2795 = vmatprep.subr.mxu0 0.0
      %2796 = vmatpush2.msra.mxu0 0.0
      %2797 = vmatprep.subr.mxu0 0.0
      %2798 = vmatpush2.msra.mxu0 0.0
      %2799 = vmatprep.subr.mxu0 0.0
      %2800 = vmatpush2.msra.mxu0 0.0
      %2801 = vmatprep.subr.mxu0 0.0
      %v2802 = vand.u32 %v2021, 4294901760
      %2803 = vmatpush2.msra.mxu0 %v2802
      %2804 = vmatprep.subr.mxu0 0.0
      %v2805 = vand.u32 %v2020, 4294901760
      %2806 = vmatpush2.msra.mxu0 %v2805
      %2807 = vmatprep.subr.mxu0 0.0
      %v2808 = vand.u32 %v2019, 4294901760
      %2809 = vmatpush2.msra.mxu0 %v2808
      %2810 = vmatprep.subr.mxu0 0.0
      %v2811 = vand.u32 %v2018, 4294901760
      %2812 = vmatpush2.msra.mxu0 %v2811
      %2813 = vmatprep.subr.mxu0 0.0
      %v2814 = vand.u32 %v2017, 4294901760
      %2815 = vmatpush2.msra.mxu0 %v2814
      %2816 = vmatprep.subr.mxu0 0.0
      %v2817 = vand.u32 %v2016, 4294901760
      %2818 = vmatpush2.msra.mxu0 %v2817
      %2819 = vmatprep.subr.mxu0 0.0
      %v2820 = vand.u32 %v2015, 4294901760
      %2821 = vmatpush2.msra.mxu0 %v2820
      %2822 = vmatprep.subr.mxu0 0.0
      %v2823 = vand.u32 %v2014, 4294901760
      %2824 = vmatpush2.msra.mxu0 %v2823
      %v2825 = vand.u32 %v2022, 4294901760
      %2826 = vmatprep.mubr.f32.mxu0 %v2825
      %v2827 = vand.u32 %v1995, 4294901760
      %2828 = vmatmul.mubr.f32.gmra.mxu0 %v2827
      %v2829 = vpop.f32.mrf.mxu0
      %v2830 = vadd.f32 %v2727, %v2829
      %v2831 = vpop.f32.mrf.mxu0
      %v2832 = vand.u32 %v2024, 4294901760
      %2833 = vmatprep.mubr.f32.mxu0 %v2832
      %v2834 = vand.u32 %v1996, 4294901760
      %2835 = vmatmul.mubr.f32.gmra.mxu0 %v2834
      %v2836 = vpop.f32.mrf.mxu0
      %v2837 = vadd.f32 %v2734, %v2836
      %v2838 = vpop.f32.mrf.mxu0
      %2839 = vdwg.mxu0
      %v2840 = vadd.f32 %v1064, %v2830
      %v2841 = vadd.f32 %v1065, %v2837
      %s2842 = scalar_lea.vmem %s2, 2
      %v2843 = vld [vmem:[%s2842] sm:$0x1]
      %v2845 = vlaneseq
      %v2846 = vshrl.u32 %v2845, 7
      %v2847 = vsub.s32 0, %v2846
      %v2848 = vrot.slane %v2843, %v2847
      %v2850 = vadd.f32 %v2840, %v2848
      %v2851 = vadd.f32 %v2841, %v2848
      %v2854 = vrot.slane %v2850, 7
      %v2855 = vrot.slane %v2851, 7
      %v2856 = vsel %vm175, %v2854, %v2855
      %v2860 = vsel %vm175, 0.0, %v2854
      %v2861 = vsel %vm175, %v2855, 0.0
      %v2864 = vrot.slane %v2860, 1
      %v2865 = vrot.slane %v2856, 1
      %v2866 = vsel %vm192, %v2864, %v2865
      %v2867 = vrot.slane %v2861, 1
      %v2868 = vsel %vm192, %v2865, %v2867
      %2869 = vrot.lane.b32.xlu0 %v2866, 64
      %v2870 = vpop.permute.xlu0 %2869
      %2871 = vrot.lane.b32.xlu0 %v2868, 64
      %v2872 = vpop.permute.xlu0 %2871
      %v2875 = vrot.slane %v2860, 2
      %v2876 = vrot.slane %v2856, 2
      %v2877 = vsel %vm204, %v2875, %v2876
      %v2878 = vrot.slane %v2861, 2
      %v2879 = vsel %vm204, %v2876, %v2878
      %v2880 = vsel %vm210, %v2860, %v2870
      %v2881 = vsel %vm210, %v2856, %v2872
      %s2882 = scalar_lea.vmem %s1, 576
      %v2883 = vld [vmem:[%s2882] sm:$0xff]
      %v2884 = vld [vmem:[%s2882 + $0x8] sm:$0xff]
      %v2885 = vld [vmem:[%s2882 + $0x10] sm:$0xff]
      %v2886 = vld [vmem:[%s2882 + $0x18] sm:$0xff]
      %v2887 = vld [vmem:[%s2882 + $0x20] sm:$0xff]
      %v2888 = vld [vmem:[%s2882 + $0x28] sm:$0xff]
      %v2889 = vld [vmem:[%s2882 + $0x30] sm:$0xff]
      %v2890 = vld [vmem:[%s2882 + $0x38] sm:$0xff]
      %v2891 = vld [vmem:[%s2882 + $0x40] sm:$0xff]
      %v2892 = vld [vmem:[%s2882 + $0x48] sm:$0xff]
      %v2893 = vld [vmem:[%s2882 + $0x50] sm:$0xff]
      %v2894 = vld [vmem:[%s2882 + $0x58] sm:$0xff]
      %v2895 = vld [vmem:[%s2882 + $0x60] sm:$0xff]
      %v2896 = vld [vmem:[%s2882 + $0x68] sm:$0xff]
      %v2897 = vld [vmem:[%s2882 + $0x70] sm:$0xff]
      %v2898 = vld [vmem:[%s2882 + $0x78] sm:$0xff]
      %v2899 = vld [vmem:[%s2882 + $0x80] sm:$0xff]
      %v2900 = vld [vmem:[%s2882 + $0x88] sm:$0xff]
      %v2901 = vld [vmem:[%s2882 + $0x90] sm:$0xff]
      %v2902 = vld [vmem:[%s2882 + $0x98] sm:$0xff]
      %v2903 = vld [vmem:[%s2882 + $0xa0] sm:$0xff]
      %v2904 = vld [vmem:[%s2882 + $0xa8] sm:$0xff]
      %v2905 = vld [vmem:[%s2882 + $0xb0] sm:$0xff]
      %v2906 = vld [vmem:[%s2882 + $0xb8] sm:$0xff]
      %v2907 = vsel %vm210, %v2877, 0
      %v2909 = vsel %vm210, %v2879, 0
      %2911 = vmatprep.subr.mxu0 0.0
      %v2912 = vand.u32 %v2898, 4294901760
      %2913 = vmatpush1.msra.mxu0 %v2912
      %2914 = vmatprep.subr.mxu0 0.0
      %v2915 = vand.u32 %v2897, 4294901760
      %2916 = vmatpush1.msra.mxu0 %v2915
      %2917 = vmatprep.subr.mxu0 0.0
      %v2918 = vand.u32 %v2896, 4294901760
      %2919 = vmatpush1.msra.mxu0 %v2918
      %2920 = vmatprep.subr.mxu0 0.0
      %v2921 = vand.u32 %v2895, 4294901760
      %2922 = vmatpush1.msra.mxu0 %v2921
      %2923 = vmatprep.subr.mxu0 0.0
      %v2924 = vand.u32 %v2894, 4294901760
      %2925 = vmatpush1.msra.mxu0 %v2924
      %2926 = vmatprep.subr.mxu0 0.0
      %v2927 = vand.u32 %v2893, 4294901760
      %2928 = vmatpush1.msra.mxu0 %v2927
      %2929 = vmatprep.subr.mxu0 0.0
      %v2930 = vand.u32 %v2892, 4294901760
      %2931 = vmatpush1.msra.mxu0 %v2930
      %2932 = vmatprep.subr.mxu0 0.0
      %v2933 = vand.u32 %v2891, 4294901760
      %2934 = vmatpush1.msra.mxu0 %v2933
      %2935 = vmatprep.subr.mxu0 0.0
      %v2936 = vand.u32 %v2890, 4294901760
      %2937 = vmatpush1.msra.mxu0 %v2936
      %2938 = vmatprep.subr.mxu0 0.0
      %v2939 = vand.u32 %v2889, 4294901760
      %2940 = vmatpush1.msra.mxu0 %v2939
      %2941 = vmatprep.subr.mxu0 0.0
      %v2942 = vand.u32 %v2888, 4294901760
      %2943 = vmatpush1.msra.mxu0 %v2942
      %2944 = vmatprep.subr.mxu0 0.0
      %v2945 = vand.u32 %v2887, 4294901760
      %2946 = vmatpush1.msra.mxu0 %v2945
      %2947 = vmatprep.subr.mxu0 0.0
      %v2948 = vand.u32 %v2886, 4294901760
      %2949 = vmatpush1.msra.mxu0 %v2948
      %2950 = vmatprep.subr.mxu0 0.0
      %v2951 = vand.u32 %v2885, 4294901760
      %2952 = vmatpush1.msra.mxu0 %v2951
      %2953 = vmatprep.subr.mxu0 0.0
      %v2954 = vand.u32 %v2884, 4294901760
      %2955 = vmatpush1.msra.mxu0 %v2954
      %2956 = vmatprep.subr.mxu0 0.0
      %v2957 = vand.u32 %v2883, 4294901760
      %2958 = vmatpush1.msra.mxu0 %v2957
      %2959 = vmatprep.subr.mxu0 0.0
      %2960 = vmatpush2.msra.mxu0 0.0
      %2961 = vmatprep.subr.mxu0 0.0
      %2962 = vmatpush2.msra.mxu0 0.0
      %2963 = vmatprep.subr.mxu0 0.0
      %2964 = vmatpush2.msra.mxu0 0.0
      %2965 = vmatprep.subr.mxu0 0.0
      %2966 = vmatpush2.msra.mxu0 0.0
      %2967 = vmatprep.subr.mxu0 0.0
      %2968 = vmatpush2.msra.mxu0 0.0
      %2969 = vmatprep.subr.mxu0 0.0
      %2970 = vmatpush2.msra.mxu0 0.0
      %2971 = vmatprep.subr.mxu0 0.0
      %2972 = vmatpush2.msra.mxu0 0.0
      %2973 = vmatprep.subr.mxu0 0.0
      %2974 = vmatpush2.msra.mxu0 0.0
      %2975 = vmatprep.subr.mxu0 0.0
      %v2976 = vand.u32 %v2906, 4294901760
      %2977 = vmatpush2.msra.mxu0 %v2976
      %2978 = vmatprep.subr.mxu0 0.0
      %v2979 = vand.u32 %v2905, 4294901760
      %2980 = vmatpush2.msra.mxu0 %v2979
      %2981 = vmatprep.subr.mxu0 0.0
      %v2982 = vand.u32 %v2904, 4294901760
      %2983 = vmatpush2.msra.mxu0 %v2982
      %2984 = vmatprep.subr.mxu0 0.0
      %v2985 = vand.u32 %v2903, 4294901760
      %2986 = vmatpush2.msra.mxu0 %v2985
      %2987 = vmatprep.subr.mxu0 0.0
      %v2988 = vand.u32 %v2902, 4294901760
      %2989 = vmatpush2.msra.mxu0 %v2988
      %2990 = vmatprep.subr.mxu0 0.0
      %v2991 = vand.u32 %v2901, 4294901760
      %2992 = vmatpush2.msra.mxu0 %v2991
      %2993 = vmatprep.subr.mxu0 0.0
      %v2994 = vand.u32 %v2900, 4294901760
      %2995 = vmatpush2.msra.mxu0 %v2994
      %2996 = vmatprep.subr.mxu0 0.0
      %v2997 = vand.u32 %v2899, 4294901760
      %2998 = vmatpush2.msra.mxu0 %v2997
      %v2999 = vand.u32 %v2907, 4294901760
      %v3000 = vsub.f32 %v2907, %v2999
      %v3001 = vand.u32 %v3000, 4294901760
      %v3002 = vsub.f32 %v3000, %v3001
      %v3003 = vand.u32 %v3002, 4294901760
      %3004 = vmatprep.mubr.f32.mxu0 %v3003
      %v3005 = vand.u32 %v2880, 4294901760
      %v3006 = vsub.f32 %v2880, %v3005
      %v3007 = vand.u32 %v3006, 4294901760
      %v3008 = vsub.f32 %v3006, %v3007
      %v3009 = vand.u32 %v3008, 4294901760
      %3010 = vmatmul.mubr.f32.gmra.mxu0 %v3009
      %v3011 = vpop.f32.mrf.mxu0
      %v3012 = vadd.f32 0.0, %v3011
      %v3013 = vpop.f32.mrf.mxu0
      %v3014 = vand.u32 %v2909, 4294901760
      %v3015 = vsub.f32 %v2909, %v3014
      %v3016 = vand.u32 %v3015, 4294901760
      %v3017 = vsub.f32 %v3015, %v3016
      %v3018 = vand.u32 %v3017, 4294901760
      %3019 = vmatprep.mubr.f32.mxu0 %v3018
      %v3020 = vand.u32 %v2881, 4294901760
      %v3021 = vsub.f32 %v2881, %v3020
      %v3022 = vand.u32 %v3021, 4294901760
      %v3023 = vsub.f32 %v3021, %v3022
      %v3024 = vand.u32 %v3023, 4294901760
      %3025 = vmatmul.mubr.f32.gmra.mxu0 %v3024
      %v3026 = vpop.f32.mrf.mxu0
      %v3027 = vadd.f32 0.0, %v3026
      %v3028 = vpop.f32.mrf.mxu0
      %3029 = vdwg.mxu0
      %3030 = vmatprep.subr.mxu0 0.0
      %v3031 = vand.u32 %v2898, 4294901760
      %v3032 = vsub.f32 %v2898, %v3031
      %v3033 = vand.u32 %v3032, 4294901760
      %v3034 = vsub.f32 %v3032, %v3033
      %v3035 = vand.u32 %v3034, 4294901760
      %3036 = vmatpush1.msra.mxu0 %v3035
      %3037 = vmatprep.subr.mxu0 0.0
      %v3038 = vand.u32 %v2897, 4294901760
      %v3039 = vsub.f32 %v2897, %v3038
      %v3040 = vand.u32 %v3039, 4294901760
      %v3041 = vsub.f32 %v3039, %v3040
      %v3042 = vand.u32 %v3041, 4294901760
      %3043 = vmatpush1.msra.mxu0 %v3042
      %3044 = vmatprep.subr.mxu0 0.0
      %v3045 = vand.u32 %v2896, 4294901760
      %v3046 = vsub.f32 %v2896, %v3045
      %v3047 = vand.u32 %v3046, 4294901760
      %v3048 = vsub.f32 %v3046, %v3047
      %v3049 = vand.u32 %v3048, 4294901760
      %3050 = vmatpush1.msra.mxu0 %v3049
      %3051 = vmatprep.subr.mxu0 0.0
      %v3052 = vand.u32 %v2895, 4294901760
      %v3053 = vsub.f32 %v2895, %v3052
      %v3054 = vand.u32 %v3053, 4294901760
      %v3055 = vsub.f32 %v3053, %v3054
      %v3056 = vand.u32 %v3055, 4294901760
      %3057 = vmatpush1.msra.mxu0 %v3056
      %3058 = vmatprep.subr.mxu0 0.0
      %v3059 = vand.u32 %v2894, 4294901760
      %v3060 = vsub.f32 %v2894, %v3059
      %v3061 = vand.u32 %v3060, 4294901760
      %v3062 = vsub.f32 %v3060, %v3061
      %v3063 = vand.u32 %v3062, 4294901760
      %3064 = vmatpush1.msra.mxu0 %v3063
      %3065 = vmatprep.subr.mxu0 0.0
      %v3066 = vand.u32 %v2893, 4294901760
      %v3067 = vsub.f32 %v2893, %v3066
      %v3068 = vand.u32 %v3067, 4294901760
      %v3069 = vsub.f32 %v3067, %v3068
      %v3070 = vand.u32 %v3069, 4294901760
      %3071 = vmatpush1.msra.mxu0 %v3070
      %3072 = vmatprep.subr.mxu0 0.0
      %v3073 = vand.u32 %v2892, 4294901760
      %v3074 = vsub.f32 %v2892, %v3073
      %v3075 = vand.u32 %v3074, 4294901760
      %v3076 = vsub.f32 %v3074, %v3075
      %v3077 = vand.u32 %v3076, 4294901760
      %3078 = vmatpush1.msra.mxu0 %v3077
      %3079 = vmatprep.subr.mxu0 0.0
      %v3080 = vand.u32 %v2891, 4294901760
      %v3081 = vsub.f32 %v2891, %v3080
      %v3082 = vand.u32 %v3081, 4294901760
      %v3083 = vsub.f32 %v3081, %v3082
      %v3084 = vand.u32 %v3083, 4294901760
      %3085 = vmatpush1.msra.mxu0 %v3084
      %3086 = vmatprep.subr.mxu0 0.0
      %v3087 = vand.u32 %v2890, 4294901760
      %v3088 = vsub.f32 %v2890, %v3087
      %v3089 = vand.u32 %v3088, 4294901760
      %v3090 = vsub.f32 %v3088, %v3089
      %v3091 = vand.u32 %v3090, 4294901760
      %3092 = vmatpush1.msra.mxu0 %v3091
      %3093 = vmatprep.subr.mxu0 0.0
      %v3094 = vand.u32 %v2889, 4294901760
      %v3095 = vsub.f32 %v2889, %v3094
      %v3096 = vand.u32 %v3095, 4294901760
      %v3097 = vsub.f32 %v3095, %v3096
      %v3098 = vand.u32 %v3097, 4294901760
      %3099 = vmatpush1.msra.mxu0 %v3098
      %3100 = vmatprep.subr.mxu0 0.0
      %v3101 = vand.u32 %v2888, 4294901760
      %v3102 = vsub.f32 %v2888, %v3101
      %v3103 = vand.u32 %v3102, 4294901760
      %v3104 = vsub.f32 %v3102, %v3103
      %v3105 = vand.u32 %v3104, 4294901760
      %3106 = vmatpush1.msra.mxu0 %v3105
      %3107 = vmatprep.subr.mxu0 0.0
      %v3108 = vand.u32 %v2887, 4294901760
      %v3109 = vsub.f32 %v2887, %v3108
      %v3110 = vand.u32 %v3109, 4294901760
      %v3111 = vsub.f32 %v3109, %v3110
      %v3112 = vand.u32 %v3111, 4294901760
      %3113 = vmatpush1.msra.mxu0 %v3112
      %3114 = vmatprep.subr.mxu0 0.0
      %v3115 = vand.u32 %v2886, 4294901760
      %v3116 = vsub.f32 %v2886, %v3115
      %v3117 = vand.u32 %v3116, 4294901760
      %v3118 = vsub.f32 %v3116, %v3117
      %v3119 = vand.u32 %v3118, 4294901760
      %3120 = vmatpush1.msra.mxu0 %v3119
      %3121 = vmatprep.subr.mxu0 0.0
      %v3122 = vand.u32 %v2885, 4294901760
      %v3123 = vsub.f32 %v2885, %v3122
      %v3124 = vand.u32 %v3123, 4294901760
      %v3125 = vsub.f32 %v3123, %v3124
      %v3126 = vand.u32 %v3125, 4294901760
      %3127 = vmatpush1.msra.mxu0 %v3126
      %3128 = vmatprep.subr.mxu0 0.0
      %v3129 = vand.u32 %v2884, 4294901760
      %v3130 = vsub.f32 %v2884, %v3129
      %v3131 = vand.u32 %v3130, 4294901760
      %v3132 = vsub.f32 %v3130, %v3131
      %v3133 = vand.u32 %v3132, 4294901760
      %3134 = vmatpush1.msra.mxu0 %v3133
      %3135 = vmatprep.subr.mxu0 0.0
      %v3136 = vand.u32 %v2883, 4294901760
      %v3137 = vsub.f32 %v2883, %v3136
      %v3138 = vand.u32 %v3137, 4294901760
      %v3139 = vsub.f32 %v3137, %v3138
      %v3140 = vand.u32 %v3139, 4294901760
      %3141 = vmatpush1.msra.mxu0 %v3140
      %3142 = vmatprep.subr.mxu0 0.0
      %3143 = vmatpush2.msra.mxu0 0.0
      %3144 = vmatprep.subr.mxu0 0.0
      %3145 = vmatpush2.msra.mxu0 0.0
      %3146 = vmatprep.subr.mxu0 0.0
      %3147 = vmatpush2.msra.mxu0 0.0
      %3148 = vmatprep.subr.mxu0 0.0
      %3149 = vmatpush2.msra.mxu0 0.0
      %3150 = vmatprep.subr.mxu0 0.0
      %3151 = vmatpush2.msra.mxu0 0.0
      %3152 = vmatprep.subr.mxu0 0.0
      %3153 = vmatpush2.msra.mxu0 0.0
      %3154 = vmatprep.subr.mxu0 0.0
      %3155 = vmatpush2.msra.mxu0 0.0
      %3156 = vmatprep.subr.mxu0 0.0
      %3157 = vmatpush2.msra.mxu0 0.0
      %3158 = vmatprep.subr.mxu0 0.0
      %v3159 = vand.u32 %v2906, 4294901760
      %v3160 = vsub.f32 %v2906, %v3159
      %v3161 = vand.u32 %v3160, 4294901760
      %v3162 = vsub.f32 %v3160, %v3161
      %v3163 = vand.u32 %v3162, 4294901760
      %3164 = vmatpush2.msra.mxu0 %v3163
      %3165 = vmatprep.subr.mxu0 0.0
      %v3166 = vand.u32 %v2905, 4294901760
      %v3167 = vsub.f32 %v2905, %v3166
      %v3168 = vand.u32 %v3167, 4294901760
      %v3169 = vsub.f32 %v3167, %v3168
      %v3170 = vand.u32 %v3169, 4294901760
      %3171 = vmatpush2.msra.mxu0 %v3170
      %3172 = vmatprep.subr.mxu0 0.0
      %v3173 = vand.u32 %v2904, 4294901760
      %v3174 = vsub.f32 %v2904, %v3173
      %v3175 = vand.u32 %v3174, 4294901760
      %v3176 = vsub.f32 %v3174, %v3175
      %v3177 = vand.u32 %v3176, 4294901760
      %3178 = vmatpush2.msra.mxu0 %v3177
      %3179 = vmatprep.subr.mxu0 0.0
      %v3180 = vand.u32 %v2903, 4294901760
      %v3181 = vsub.f32 %v2903, %v3180
      %v3182 = vand.u32 %v3181, 4294901760
      %v3183 = vsub.f32 %v3181, %v3182
      %v3184 = vand.u32 %v3183, 4294901760
      %3185 = vmatpush2.msra.mxu0 %v3184
      %3186 = vmatprep.subr.mxu0 0.0
      %v3187 = vand.u32 %v2902, 4294901760
      %v3188 = vsub.f32 %v2902, %v3187
      %v3189 = vand.u32 %v3188, 4294901760
      %v3190 = vsub.f32 %v3188, %v3189
      %v3191 = vand.u32 %v3190, 4294901760
      %3192 = vmatpush2.msra.mxu0 %v3191
      %3193 = vmatprep.subr.mxu0 0.0
      %v3194 = vand.u32 %v2901, 4294901760
      %v3195 = vsub.f32 %v2901, %v3194
      %v3196 = vand.u32 %v3195, 4294901760
      %v3197 = vsub.f32 %v3195, %v3196
      %v3198 = vand.u32 %v3197, 4294901760
      %3199 = vmatpush2.msra.mxu0 %v3198
      %3200 = vmatprep.subr.mxu0 0.0
      %v3201 = vand.u32 %v2900, 4294901760
      %v3202 = vsub.f32 %v2900, %v3201
      %v3203 = vand.u32 %v3202, 4294901760
      %v3204 = vsub.f32 %v3202, %v3203
      %v3205 = vand.u32 %v3204, 4294901760
      %3206 = vmatpush2.msra.mxu0 %v3205
      %3207 = vmatprep.subr.mxu0 0.0
      %v3208 = vand.u32 %v2899, 4294901760
      %v3209 = vsub.f32 %v2899, %v3208
      %v3210 = vand.u32 %v3209, 4294901760
      %v3211 = vsub.f32 %v3209, %v3210
      %v3212 = vand.u32 %v3211, 4294901760
      %3213 = vmatpush2.msra.mxu0 %v3212
      %v3214 = vand.u32 %v2907, 4294901760
      %3215 = vmatprep.mubr.f32.mxu0 %v3214
      %v3216 = vand.u32 %v2880, 4294901760
      %3217 = vmatmul.mubr.f32.gmra.mxu0 %v3216
      %v3218 = vpop.f32.mrf.mxu0
      %v3219 = vadd.f32 %v3012, %v3218
      %v3220 = vpop.f32.mrf.mxu0
      %v3221 = vand.u32 %v2909, 4294901760
      %3222 = vmatprep.mubr.f32.mxu0 %v3221
      %v3223 = vand.u32 %v2881, 4294901760
      %3224 = vmatmul.mubr.f32.gmra.mxu0 %v3223
      %v3225 = vpop.f32.mrf.mxu0
      %v3226 = vadd.f32 %v3027, %v3225
      %v3227 = vpop.f32.mrf.mxu0
      %3228 = vdwg.mxu0
      %3229 = vmatprep.subr.mxu0 0.0
      %v3230 = vand.u32 %v2898, 4294901760
      %v3231 = vsub.f32 %v2898, %v3230
      %3232 = vmatpush1.msra.mxu0 %v3231
      %3233 = vmatprep.subr.mxu0 0.0
      %v3234 = vand.u32 %v2897, 4294901760
      %v3235 = vsub.f32 %v2897, %v3234
      %3236 = vmatpush1.msra.mxu0 %v3235
      %3237 = vmatprep.subr.mxu0 0.0
      %v3238 = vand.u32 %v2896, 4294901760
      %v3239 = vsub.f32 %v2896, %v3238
      %3240 = vmatpush1.msra.mxu0 %v3239
      %3241 = vmatprep.subr.mxu0 0.0
      %v3242 = vand.u32 %v2895, 4294901760
      %v3243 = vsub.f32 %v2895, %v3242
      %3244 = vmatpush1.msra.mxu0 %v3243
      %3245 = vmatprep.subr.mxu0 0.0
      %v3246 = vand.u32 %v2894, 4294901760
      %v3247 = vsub.f32 %v2894, %v3246
      %3248 = vmatpush1.msra.mxu0 %v3247
      %3249 = vmatprep.subr.mxu0 0.0
      %v3250 = vand.u32 %v2893, 4294901760
      %v3251 = vsub.f32 %v2893, %v3250
      %3252 = vmatpush1.msra.mxu0 %v3251
      %3253 = vmatprep.subr.mxu0 0.0
      %v3254 = vand.u32 %v2892, 4294901760
      %v3255 = vsub.f32 %v2892, %v3254
      %3256 = vmatpush1.msra.mxu0 %v3255
      %3257 = vmatprep.subr.mxu0 0.0
      %v3258 = vand.u32 %v2891, 4294901760
      %v3259 = vsub.f32 %v2891, %v3258
      %3260 = vmatpush1.msra.mxu0 %v3259
      %3261 = vmatprep.subr.mxu0 0.0
      %v3262 = vand.u32 %v2890, 4294901760
      %v3263 = vsub.f32 %v2890, %v3262
      %3264 = vmatpush1.msra.mxu0 %v3263
      %3265 = vmatprep.subr.mxu0 0.0
      %v3266 = vand.u32 %v2889, 4294901760
      %v3267 = vsub.f32 %v2889, %v3266
      %3268 = vmatpush1.msra.mxu0 %v3267
      %3269 = vmatprep.subr.mxu0 0.0
      %v3270 = vand.u32 %v2888, 4294901760
      %v3271 = vsub.f32 %v2888, %v3270
      %3272 = vmatpush1.msra.mxu0 %v3271
      %3273 = vmatprep.subr.mxu0 0.0
      %v3274 = vand.u32 %v2887, 4294901760
      %v3275 = vsub.f32 %v2887, %v3274
      %3276 = vmatpush1.msra.mxu0 %v3275
      %3277 = vmatprep.subr.mxu0 0.0
      %v3278 = vand.u32 %v2886, 4294901760
      %v3279 = vsub.f32 %v2886, %v3278
      %3280 = vmatpush1.msra.mxu0 %v3279
      %3281 = vmatprep.subr.mxu0 0.0
      %v3282 = vand.u32 %v2885, 4294901760
      %v3283 = vsub.f32 %v2885, %v3282
      %3284 = vmatpush1.msra.mxu0 %v3283
      %3285 = vmatprep.subr.mxu0 0.0
      %v3286 = vand.u32 %v2884, 4294901760
      %v3287 = vsub.f32 %v2884, %v3286
      %3288 = vmatpush1.msra.mxu0 %v3287
      %3289 = vmatprep.subr.mxu0 0.0
      %v3290 = vand.u32 %v2883, 4294901760
      %v3291 = vsub.f32 %v2883, %v3290
      %3292 = vmatpush1.msra.mxu0 %v3291
      %3293 = vmatprep.subr.mxu0 0.0
      %3294 = vmatpush2.msra.mxu0 0.0
      %3295 = vmatprep.subr.mxu0 0.0
      %3296 = vmatpush2.msra.mxu0 0.0
      %3297 = vmatprep.subr.mxu0 0.0
      %3298 = vmatpush2.msra.mxu0 0.0
      %3299 = vmatprep.subr.mxu0 0.0
      %3300 = vmatpush2.msra.mxu0 0.0
      %3301 = vmatprep.subr.mxu0 0.0
      %3302 = vmatpush2.msra.mxu0 0.0
      %3303 = vmatprep.subr.mxu0 0.0
      %3304 = vmatpush2.msra.mxu0 0.0
      %3305 = vmatprep.subr.mxu0 0.0
      %3306 = vmatpush2.msra.mxu0 0.0
      %3307 = vmatprep.subr.mxu0 0.0
      %3308 = vmatpush2.msra.mxu0 0.0
      %3309 = vmatprep.subr.mxu0 0.0
      %v3310 = vand.u32 %v2906, 4294901760
      %v3311 = vsub.f32 %v2906, %v3310
      %3312 = vmatpush2.msra.mxu0 %v3311
      %3313 = vmatprep.subr.mxu0 0.0
      %v3314 = vand.u32 %v2905, 4294901760
      %v3315 = vsub.f32 %v2905, %v3314
      %3316 = vmatpush2.msra.mxu0 %v3315
      %3317 = vmatprep.subr.mxu0 0.0
      %v3318 = vand.u32 %v2904, 4294901760
      %v3319 = vsub.f32 %v2904, %v3318
      %3320 = vmatpush2.msra.mxu0 %v3319
      %3321 = vmatprep.subr.mxu0 0.0
      %v3322 = vand.u32 %v2903, 4294901760
      %v3323 = vsub.f32 %v2903, %v3322
      %3324 = vmatpush2.msra.mxu0 %v3323
      %3325 = vmatprep.subr.mxu0 0.0
      %v3326 = vand.u32 %v2902, 4294901760
      %v3327 = vsub.f32 %v2902, %v3326
      %3328 = vmatpush2.msra.mxu0 %v3327
      %3329 = vmatprep.subr.mxu0 0.0
      %v3330 = vand.u32 %v2901, 4294901760
      %v3331 = vsub.f32 %v2901, %v3330
      %3332 = vmatpush2.msra.mxu0 %v3331
      %3333 = vmatprep.subr.mxu0 0.0
      %v3334 = vand.u32 %v2900, 4294901760
      %v3335 = vsub.f32 %v2900, %v3334
      %3336 = vmatpush2.msra.mxu0 %v3335
      %3337 = vmatprep.subr.mxu0 0.0
      %v3338 = vand.u32 %v2899, 4294901760
      %v3339 = vsub.f32 %v2899, %v3338
      %3340 = vmatpush2.msra.mxu0 %v3339
      %v3341 = vand.u32 %v2907, 4294901760
      %v3342 = vsub.f32 %v2907, %v3341
      %3343 = vmatprep.mubr.f32.mxu0 %v3342
      %v3344 = vand.u32 %v2880, 4294901760
      %v3345 = vsub.f32 %v2880, %v3344
      %3346 = vmatmul.mubr.f32.gmra.mxu0 %v3345
      %v3347 = vpop.f32.mrf.mxu0
      %v3348 = vadd.f32 %v3219, %v3347
      %v3349 = vpop.f32.mrf.mxu0
      %v3350 = vand.u32 %v2909, 4294901760
      %v3351 = vsub.f32 %v2909, %v3350
      %3352 = vmatprep.mubr.f32.mxu0 %v3351
      %v3353 = vand.u32 %v2881, 4294901760
      %v3354 = vsub.f32 %v2881, %v3353
      %3355 = vmatmul.mubr.f32.gmra.mxu0 %v3354
      %v3356 = vpop.f32.mrf.mxu0
      %v3357 = vadd.f32 %v3226, %v3356
      %v3358 = vpop.f32.mrf.mxu0
      %3359 = vdwg.mxu0
      %3360 = vmatprep.subr.mxu0 0.0
      %v3361 = vand.u32 %v2898, 4294901760
      %3362 = vmatpush1.msra.mxu0 %v3361
      %3363 = vmatprep.subr.mxu0 0.0
      %v3364 = vand.u32 %v2897, 4294901760
      %3365 = vmatpush1.msra.mxu0 %v3364
      %3366 = vmatprep.subr.mxu0 0.0
      %v3367 = vand.u32 %v2896, 4294901760
      %3368 = vmatpush1.msra.mxu0 %v3367
      %3369 = vmatprep.subr.mxu0 0.0
      %v3370 = vand.u32 %v2895, 4294901760
      %3371 = vmatpush1.msra.mxu0 %v3370
      %3372 = vmatprep.subr.mxu0 0.0
      %v3373 = vand.u32 %v2894, 4294901760
      %3374 = vmatpush1.msra.mxu0 %v3373
      %3375 = vmatprep.subr.mxu0 0.0
      %v3376 = vand.u32 %v2893, 4294901760
      %3377 = vmatpush1.msra.mxu0 %v3376
      %3378 = vmatprep.subr.mxu0 0.0
      %v3379 = vand.u32 %v2892, 4294901760
      %3380 = vmatpush1.msra.mxu0 %v3379
      %3381 = vmatprep.subr.mxu0 0.0
      %v3382 = vand.u32 %v2891, 4294901760
      %3383 = vmatpush1.msra.mxu0 %v3382
      %3384 = vmatprep.subr.mxu0 0.0
      %v3385 = vand.u32 %v2890, 4294901760
      %3386 = vmatpush1.msra.mxu0 %v3385
      %3387 = vmatprep.subr.mxu0 0.0
      %v3388 = vand.u32 %v2889, 4294901760
      %3389 = vmatpush1.msra.mxu0 %v3388
      %3390 = vmatprep.subr.mxu0 0.0
      %v3391 = vand.u32 %v2888, 4294901760
      %3392 = vmatpush1.msra.mxu0 %v3391
      %3393 = vmatprep.subr.mxu0 0.0
      %v3394 = vand.u32 %v2887, 4294901760
      %3395 = vmatpush1.msra.mxu0 %v3394
      %3396 = vmatprep.subr.mxu0 0.0
      %v3397 = vand.u32 %v2886, 4294901760
      %3398 = vmatpush1.msra.mxu0 %v3397
      %3399 = vmatprep.subr.mxu0 0.0
      %v3400 = vand.u32 %v2885, 4294901760
      %3401 = vmatpush1.msra.mxu0 %v3400
      %3402 = vmatprep.subr.mxu0 0.0
      %v3403 = vand.u32 %v2884, 4294901760
      %3404 = vmatpush1.msra.mxu0 %v3403
      %3405 = vmatprep.subr.mxu0 0.0
      %v3406 = vand.u32 %v2883, 4294901760
      %3407 = vmatpush1.msra.mxu0 %v3406
      %3408 = vmatprep.subr.mxu0 0.0
      %3409 = vmatpush2.msra.mxu0 0.0
      %3410 = vmatprep.subr.mxu0 0.0
      %3411 = vmatpush2.msra.mxu0 0.0
      %3412 = vmatprep.subr.mxu0 0.0
      %3413 = vmatpush2.msra.mxu0 0.0
      %3414 = vmatprep.subr.mxu0 0.0
      %3415 = vmatpush2.msra.mxu0 0.0
      %3416 = vmatprep.subr.mxu0 0.0
      %3417 = vmatpush2.msra.mxu0 0.0
      %3418 = vmatprep.subr.mxu0 0.0
      %3419 = vmatpush2.msra.mxu0 0.0
      %3420 = vmatprep.subr.mxu0 0.0
      %3421 = vmatpush2.msra.mxu0 0.0
      %3422 = vmatprep.subr.mxu0 0.0
      %3423 = vmatpush2.msra.mxu0 0.0
      %3424 = vmatprep.subr.mxu0 0.0
      %v3425 = vand.u32 %v2906, 4294901760
      %3426 = vmatpush2.msra.mxu0 %v3425
      %3427 = vmatprep.subr.mxu0 0.0
      %v3428 = vand.u32 %v2905, 4294901760
      %3429 = vmatpush2.msra.mxu0 %v3428
      %3430 = vmatprep.subr.mxu0 0.0
      %v3431 = vand.u32 %v2904, 4294901760
      %3432 = vmatpush2.msra.mxu0 %v3431
      %3433 = vmatprep.subr.mxu0 0.0
      %v3434 = vand.u32 %v2903, 4294901760
      %3435 = vmatpush2.msra.mxu0 %v3434
      %3436 = vmatprep.subr.mxu0 0.0
      %v3437 = vand.u32 %v2902, 4294901760
      %3438 = vmatpush2.msra.mxu0 %v3437
      %3439 = vmatprep.subr.mxu0 0.0
      %v3440 = vand.u32 %v2901, 4294901760
      %3441 = vmatpush2.msra.mxu0 %v3440
      %3442 = vmatprep.subr.mxu0 0.0
      %v3443 = vand.u32 %v2900, 4294901760
      %3444 = vmatpush2.msra.mxu0 %v3443
      %3445 = vmatprep.subr.mxu0 0.0
      %v3446 = vand.u32 %v2899, 4294901760
      %3447 = vmatpush2.msra.mxu0 %v3446
      %v3448 = vand.u32 %v2907, 4294901760
      %v3449 = vsub.f32 %v2907, %v3448
      %v3450 = vand.u32 %v3449, 4294901760
      %3451 = vmatprep.mubr.f32.mxu0 %v3450
      %v3452 = vand.u32 %v2880, 4294901760
      %v3453 = vsub.f32 %v2880, %v3452
      %v3454 = vand.u32 %v3453, 4294901760
      %3455 = vmatmul.mubr.f32.gmra.mxu0 %v3454
      %v3456 = vpop.f32.mrf.mxu0
      %v3457 = vadd.f32 %v3348, %v3456
      %v3458 = vpop.f32.mrf.mxu0
      %v3459 = vand.u32 %v2909, 4294901760
      %v3460 = vsub.f32 %v2909, %v3459
      %v3461 = vand.u32 %v3460, 4294901760
      %3462 = vmatprep.mubr.f32.mxu0 %v3461
      %v3463 = vand.u32 %v2881, 4294901760
      %v3464 = vsub.f32 %v2881, %v3463
      %v3465 = vand.u32 %v3464, 4294901760
      %3466 = vmatmul.mubr.f32.gmra.mxu0 %v3465
      %v3467 = vpop.f32.mrf.mxu0
      %v3468 = vadd.f32 %v3357, %v3467
      %v3469 = vpop.f32.mrf.mxu0
      %3470 = vdwg.mxu0
      %3471 = vmatprep.subr.mxu0 0.0
      %v3472 = vand.u32 %v2898, 4294901760
      %v3473 = vsub.f32 %v2898, %v3472
      %v3474 = vand.u32 %v3473, 4294901760
      %3475 = vmatpush1.msra.mxu0 %v3474
      %3476 = vmatprep.subr.mxu0 0.0
      %v3477 = vand.u32 %v2897, 4294901760
      %v3478 = vsub.f32 %v2897, %v3477
      %v3479 = vand.u32 %v3478, 4294901760
      %3480 = vmatpush1.msra.mxu0 %v3479
      %3481 = vmatprep.subr.mxu0 0.0
      %v3482 = vand.u32 %v2896, 4294901760
      %v3483 = vsub.f32 %v2896, %v3482
      %v3484 = vand.u32 %v3483, 4294901760
      %3485 = vmatpush1.msra.mxu0 %v3484
      %3486 = vmatprep.subr.mxu0 0.0
      %v3487 = vand.u32 %v2895, 4294901760
      %v3488 = vsub.f32 %v2895, %v3487
      %v3489 = vand.u32 %v3488, 4294901760
      %3490 = vmatpush1.msra.mxu0 %v3489
      %3491 = vmatprep.subr.mxu0 0.0
      %v3492 = vand.u32 %v2894, 4294901760
      %v3493 = vsub.f32 %v2894, %v3492
      %v3494 = vand.u32 %v3493, 4294901760
      %3495 = vmatpush1.msra.mxu0 %v3494
      %3496 = vmatprep.subr.mxu0 0.0
      %v3497 = vand.u32 %v2893, 4294901760
      %v3498 = vsub.f32 %v2893, %v3497
      %v3499 = vand.u32 %v3498, 4294901760
      %3500 = vmatpush1.msra.mxu0 %v3499
      %3501 = vmatprep.subr.mxu0 0.0
      %v3502 = vand.u32 %v2892, 4294901760
      %v3503 = vsub.f32 %v2892, %v3502
      %v3504 = vand.u32 %v3503, 4294901760
      %3505 = vmatpush1.msra.mxu0 %v3504
      %3506 = vmatprep.subr.mxu0 0.0
      %v3507 = vand.u32 %v2891, 4294901760
      %v3508 = vsub.f32 %v2891, %v3507
      %v3509 = vand.u32 %v3508, 4294901760
      %3510 = vmatpush1.msra.mxu0 %v3509
      %3511 = vmatprep.subr.mxu0 0.0
      %v3512 = vand.u32 %v2890, 4294901760
      %v3513 = vsub.f32 %v2890, %v3512
      %v3514 = vand.u32 %v3513, 4294901760
      %3515 = vmatpush1.msra.mxu0 %v3514
      %3516 = vmatprep.subr.mxu0 0.0
      %v3517 = vand.u32 %v2889, 4294901760
      %v3518 = vsub.f32 %v2889, %v3517
      %v3519 = vand.u32 %v3518, 4294901760
      %3520 = vmatpush1.msra.mxu0 %v3519
      %3521 = vmatprep.subr.mxu0 0.0
      %v3522 = vand.u32 %v2888, 4294901760
      %v3523 = vsub.f32 %v2888, %v3522
      %v3524 = vand.u32 %v3523, 4294901760
      %3525 = vmatpush1.msra.mxu0 %v3524
      %3526 = vmatprep.subr.mxu0 0.0
      %v3527 = vand.u32 %v2887, 4294901760
      %v3528 = vsub.f32 %v2887, %v3527
      %v3529 = vand.u32 %v3528, 4294901760
      %3530 = vmatpush1.msra.mxu0 %v3529
      %3531 = vmatprep.subr.mxu0 0.0
      %v3532 = vand.u32 %v2886, 4294901760
      %v3533 = vsub.f32 %v2886, %v3532
      %v3534 = vand.u32 %v3533, 4294901760
      %3535 = vmatpush1.msra.mxu0 %v3534
      %3536 = vmatprep.subr.mxu0 0.0
      %v3537 = vand.u32 %v2885, 4294901760
      %v3538 = vsub.f32 %v2885, %v3537
      %v3539 = vand.u32 %v3538, 4294901760
      %3540 = vmatpush1.msra.mxu0 %v3539
      %3541 = vmatprep.subr.mxu0 0.0
      %v3542 = vand.u32 %v2884, 4294901760
      %v3543 = vsub.f32 %v2884, %v3542
      %v3544 = vand.u32 %v3543, 4294901760
      %3545 = vmatpush1.msra.mxu0 %v3544
      %3546 = vmatprep.subr.mxu0 0.0
      %v3547 = vand.u32 %v2883, 4294901760
      %v3548 = vsub.f32 %v2883, %v3547
      %v3549 = vand.u32 %v3548, 4294901760
      %3550 = vmatpush1.msra.mxu0 %v3549
      %3551 = vmatprep.subr.mxu0 0.0
      %3552 = vmatpush2.msra.mxu0 0.0
      %3553 = vmatprep.subr.mxu0 0.0
      %3554 = vmatpush2.msra.mxu0 0.0
      %3555 = vmatprep.subr.mxu0 0.0
      %3556 = vmatpush2.msra.mxu0 0.0
      %3557 = vmatprep.subr.mxu0 0.0
      %3558 = vmatpush2.msra.mxu0 0.0
      %3559 = vmatprep.subr.mxu0 0.0
      %3560 = vmatpush2.msra.mxu0 0.0
      %3561 = vmatprep.subr.mxu0 0.0
      %3562 = vmatpush2.msra.mxu0 0.0
      %3563 = vmatprep.subr.mxu0 0.0
      %3564 = vmatpush2.msra.mxu0 0.0
      %3565 = vmatprep.subr.mxu0 0.0
      %3566 = vmatpush2.msra.mxu0 0.0
      %3567 = vmatprep.subr.mxu0 0.0
      %v3568 = vand.u32 %v2906, 4294901760
      %v3569 = vsub.f32 %v2906, %v3568
      %v3570 = vand.u32 %v3569, 4294901760
      %3571 = vmatpush2.msra.mxu0 %v3570
      %3572 = vmatprep.subr.mxu0 0.0
      %v3573 = vand.u32 %v2905, 4294901760
      %v3574 = vsub.f32 %v2905, %v3573
      %v3575 = vand.u32 %v3574, 4294901760
      %3576 = vmatpush2.msra.mxu0 %v3575
      %3577 = vmatprep.subr.mxu0 0.0
      %v3578 = vand.u32 %v2904, 4294901760
      %v3579 = vsub.f32 %v2904, %v3578
      %v3580 = vand.u32 %v3579, 4294901760
      %3581 = vmatpush2.msra.mxu0 %v3580
      %3582 = vmatprep.subr.mxu0 0.0
      %v3583 = vand.u32 %v2903, 4294901760
      %v3584 = vsub.f32 %v2903, %v3583
      %v3585 = vand.u32 %v3584, 4294901760
      %3586 = vmatpush2.msra.mxu0 %v3585
      %3587 = vmatprep.subr.mxu0 0.0
      %v3588 = vand.u32 %v2902, 4294901760
      %v3589 = vsub.f32 %v2902, %v3588
      %v3590 = vand.u32 %v3589, 4294901760
      %3591 = vmatpush2.msra.mxu0 %v3590
      %3592 = vmatprep.subr.mxu0 0.0
      %v3593 = vand.u32 %v2901, 4294901760
      %v3594 = vsub.f32 %v2901, %v3593
      %v3595 = vand.u32 %v3594, 4294901760
      %3596 = vmatpush2.msra.mxu0 %v3595
      %3597 = vmatprep.subr.mxu0 0.0
      %v3598 = vand.u32 %v2900, 4294901760
      %v3599 = vsub.f32 %v2900, %v3598
      %v3600 = vand.u32 %v3599, 4294901760
      %3601 = vmatpush2.msra.mxu0 %v3600
      %3602 = vmatprep.subr.mxu0 0.0
      %v3603 = vand.u32 %v2899, 4294901760
      %v3604 = vsub.f32 %v2899, %v3603
      %v3605 = vand.u32 %v3604, 4294901760
      %3606 = vmatpush2.msra.mxu0 %v3605
      %v3607 = vand.u32 %v2907, 4294901760
      %3608 = vmatprep.mubr.f32.mxu0 %v3607
      %v3609 = vand.u32 %v2880, 4294901760
      %3610 = vmatmul.mubr.f32.gmra.mxu0 %v3609
      %v3611 = vpop.f32.mrf.mxu0
      %v3612 = vadd.f32 %v3457, %v3611
      %v3613 = vpop.f32.mrf.mxu0
      %v3614 = vand.u32 %v2909, 4294901760
      %3615 = vmatprep.mubr.f32.mxu0 %v3614
      %v3616 = vand.u32 %v2881, 4294901760
      %3617 = vmatmul.mubr.f32.gmra.mxu0 %v3616
      %v3618 = vpop.f32.mrf.mxu0
      %v3619 = vadd.f32 %v3468, %v3618
      %v3620 = vpop.f32.mrf.mxu0
      %3621 = vdwg.mxu0
      %3622 = vmatprep.subr.mxu0 0.0
      %v3623 = vand.u32 %v2898, 4294901760
      %3624 = vmatpush1.msra.mxu0 %v3623
      %3625 = vmatprep.subr.mxu0 0.0
      %v3626 = vand.u32 %v2897, 4294901760
      %3627 = vmatpush1.msra.mxu0 %v3626
      %3628 = vmatprep.subr.mxu0 0.0
      %v3629 = vand.u32 %v2896, 4294901760
      %3630 = vmatpush1.msra.mxu0 %v3629
      %3631 = vmatprep.subr.mxu0 0.0
      %v3632 = vand.u32 %v2895, 4294901760
      %3633 = vmatpush1.msra.mxu0 %v3632
      %3634 = vmatprep.subr.mxu0 0.0
      %v3635 = vand.u32 %v2894, 4294901760
      %3636 = vmatpush1.msra.mxu0 %v3635
      %3637 = vmatprep.subr.mxu0 0.0
      %v3638 = vand.u32 %v2893, 4294901760
      %3639 = vmatpush1.msra.mxu0 %v3638
      %3640 = vmatprep.subr.mxu0 0.0
      %v3641 = vand.u32 %v2892, 4294901760
      %3642 = vmatpush1.msra.mxu0 %v3641
      %3643 = vmatprep.subr.mxu0 0.0
      %v3644 = vand.u32 %v2891, 4294901760
      %3645 = vmatpush1.msra.mxu0 %v3644
      %3646 = vmatprep.subr.mxu0 0.0
      %v3647 = vand.u32 %v2890, 4294901760
      %3648 = vmatpush1.msra.mxu0 %v3647
      %3649 = vmatprep.subr.mxu0 0.0
      %v3650 = vand.u32 %v2889, 4294901760
      %3651 = vmatpush1.msra.mxu0 %v3650
      %3652 = vmatprep.subr.mxu0 0.0
      %v3653 = vand.u32 %v2888, 4294901760
      %3654 = vmatpush1.msra.mxu0 %v3653
      %3655 = vmatprep.subr.mxu0 0.0
      %v3656 = vand.u32 %v2887, 4294901760
      %3657 = vmatpush1.msra.mxu0 %v3656
      %3658 = vmatprep.subr.mxu0 0.0
      %v3659 = vand.u32 %v2886, 4294901760
      %3660 = vmatpush1.msra.mxu0 %v3659
      %3661 = vmatprep.subr.mxu0 0.0
      %v3662 = vand.u32 %v2885, 4294901760
      %3663 = vmatpush1.msra.mxu0 %v3662
      %3664 = vmatprep.subr.mxu0 0.0
      %v3665 = vand.u32 %v2884, 4294901760
      %3666 = vmatpush1.msra.mxu0 %v3665
      %3667 = vmatprep.subr.mxu0 0.0
      %v3668 = vand.u32 %v2883, 4294901760
      %3669 = vmatpush1.msra.mxu0 %v3668
      %3670 = vmatprep.subr.mxu0 0.0
      %3671 = vmatpush2.msra.mxu0 0.0
      %3672 = vmatprep.subr.mxu0 0.0
      %3673 = vmatpush2.msra.mxu0 0.0
      %3674 = vmatprep.subr.mxu0 0.0
      %3675 = vmatpush2.msra.mxu0 0.0
      %3676 = vmatprep.subr.mxu0 0.0
      %3677 = vmatpush2.msra.mxu0 0.0
      %3678 = vmatprep.subr.mxu0 0.0
      %3679 = vmatpush2.msra.mxu0 0.0
      %3680 = vmatprep.subr.mxu0 0.0
      %3681 = vmatpush2.msra.mxu0 0.0
      %3682 = vmatprep.subr.mxu0 0.0
      %3683 = vmatpush2.msra.mxu0 0.0
      %3684 = vmatprep.subr.mxu0 0.0
      %3685 = vmatpush2.msra.mxu0 0.0
      %3686 = vmatprep.subr.mxu0 0.0
      %v3687 = vand.u32 %v2906, 4294901760
      %3688 = vmatpush2.msra.mxu0 %v3687
      %3689 = vmatprep.subr.mxu0 0.0
      %v3690 = vand.u32 %v2905, 4294901760
      %3691 = vmatpush2.msra.mxu0 %v3690
      %3692 = vmatprep.subr.mxu0 0.0
      %v3693 = vand.u32 %v2904, 4294901760
      %3694 = vmatpush2.msra.mxu0 %v3693
      %3695 = vmatprep.subr.mxu0 0.0
      %v3696 = vand.u32 %v2903, 4294901760
      %3697 = vmatpush2.msra.mxu0 %v3696
      %3698 = vmatprep.subr.mxu0 0.0
      %v3699 = vand.u32 %v2902, 4294901760
      %3700 = vmatpush2.msra.mxu0 %v3699
      %3701 = vmatprep.subr.mxu0 0.0
      %v3702 = vand.u32 %v2901, 4294901760
      %3703 = vmatpush2.msra.mxu0 %v3702
      %3704 = vmatprep.subr.mxu0 0.0
      %v3705 = vand.u32 %v2900, 4294901760
      %3706 = vmatpush2.msra.mxu0 %v3705
      %3707 = vmatprep.subr.mxu0 0.0
      %v3708 = vand.u32 %v2899, 4294901760
      %3709 = vmatpush2.msra.mxu0 %v3708
      %v3710 = vand.u32 %v2907, 4294901760
      %3711 = vmatprep.mubr.f32.mxu0 %v3710
      %v3712 = vand.u32 %v2880, 4294901760
      %3713 = vmatmul.mubr.f32.gmra.mxu0 %v3712
      %v3714 = vpop.f32.mrf.mxu0
      %v3715 = vadd.f32 %v3612, %v3714
      %v3716 = vpop.f32.mrf.mxu0
      %v3717 = vand.u32 %v2909, 4294901760
      %3718 = vmatprep.mubr.f32.mxu0 %v3717
      %v3719 = vand.u32 %v2881, 4294901760
      %3720 = vmatmul.mubr.f32.gmra.mxu0 %v3719
      %v3721 = vpop.f32.mrf.mxu0
      %v3722 = vadd.f32 %v3619, %v3721
      %v3723 = vpop.f32.mrf.mxu0
      %3724 = vdwg.mxu0
      %3727 = vrot.lane.b32.xlu0 %v3715, 64
      %v3728 = vpop.permute.xlu0 %3727
      %3729 = vrot.lane.b32.xlu0 %v3722, 64
      %v3730 = vpop.permute.xlu0 %3729
      %v3733 = vadd.f32 %v1959, %v3728
      %v3734 = vadd.f32 %v1960, %v3730
      %s3735 = scalar_lea.vmem %s2, 3
      %v3736 = vld [vmem:[%s3735] sm:$0x1]
      %v3738 = vlaneseq
      %v3739 = vshrl.u32 %v3738, 7
      %v3740 = vsub.s32 0, %v3739
      %v3741 = vrot.slane %v3736, %v3740
      %3742 = vrot.lane.b32.xlu0 %v3741, 64
      %v3743 = vpop.permute.xlu0 %3742
      %v3745 = vadd.f32 %v3733, %v3743
      %v3746 = vadd.f32 %v3734, %v3743
      %3747 = vst.msk [vmem:[%s170] sm:$0xff] %vm210, %v2850
      %3748 = vst.msk [vmem:[%s170 + $0x8] sm:$0xff] %vm210, %v2851
      %vm3749 = vcmask 1048064
      %3750 = vst.msk [vmem:[%s170] sm:$0xff] %vm3749, %v3745
      %3751 = vst.msk [vmem:[%s170 + $0x8] sm:$0xff] %vm3749, %v3746
      %p3752 = scmp.lt.s32.totalorder %s14, 1
      %s3753 = scalar_select %p3752, %s14, 1
      %s3754 = smul.addr %s3753, 2
      %s3755 = smul.addr %s3754, 8
      %s3756 = scalar_lea.vmem %s3, %s3755
      // Predicated region
      $region33: #{reversible_sequential_forward.1} parent=31 // pred_check
        %p3757 = pneg %p100
      $region34: #{reversible_sequential_forward.1} parent=31 // pred_check_branch
        %3759 = sbr.rel (%p3757) target = $region36
      $region35: #{reversible_sequential_forward.1} parent=31 // pred_region
        _
      $region36: #{reversible_sequential_forward.1} parent=31 // pred_fallthru
        _
    $region32: #{reversible_sequential_forward.1} parent=5 // pred_fallthru
      _
    %p3760 = scmp.le.s32.totalorder 2, %s9
    // Predicated region
    $region37: #{reversible_sequential_forward.1} parent=5 // pred_check
      %p3761 = pneg %p3760
    $region38: #{reversible_sequential_forward.1} parent=5 // pred_check_branch
      %3763 = sbr.rel (%p3761) target = $region40
    $region39: #{reversible_sequential_forward.1} parent=5 // pred_region
      %s3764 = ssub.s32 %s9, 2
      // Predicated region
      $region41: #{reversible_sequential_forward.1} parent=39 // pred_check
        %p3765 = pneg %p106
      $region42: #{reversible_sequential_forward.1} parent=39 // pred_check_branch
        %3767 = sbr.rel (%p3765) target = $region44
      $region43: #{reversible_sequential_forward.1} parent=39 // pred_region
        %p3768 = scmp.lt.s32.totalorder %s15, 1
        %s3769 = scalar_select %p3768, %s15, 1
        %s3770 = smul.addr %s3769, 2
        %s3771 = smul.addr %s3770, 8
        %s3772 = scalar_lea.vmem %s3, %s3771
      $region44: #{reversible_sequential_forward.1} parent=39 // pred_fallthru
        _
    $region40: #{reversible_sequential_forward.1} parent=5 // pred_fallthru
      _
  $region6: #{reversible_sequential_forward.1} parent=0 // loop_footer
    %s13 = sadd.s32 1, %s9
  $region7: #{reversible_sequential_forward.1} parent=0 // loop_footer_branch
    %8 = sbr.rel target = $region3
  $region8: #{reversible_sequential_forward.1} parent=0 // loop_exit
    _

</llo_original>
